<compile_context>
chip_gen: v7x
topology: tpu7x:2x2x1
jax: 0.10.0
libtpu: 0.0.40
codegen_flags: <defaults>
</compile_context>

<pallas_src>
import jax
import jax.numpy as jnp
from jax.experimental import pallas as pl
from jax.experimental.pallas import tpu as pltpu


# ----------------------------- fused Pallas kernel ---------------------------

def _make_kernel(batch_block, n_out):
    """Kernel processing `batch_block` samples per grid step.

    Refs:
      p1_ref : (B*144, 180) bf16  layer-1 patches; per sample: rows 0..64 = even
                                  conv cols, 65..71 pad, 72..135 = odd cols,
                                  136..143 pad; lane = 60*h + 30*kh + kw.
      w1_ref : (180, 96)    bf16  block-diag layer-1 weight (BN scale folded).
      b1_ref : (1, 96)      f32   layer-1 BN shift tiled over the 3 rows.
      w2_ref : (16, 256, 128) bf16 layer-2 kw-tap-group weights (block-diag over
                                   the two output rows, BN scale folded).
      b2_ref : (1, 128)     f32   layer-2 BN shift tiled over the 2 rows.
      w3_ref : (n_out, 64, 128) f32  layer-3 planes, lane = 64*h2 + cin.
      b3_ref : (1, 128)     f32   layer-3 bias (lane-padded).
      o_ref  : (B, 128)     f32
      z_ref  : (96, 256)    bf16  scratch: layer-2 tap buffer for one sample,
                                  rows 16..79 data, 0..15 / 80..95 zero pad,
                                  lane = 128*h2 + 64*par + 32*kh + cin.
    """

    def kernel(p1_ref, w1_ref, b1_ref, w2_ref, b2_ref, w3_ref, b3_ref,
               o_ref, z_ref):
        # Zero only the conv zero-padding rows of the tap buffer.  Data rows
        # 16..79 are fully overwritten for every sample.  This runs every grid
        # step (never program_id-guarded: scratch is per-TensorCore on v7x).
        z_ref[0:16, :] = jnp.zeros((16, 256), z_ref.dtype)
        z_ref[80:96, :] = jnp.zeros((16, 256), z_ref.dtype)

        lane = jax.lax.broadcasted_iota(jnp.int32, (1, 128), 1)  # hoisted

        @pl.loop(0, batch_block)
        def _sample(b):
            # ---- layer 1: conv(1->32, k=(2,30), s=(1,2), p=(1,15)) -----------
            # One matmul for all 3 output rows (packed into 96 lanes) and both
            # column parities (rows of p1).
            r0 = pl.multiple_of(b * 144, 16)
            y1 = jnp.dot(p1_ref[pl.ds(r0, 144), :], w1_ref[...],
                         preferred_element_type=jnp.float32)        # (144, 96)
            y1 = y1 + b1_ref[...]                    # BatchNorm (eval, folded)
            y1 = jnp.where(y1 >= 0.0, y1, 0.1 * y1)  # LeakyReLU(0.1)

            v_even = y1[0:65]        # conv cols 0,2,...,128
            v_odd = y1[72:136]       # conv cols 1,3,...,127
            # MaxPool2d((1,2), stride=1): pooled even / odd output columns.
            pe = jnp.maximum(v_even[0:64], v_odd)          # (64, 96)
            po = jnp.maximum(v_odd, v_even[1:65])          # (64, 96)

            # Layer-2 tap buffer: one aligned full-width store per sample.
            zval = jnp.concatenate(
                [pe[:, 0:64], po[:, 0:64], pe[:, 32:96], po[:, 32:96]], axis=1)
            z_ref[16:80, :] = zval.astype(z_ref.dtype)     # rows 16..79

            # ---- layer 2: conv(32->64, k=(2,30), s=(1,2), p=(0,15)) ----------
            # 16 kw-tap groups; both output rows computed at once through the
            # block-diagonal weights -> lane-dense (65,128) accumulator.
            acc = jnp.zeros((65, 128), jnp.float32)
            for g in range(16):
                acc = acc + jnp.dot(z_ref[g + 8:g + 73, :], w2_ref[g],
                                    preferred_element_type=jnp.float32)
            y2 = acc + b2_ref[...]                    # BatchNorm (eval, folded)
            y2 = jnp.where(y2 >= 0.0, y2, 0.1 * y2)   # LeakyReLU(0.1)
            y2 = jnp.maximum(y2[0:64], y2[1:65])      # MaxPool -> (64, 128)

            # ---- layer 3: conv(64->n_out, k=(2,64)) == FC --------------------
            # n_out is tiny: per-plane VPU multiply + full reduce (no M=1
            # matmuls, no sublane->lane relayout, w3 stays (n_out,64,128)).
            row = b3_ref[...]                              # (1, 128)
            for co in range(n_out):
                s = jnp.sum(y2 * w3_ref[co])
                row = row + jnp.where(lane == co, s, 0.0)
            o_ref[pl.ds(b, 1), :] = row

    return kernel


# -------------------------------- JAX glue -----------------------------------

def wave2_forward(x, params, n_out=2):
    x = x.reshape(-1, 2, 256)                      # view(-1, 2, 256)
    n = x.shape[0]
    bb = 16 if n >= 16 else 8                      # samples per grid step
    n_blocks = -(-n // bb)
    n_pad = n_blocks * bb

    # Layer-1 im2col via static strided slices (no XLA gathers).  Per sample:
    # rows 0..64 even conv cols, 65..71 pad, 72..135 odd cols, 136..143 pad;
    # lane = 60*h + 30*kh + kw.
    xpad = jnp.pad(x, ((0, 0), (1, 1), (15, 15)))                # (N, 4, 286)
    taps = [xpad[:, kh:kh + 3, kw:kw + 257:2]
            for kh in range(2) for kw in range(30)]              # (N, 3, 129)
    p = jnp.stack(taps, axis=-1)                                 # (N,3,129,60)
    even = p[:, :, 0::2, :].transpose(0, 2, 1, 3).reshape(n, 65, 180)
    odd = p[:, :, 1::2, :].transpose(0, 2, 1, 3).reshape(n, 64, 180)
    p1 = jnp.concatenate(
        [even, jnp.zeros((n, 7, 180), x.dtype), odd,
         jnp.zeros((n, 8, 180), x.dtype)], axis=1)               # (N, 144, 180)
    p1 = jnp.pad(p1, ((0, n_pad - n), (0, 0), (0, 0)))
    p1 = p1.reshape(n_pad * 144, 180).astype(jnp.bfloat16)

    out = pl.pallas_call(
        _make_kernel(bb, n_out),
        out_shape=jax.ShapeDtypeStruct((n_pad, 128), jnp.float32),
        grid=(n_blocks,),
        in_specs=[
            pl.BlockSpec((bb * 144, 180), lambda i: (i, 0)),
            pl.BlockSpec((180, 96), lambda i: (0, 0)),
            pl.BlockSpec((1, 96), lambda i: (0, 0)),
            pl.BlockSpec((16, 256, 128), lambda i: (0, 0, 0)),
            pl.BlockSpec((1, 128), lambda i: (0, 0)),
            pl.BlockSpec((n_out, 64, 128), lambda i: (0, 0, 0)),
            pl.BlockSpec((1, 128), lambda i: (0, 0)),
        ],
        out_specs=pl.BlockSpec((bb, 128), lambda i: (i, 0)),
        scratch_shapes=[pltpu.VMEM((96, 256), jnp.bfloat16)],
        compiler_params=pltpu.CompilerParams(
            dimension_semantics=("parallel",),
            vmem_limit_bytes=32 * 1024 * 1024,     # v7x-safe; usage ~4-5 MB
        ),
    )(p1, params["w1h"], params["b1"], params["w2g"], params["b2"],
      params["w3"], params["b3"])
    return out[:n, :n_out]


# ------------------------------ parameters -----------------------------------

def init_raw_params(key, n_out=2):
    k1, k2, k3, k4 = jax.random.split(key, 4)
    w1 = jax.random.normal(k1, (32, 1, 2, 30), jnp.float32) * 0.05
    w2 = jax.random.normal(k2, (64, 32, 2, 30), jnp.float32) * 0.02
    w3 = jax.random.normal(k3, (n_out, 64, 2, 64), jnp.float32) * 0.01
    b3 = jax.random.normal(k4, (n_out,), jnp.float32) * 0.01
    eps = 1e-5

    def bn(c, salt):
        i = jnp.arange(c, dtype=jnp.float32)
        gamma = 1.0 + 0.01 * i
        beta = 0.01 * jnp.cos(i + salt)
        mean = 0.02 * jnp.sin(i)
        var = 1.0 + 0.05 * (i % 3)
        scale = gamma / jnp.sqrt(var + eps)
        shift = beta - mean * scale
        return scale, shift

    s1, sh1 = bn(32, 0.0)
    s2, sh2 = bn(64, 1.0)
    return dict(w1=w1, w2=w2, w3=w3, b3=b3, s1=s1, sh1=sh1, s2=s2, sh2=sh2)


def pack_params(raw, n_out=2):
    w1, w2, w3, b3 = raw["w1"], raw["w2"], raw["w3"], raw["b3"]
    s1, sh1, s2, sh2 = raw["s1"], raw["sh1"], raw["s2"], raw["sh2"]

    # layer 1: block-diagonal over the 3 output rows; BN scale folded in.
    w1flat = w1[:, 0].transpose(1, 2, 0).reshape(60, 32) * s1[None, :]
    w1h = jnp.zeros((180, 96), jnp.float32)
    for h in range(3):
        w1h = w1h.at[60 * h:60 * h + 60, 32 * h:32 * h + 32].set(w1flat)
    b1 = jnp.tile(sh1, 3).reshape(1, 96)

    # layer 2: kw tap groups.  Group g pairs kw=2g-1 (even cols) with kw=2g
    # (odd cols); rows = 128*h2 + 64*par + 32*kh + cin, cols = 64*h2 + cout.
    w2s = w2 * s2[:, None, None, None]
    w2g = jnp.zeros((16, 256, 128), jnp.float32)
    for g in range(16):
        for par in range(2):
            kw = 2 * g - 1 + par
            if kw < 0 or kw > 29:
                continue
            for h2 in range(2):
                for kh in range(2):
                    r = 128 * h2 + 64 * par + 32 * kh
                    w2g = w2g.at[g, r:r + 32, 64 * h2:64 * h2 + 64].set(
                        w2s[:, :, kh, kw].T)
    b2 = jnp.concatenate([sh2, sh2]).reshape(1, 128)

    # layer 3: per-output-channel planes, lane = 64*h2 + cin; lane-padded bias.
    w3p = jnp.transpose(w3, (0, 3, 2, 1)).reshape(n_out, 64, 128)
    b3p = jnp.zeros((1, 128), jnp.float32).at[0, :n_out].set(b3)

    return {
        "w1h": w1h.astype(jnp.bfloat16),
        "b1": b1,
        "w2g": w2g.astype(jnp.bfloat16),
        "b2": b2,
        "w3": w3p,
        "b3": b3p,
    }


# --------------------------- pure-JAX reference -------------------------------

def reference_forward(x, raw, n_out=2):
    x = x.reshape(-1, 2, 256)[:, None, :, :]

    def conv(v, w, stride, pad):
        return jax.lax.conv_general_dilated(
            v, w, window_strides=stride, padding=pad,
            dimension_numbers=("NCHW", "OIHW", "NCHW"))

    def act(v, s, sh):
        v = v * s[None, :, None, None] + sh[None, :, None, None]
        return jnp.where(v >= 0.0, v, 0.1 * v)

    def pool(v):
        return jnp.maximum(v[..., :-1], v[..., 1:])

    y = pool(act(conv(x, raw["w1"], (1, 2), ((1, 1), (15, 15))),
                 raw["s1"], raw["sh1"]))
    y = pool(act(conv(y, raw["w2"], (1, 2), ((0, 0), (15, 15))),
                 raw["s2"], raw["sh2"]))
    y = conv(y, raw["w3"], (1, 1), ((0, 0), (0, 0)))
    y = y + raw["b3"][None, :, None, None]
    return y.reshape(y.shape[0], -1)


if __name__ == "__main__":
    key = jax.random.PRNGKey(0)
    xkey, pkey = jax.random.split(key)
    # batch=2, each sample 512 elements -> view(-1, 2, 256) gives N=2
    x = jax.random.normal(xkey, (2, 512), jnp.float32)
    raw = init_raw_params(pkey, n_out=2)
    params = pack_params(raw, n_out=2)

    fwd = jax.jit(wave2_forward, static_argnames=("n_out",))
    out = fwd(x, params, n_out=2)
    jax.block_until_ready(out)
    assert out.shape == (2, 2), out.shape
    assert bool(jnp.all(jnp.isfinite(out)))

    ref = reference_forward(x, raw, n_out=2)
    err = float(jnp.max(jnp.abs(out - ref)))
    assert err < 6e-2, f"kernel vs reference max abs err {err}"
    print("KERNEL_OK")
</pallas_src>

<mosaic_0001>
module attributes {stable_mosaic.version = 11 : i64} {
  func.func @kernel(%arg0: i32, %arg1: memref<1152x180xbf16, #tpu.memory_space<vmem>>, %arg2: memref<180x96xbf16, #tpu.memory_space<vmem>>, %arg3: memref<1x96xf32, #tpu.memory_space<vmem>>, %arg4: memref<16x256x128xbf16, #tpu.memory_space<vmem>>, %arg5: memref<1x128xf32, #tpu.memory_space<vmem>>, %arg6: memref<2x64x128xf32, #tpu.memory_space<vmem>>, %arg7: memref<1x128xf32, #tpu.memory_space<vmem>>, %arg8: memref<8x128xf32, #tpu.memory_space<vmem>>, %arg9: memref<96x256xbf16, #tpu.memory_space<vmem>>) attributes {dimension_semantics = [#tpu.dimension_semantics<parallel>], iteration_bounds = array<i64: 1>, scalar_prefetch = 0 : i64, scratch_operands = 1 : i64, tpu.core_type = #tpu.core_type<tc>, window_params = [{transform_indices = @transform_0, window_bounds = array<i64: 1152, 180>}, {pipeline_mode = #tpu.pipeline_mode<synchronous>, transform_indices = @transform_1, window_bounds = array<i64: 180, 96>}, {pipeline_mode = #tpu.pipeline_mode<synchronous>, transform_indices = @transform_2, window_bounds = array<i64: 1, 96>}, {pipeline_mode = #tpu.pipeline_mode<synchronous>, transform_indices = @transform_3, window_bounds = array<i64: 16, 256, 128>}, {pipeline_mode = #tpu.pipeline_mode<synchronous>, transform_indices = @transform_4, window_bounds = array<i64: 1, 128>}, {pipeline_mode = #tpu.pipeline_mode<synchronous>, transform_indices = @transform_5, window_bounds = array<i64: 2, 64, 128>}, {pipeline_mode = #tpu.pipeline_mode<synchronous>, transform_indices = @transform_6, window_bounds = array<i64: 1, 128>}, {transform_indices = @transform_7, window_bounds = array<i64: 8, 128>}]} {
    %cst = arith.constant 0.000000e+00 : bf16
    %0 = vector.broadcast %cst : bf16 to vector<16x256xbf16>
    %c0 = arith.constant 0 : index
    %c0_0 = arith.constant 0 : index
    %1 = vector.load %arg9[%c0, %c0_0] : memref<96x256xbf16, #tpu.memory_space<vmem>>, vector<16x256xbf16>
    tpu.vector_store %arg9[%c0, %c0_0], %0 {strides = array<i32>} : memref<96x256xbf16, #tpu.memory_space<vmem>>, vector<16x256xbf16>,
    %cst_1 = arith.constant 0.000000e+00 : bf16
    %2 = vector.broadcast %cst_1 : bf16 to vector<16x256xbf16>
    %c80 = arith.constant 80 : index
    %c0_2 = arith.constant 0 : index
    %3 = vector.load %arg9[%c80, %c0_2] : memref<96x256xbf16, #tpu.memory_space<vmem>>, vector<16x256xbf16>
    tpu.vector_store %arg9[%c80, %c0_2], %2 {strides = array<i32>} : memref<96x256xbf16, #tpu.memory_space<vmem>>, vector<16x256xbf16>,
    %4 = tpu.iota {dimensions = array<i32: 1>} : vector<1x128xi32>
    %c0_i32 = arith.constant 0 : i32
    %c8_i32 = arith.constant 8 : i32
    %5 = arith.addi %c0_i32, %c8_i32 : i32
    %c1_i32 = arith.constant 1 : i32
    scf.for %arg10 = %c0_i32 to %5 step %c1_i32  : i32 {
      %c1_i32_4 = arith.constant 1 : i32
      %6 = arith.muli %arg10, %c1_i32_4 : i32
      %c0_i32_5 = arith.constant 0 : i32
      %7 = arith.addi %c0_i32_5, %6 : i32
      %c144_i32 = arith.constant 144 : i32
      %8 = arith.muli %7, %c144_i32 : i32
      %9 = tpu.assume_multiple %8, 16 : i32
      %10 = arith.index_cast %9 : i32 to index
      %c0_6 = arith.constant 0 : index
      %11 = vector.load %arg1[%10, %c0_6] : memref<1152x180xbf16, #tpu.memory_space<vmem>>, vector<144x180xbf16>
      %c0_7 = arith.constant 0 : index
      %c0_8 = arith.constant 0 : index
      %12 = vector.load %arg2[%c0_7, %c0_8] : memref<180x96xbf16, #tpu.memory_space<vmem>>, vector<180x96xbf16>
      %cst_9 = arith.constant dense<0.000000e+00> : vector<144x96xf32>
      %13 = tpu.matmul %11, %12, %cst_9 {dimension_numbers = #tpu.dot_dimension_numbers<[1], [0], [0], [1], [0, 0, 1, 1], [], []>} : vector<144x180xbf16>, vector<180x96xbf16>, vector<144x96xf32> -> vector<144x96xf32>
      %c0_10 = arith.constant 0 : index
      %c0_11 = arith.constant 0 : index
      %14 = vector.load %arg3[%c0_10, %c0_11] : memref<1x96xf32, #tpu.memory_space<vmem>>, vector<1x96xf32>
      %15 = vector.broadcast %14 : vector<1x96xf32> to vector<144x96xf32>
      %16 = arith.addf %13, %15 : vector<144x96xf32>
      %cst_12 = arith.constant 0.000000e+00 : f32
      %17 = vector.broadcast %cst_12 : f32 to vector<144x96xf32>
      %18 = arith.cmpf oge, %16, %17 : vector<144x96xf32>
      %cst_13 = arith.constant 1.000000e-01 : f32
      %19 = vector.broadcast %cst_13 : f32 to vector<144x96xf32>
      %20 = arith.mulf %19, %16 : vector<144x96xf32>
      %21 = arith.select %18, %16, %20 : vector<144x96xi1>, vector<144x96xf32>
      %22 = vector.extract_strided_slice %21 {offsets = [0, 0], sizes = [65, 96], strides = [1, 1]} : vector<144x96xf32> to vector<65x96xf32>
      %23 = vector.extract_strided_slice %21 {offsets = [72, 0], sizes = [64, 96], strides = [1, 1]} : vector<144x96xf32> to vector<64x96xf32>
      %24 = vector.extract_strided_slice %22 {offsets = [0, 0], sizes = [64, 96], strides = [1, 1]} : vector<65x96xf32> to vector<64x96xf32>
      %25 = arith.maximumf %24, %23 : vector<64x96xf32>
      %26 = vector.extract_strided_slice %22 {offsets = [1, 0], sizes = [64, 96], strides = [1, 1]} : vector<65x96xf32> to vector<64x96xf32>
      %27 = arith.maximumf %23, %26 : vector<64x96xf32>
      %28 = vector.extract_strided_slice %25 {offsets = [0, 0], sizes = [64, 64], strides = [1, 1]} : vector<64x96xf32> to vector<64x64xf32>
      %29 = vector.extract_strided_slice %27 {offsets = [0, 0], sizes = [64, 64], strides = [1, 1]} : vector<64x96xf32> to vector<64x64xf32>
      %30 = vector.extract_strided_slice %25 {offsets = [0, 32], sizes = [64, 64], strides = [1, 1]} : vector<64x96xf32> to vector<64x64xf32>
      %31 = vector.extract_strided_slice %27 {offsets = [0, 32], sizes = [64, 64], strides = [1, 1]} : vector<64x96xf32> to vector<64x64xf32>
      %32 = tpu.concatenate %28, %29, %30, %31 in 1 : vector<64x64xf32>, vector<64x64xf32>, vector<64x64xf32>, vector<64x64xf32> -> vector<64x256xf32>
      %33 = arith.truncf %32 : vector<64x256xf32> to vector<64x256xbf16>
      %c16 = arith.constant 16 : index
      %c0_14 = arith.constant 0 : index
      %34 = vector.load %arg9[%c16, %c0_14] : memref<96x256xbf16, #tpu.memory_space<vmem>>, vector<64x256xbf16>
      tpu.vector_store %arg9[%c16, %c0_14], %33 {strides = array<i32>} : memref<96x256xbf16, #tpu.memory_space<vmem>>, vector<64x256xbf16>,
      %cst_15 = arith.constant 0.000000e+00 : f32
      %35 = vector.broadcast %cst_15 : f32 to vector<65x128xf32>
      %c8 = arith.constant 8 : index
      %c0_16 = arith.constant 0 : index
      %36 = vector.load %arg9[%c8, %c0_16] : memref<96x256xbf16, #tpu.memory_space<vmem>>, vector<65x256xbf16>
      %c0_17 = arith.constant 0 : index
      %c0_18 = arith.constant 0 : index
      %c0_19 = arith.constant 0 : index
      %37 = vector.load %arg4[%c0_17, %c0_18, %c0_19] : memref<16x256x128xbf16, #tpu.memory_space<vmem>>, vector<1x256x128xbf16>
      %38 = vector.shape_cast %37 : vector<1x256x128xbf16> to vector<256x128xbf16>
      %cst_20 = arith.constant dense<0.000000e+00> : vector<65x128xf32>
      %39 = tpu.matmul %36, %38, %cst_20 {dimension_numbers = #tpu.dot_dimension_numbers<[1], [0], [0], [1], [0, 0, 1, 1], [], []>} : vector<65x256xbf16>, vector<256x128xbf16>, vector<65x128xf32> -> vector<65x128xf32>
      %40 = arith.addf %35, %39 : vector<65x128xf32>
      %c9 = arith.constant 9 : index
      %c0_21 = arith.constant 0 : index
      %41 = vector.load %arg9[%c9, %c0_21] : memref<96x256xbf16, #tpu.memory_space<vmem>>, vector<65x256xbf16>
      %c1 = arith.constant 1 : index
      %c0_22 = arith.constant 0 : index
      %c0_23 = arith.constant 0 : index
      %42 = vector.load %arg4[%c1, %c0_22, %c0_23] : memref<16x256x128xbf16, #tpu.memory_space<vmem>>, vector<1x256x128xbf16>
      %43 = vector.shape_cast %42 : vector<1x256x128xbf16> to vector<256x128xbf16>
      %cst_24 = arith.constant dense<0.000000e+00> : vector<65x128xf32>
      %44 = tpu.matmul %41, %43, %cst_24 {dimension_numbers = #tpu.dot_dimension_numbers<[1], [0], [0], [1], [0, 0, 1, 1], [], []>} : vector<65x256xbf16>, vector<256x128xbf16>, vector<65x128xf32> -> vector<65x128xf32>
      %45 = arith.addf %40, %44 : vector<65x128xf32>
      %c10 = arith.constant 10 : index
      %c0_25 = arith.constant 0 : index
      %46 = vector.load %arg9[%c10, %c0_25] : memref<96x256xbf16, #tpu.memory_space<vmem>>, vector<65x256xbf16>
      %c2 = arith.constant 2 : index
      %c0_26 = arith.constant 0 : index
      %c0_27 = arith.constant 0 : index
      %47 = vector.load %arg4[%c2, %c0_26, %c0_27] : memref<16x256x128xbf16, #tpu.memory_space<vmem>>, vector<1x256x128xbf16>
      %48 = vector.shape_cast %47 : vector<1x256x128xbf16> to vector<256x128xbf16>
      %cst_28 = arith.constant dense<0.000000e+00> : vector<65x128xf32>
      %49 = tpu.matmul %46, %48, %cst_28 {dimension_numbers = #tpu.dot_dimension_numbers<[1], [0], [0], [1], [0, 0, 1, 1], [], []>} : vector<65x256xbf16>, vector<256x128xbf16>, vector<65x128xf32> -> vector<65x128xf32>
      %50 = arith.addf %45, %49 : vector<65x128xf32>
      %c11 = arith.constant 11 : index
      %c0_29 = arith.constant 0 : index
      %51 = vector.load %arg9[%c11, %c0_29] : memref<96x256xbf16, #tpu.memory_space<vmem>>, vector<65x256xbf16>
      %c3 = arith.constant 3 : index
      %c0_30 = arith.constant 0 : index
      %c0_31 = arith.constant 0 : index
      %52 = vector.load %arg4[%c3, %c0_30, %c0_31] : memref<16x256x128xbf16, #tpu.memory_space<vmem>>, vector<1x256x128xbf16>
      %53 = vector.shape_cast %52 : vector<1x256x128xbf16> to vector<256x128xbf16>
      %cst_32 = arith.constant dense<0.000000e+00> : vector<65x128xf32>
      %54 = tpu.matmul %51, %53, %cst_32 {dimension_numbers = #tpu.dot_dimension_numbers<[1], [0], [0], [1], [0, 0, 1, 1], [], []>} : vector<65x256xbf16>, vector<256x128xbf16>, vector<65x128xf32> -> vector<65x128xf32>
      %55 = arith.addf %50, %54 : vector<65x128xf32>
      %c12 = arith.constant 12 : index
      %c0_33 = arith.constant 0 : index
      %56 = vector.load %arg9[%c12, %c0_33] : memref<96x256xbf16, #tpu.memory_space<vmem>>, vector<65x256xbf16>
      %c4 = arith.constant 4 : index
      %c0_34 = arith.constant 0 : index
      %c0_35 = arith.constant 0 : index
      %57 = vector.load %arg4[%c4, %c0_34, %c0_35] : memref<16x256x128xbf16, #tpu.memory_space<vmem>>, vector<1x256x128xbf16>
      %58 = vector.shape_cast %57 : vector<1x256x128xbf16> to vector<256x128xbf16>
      %cst_36 = arith.constant dense<0.000000e+00> : vector<65x128xf32>
      %59 = tpu.matmul %56, %58, %cst_36 {dimension_numbers = #tpu.dot_dimension_numbers<[1], [0], [0], [1], [0, 0, 1, 1], [], []>} : vector<65x256xbf16>, vector<256x128xbf16>, vector<65x128xf32> -> vector<65x128xf32>
      %60 = arith.addf %55, %59 : vector<65x128xf32>
      %c13 = arith.constant 13 : index
      %c0_37 = arith.constant 0 : index
      %61 = vector.load %arg9[%c13, %c0_37] : memref<96x256xbf16, #tpu.memory_space<vmem>>, vector<65x256xbf16>
      %c5 = arith.constant 5 : index
      %c0_38 = arith.constant 0 : index
      %c0_39 = arith.constant 0 : index
      %62 = vector.load %arg4[%c5, %c0_38, %c0_39] : memref<16x256x128xbf16, #tpu.memory_space<vmem>>, vector<1x256x128xbf16>
      %63 = vector.shape_cast %62 : vector<1x256x128xbf16> to vector<256x128xbf16>
      %cst_40 = arith.constant dense<0.000000e+00> : vector<65x128xf32>
      %64 = tpu.matmul %61, %63, %cst_40 {dimension_numbers = #tpu.dot_dimension_numbers<[1], [0], [0], [1], [0, 0, 1, 1], [], []>} : vector<65x256xbf16>, vector<256x128xbf16>, vector<65x128xf32> -> vector<65x128xf32>
      %65 = arith.addf %60, %64 : vector<65x128xf32>
      %c14 = arith.constant 14 : index
      %c0_41 = arith.constant 0 : index
      %66 = vector.load %arg9[%c14, %c0_41] : memref<96x256xbf16, #tpu.memory_space<vmem>>, vector<65x256xbf16>
      %c6 = arith.constant 6 : index
      %c0_42 = arith.constant 0 : index
      %c0_43 = arith.constant 0 : index
      %67 = vector.load %arg4[%c6, %c0_42, %c0_43] : memref<16x256x128xbf16, #tpu.memory_space<vmem>>, vector<1x256x128xbf16>
      %68 = vector.shape_cast %67 : vector<1x256x128xbf16> to vector<256x128xbf16>
      %cst_44 = arith.constant dense<0.000000e+00> : vector<65x128xf32>
      %69 = tpu.matmul %66, %68, %cst_44 {dimension_numbers = #tpu.dot_dimension_numbers<[1], [0], [0], [1], [0, 0, 1, 1], [], []>} : vector<65x256xbf16>, vector<256x128xbf16>, vector<65x128xf32> -> vector<65x128xf32>
      %70 = arith.addf %65, %69 : vector<65x128xf32>
      %c15 = arith.constant 15 : index
      %c0_45 = arith.constant 0 : index
      %71 = vector.load %arg9[%c15, %c0_45] : memref<96x256xbf16, #tpu.memory_space<vmem>>, vector<65x256xbf16>
      %c7 = arith.constant 7 : index
      %c0_46 = arith.constant 0 : index
      %c0_47 = arith.constant 0 : index
      %72 = vector.load %arg4[%c7, %c0_46, %c0_47] : memref<16x256x128xbf16, #tpu.memory_space<vmem>>, vector<1x256x128xbf16>
      %73 = vector.shape_cast %72 : vector<1x256x128xbf16> to vector<256x128xbf16>
      %cst_48 = arith.constant dense<0.000000e+00> : vector<65x128xf32>
      %74 = tpu.matmul %71, %73, %cst_48 {dimension_numbers = #tpu.dot_dimension_numbers<[1], [0], [0], [1], [0, 0, 1, 1], [], []>} : vector<65x256xbf16>, vector<256x128xbf16>, vector<65x128xf32> -> vector<65x128xf32>
      %75 = arith.addf %70, %74 : vector<65x128xf32>
      %c16_49 = arith.constant 16 : index
      %c0_50 = arith.constant 0 : index
      %76 = vector.load %arg9[%c16_49, %c0_50] : memref<96x256xbf16, #tpu.memory_space<vmem>>, vector<65x256xbf16>
      %c8_51 = arith.constant 8 : index
      %c0_52 = arith.constant 0 : index
      %c0_53 = arith.constant 0 : index
      %77 = vector.load %arg4[%c8_51, %c0_52, %c0_53] : memref<16x256x128xbf16, #tpu.memory_space<vmem>>, vector<1x256x128xbf16>
      %78 = vector.shape_cast %77 : vector<1x256x128xbf16> to vector<256x128xbf16>
      %cst_54 = arith.constant dense<0.000000e+00> : vector<65x128xf32>
      %79 = tpu.matmul %76, %78, %cst_54 {dimension_numbers = #tpu.dot_dimension_numbers<[1], [0], [0], [1], [0, 0, 1, 1], [], []>} : vector<65x256xbf16>, vector<256x128xbf16>, vector<65x128xf32> -> vector<65x128xf32>
      %80 = arith.addf %75, %79 : vector<65x128xf32>
      %c17 = arith.constant 17 : index
      %c0_55 = arith.constant 0 : index
      %81 = vector.load %arg9[%c17, %c0_55] : memref<96x256xbf16, #tpu.memory_space<vmem>>, vector<65x256xbf16>
      %c9_56 = arith.constant 9 : index
      %c0_57 = arith.constant 0 : index
      %c0_58 = arith.constant 0 : index
      %82 = vector.load %arg4[%c9_56, %c0_57, %c0_58] : memref<16x256x128xbf16, #tpu.memory_space<vmem>>, vector<1x256x128xbf16>
      %83 = vector.shape_cast %82 : vector<1x256x128xbf16> to vector<256x128xbf16>
      %cst_59 = arith.constant dense<0.000000e+00> : vector<65x128xf32>
      %84 = tpu.matmul %81, %83, %cst_59 {dimension_numbers = #tpu.dot_dimension_numbers<[1], [0], [0], [1], [0, 0, 1, 1], [], []>} : vector<65x256xbf16>, vector<256x128xbf16>, vector<65x128xf32> -> vector<65x128xf32>
      %85 = arith.addf %80, %84 : vector<65x128xf32>
      %c18 = arith.constant 18 : index
      %c0_60 = arith.constant 0 : index
      %86 = vector.load %arg9[%c18, %c0_60] : memref<96x256xbf16, #tpu.memory_space<vmem>>, vector<65x256xbf16>
      %c10_61 = arith.constant 10 : index
      %c0_62 = arith.constant 0 : index
      %c0_63 = arith.constant 0 : index
      %87 = vector.load %arg4[%c10_61, %c0_62, %c0_63] : memref<16x256x128xbf16, #tpu.memory_space<vmem>>, vector<1x256x128xbf16>
      %88 = vector.shape_cast %87 : vector<1x256x128xbf16> to vector<256x128xbf16>
      %cst_64 = arith.constant dense<0.000000e+00> : vector<65x128xf32>
      %89 = tpu.matmul %86, %88, %cst_64 {dimension_numbers = #tpu.dot_dimension_numbers<[1], [0], [0], [1], [0, 0, 1, 1], [], []>} : vector<65x256xbf16>, vector<256x128xbf16>, vector<65x128xf32> -> vector<65x128xf32>
      %90 = arith.addf %85, %89 : vector<65x128xf32>
      %c19 = arith.constant 19 : index
      %c0_65 = arith.constant 0 : index
      %91 = vector.load %arg9[%c19, %c0_65] : memref<96x256xbf16, #tpu.memory_space<vmem>>, vector<65x256xbf16>
      %c11_66 = arith.constant 11 : index
      %c0_67 = arith.constant 0 : index
      %c0_68 = arith.constant 0 : index
      %92 = vector.load %arg4[%c11_66, %c0_67, %c0_68] : memref<16x256x128xbf16, #tpu.memory_space<vmem>>, vector<1x256x128xbf16>
      %93 = vector.shape_cast %92 : vector<1x256x128xbf16> to vector<256x128xbf16>
      %cst_69 = arith.constant dense<0.000000e+00> : vector<65x128xf32>
      %94 = tpu.matmul %91, %93, %cst_69 {dimension_numbers = #tpu.dot_dimension_numbers<[1], [0], [0], [1], [0, 0, 1, 1], [], []>} : vector<65x256xbf16>, vector<256x128xbf16>, vector<65x128xf32> -> vector<65x128xf32>
      %95 = arith.addf %90, %94 : vector<65x128xf32>
      %c20 = arith.constant 20 : index
      %c0_70 = arith.constant 0 : index
      %96 = vector.load %arg9[%c20, %c0_70] : memref<96x256xbf16, #tpu.memory_space<vmem>>, vector<65x256xbf16>
      %c12_71 = arith.constant 12 : index
      %c0_72 = arith.constant 0 : index
      %c0_73 = arith.constant 0 : index
      %97 = vector.load %arg4[%c12_71, %c0_72, %c0_73] : memref<16x256x128xbf16, #tpu.memory_space<vmem>>, vector<1x256x128xbf16>
      %98 = vector.shape_cast %97 : vector<1x256x128xbf16> to vector<256x128xbf16>
      %cst_74 = arith.constant dense<0.000000e+00> : vector<65x128xf32>
      %99 = tpu.matmul %96, %98, %cst_74 {dimension_numbers = #tpu.dot_dimension_numbers<[1], [0], [0], [1], [0, 0, 1, 1], [], []>} : vector<65x256xbf16>, vector<256x128xbf16>, vector<65x128xf32> -> vector<65x128xf32>
      %100 = arith.addf %95, %99 : vector<65x128xf32>
      %c21 = arith.constant 21 : index
      %c0_75 = arith.constant 0 : index
      %101 = vector.load %arg9[%c21, %c0_75] : memref<96x256xbf16, #tpu.memory_space<vmem>>, vector<65x256xbf16>
      %c13_76 = arith.constant 13 : index
      %c0_77 = arith.constant 0 : index
      %c0_78 = arith.constant 0 : index
      %102 = vector.load %arg4[%c13_76, %c0_77, %c0_78] : memref<16x256x128xbf16, #tpu.memory_space<vmem>>, vector<1x256x128xbf16>
      %103 = vector.shape_cast %102 : vector<1x256x128xbf16> to vector<256x128xbf16>
      %cst_79 = arith.constant dense<0.000000e+00> : vector<65x128xf32>
      %104 = tpu.matmul %101, %103, %cst_79 {dimension_numbers = #tpu.dot_dimension_numbers<[1], [0], [0], [1], [0, 0, 1, 1], [], []>} : vector<65x256xbf16>, vector<256x128xbf16>, vector<65x128xf32> -> vector<65x128xf32>
      %105 = arith.addf %100, %104 : vector<65x128xf32>
      %c22 = arith.constant 22 : index
      %c0_80 = arith.constant 0 : index
      %106 = vector.load %arg9[%c22, %c0_80] : memref<96x256xbf16, #tpu.memory_space<vmem>>, vector<65x256xbf16>
      %c14_81 = arith.constant 14 : index
      %c0_82 = arith.constant 0 : index
      %c0_83 = arith.constant 0 : index
      %107 = vector.load %arg4[%c14_81, %c0_82, %c0_83] : memref<16x256x128xbf16, #tpu.memory_space<vmem>>, vector<1x256x128xbf16>
      %108 = vector.shape_cast %107 : vector<1x256x128xbf16> to vector<256x128xbf16>
      %cst_84 = arith.constant dense<0.000000e+00> : vector<65x128xf32>
      %109 = tpu.matmul %106, %108, %cst_84 {dimension_numbers = #tpu.dot_dimension_numbers<[1], [0], [0], [1], [0, 0, 1, 1], [], []>} : vector<65x256xbf16>, vector<256x128xbf16>, vector<65x128xf32> -> vector<65x128xf32>
      %110 = arith.addf %105, %109 : vector<65x128xf32>
      %c23 = arith.constant 23 : index
      %c0_85 = arith.constant 0 : index
      %111 = vector.load %arg9[%c23, %c0_85] : memref<96x256xbf16, #tpu.memory_space<vmem>>, vector<65x256xbf16>
      %c15_86 = arith.constant 15 : index
      %c0_87 = arith.constant 0 : index
      %c0_88 = arith.constant 0 : index
      %112 = vector.load %arg4[%c15_86, %c0_87, %c0_88] : memref<16x256x128xbf16, #tpu.memory_space<vmem>>, vector<1x256x128xbf16>
      %113 = vector.shape_cast %112 : vector<1x256x128xbf16> to vector<256x128xbf16>
      %cst_89 = arith.constant dense<0.000000e+00> : vector<65x128xf32>
      %114 = tpu.matmul %111, %113, %cst_89 {dimension_numbers = #tpu.dot_dimension_numbers<[1], [0], [0], [1], [0, 0, 1, 1], [], []>} : vector<65x256xbf16>, vector<256x128xbf16>, vector<65x128xf32> -> vector<65x128xf32>
      %115 = arith.addf %110, %114 : vector<65x128xf32>
      %c0_90 = arith.constant 0 : index
      %c0_91 = arith.constant 0 : index
      %116 = vector.load %arg5[%c0_90, %c0_91] : memref<1x128xf32, #tpu.memory_space<vmem>>, vector<1x128xf32>
      %117 = vector.broadcast %116 : vector<1x128xf32> to vector<65x128xf32>
      %118 = arith.addf %115, %117 : vector<65x128xf32>
      %cst_92 = arith.constant 0.000000e+00 : f32
      %119 = vector.broadcast %cst_92 : f32 to vector<65x128xf32>
      %120 = arith.cmpf oge, %118, %119 : vector<65x128xf32>
      %cst_93 = arith.constant 1.000000e-01 : f32
      %121 = vector.broadcast %cst_93 : f32 to vector<65x128xf32>
      %122 = arith.mulf %121, %118 : vector<65x128xf32>
      %123 = arith.select %120, %118, %122 : vector<65x128xi1>, vector<65x128xf32>
      %124 = vector.extract_strided_slice %123 {offsets = [0, 0], sizes = [64, 128], strides = [1, 1]} : vector<65x128xf32> to vector<64x128xf32>
      %125 = vector.extract_strided_slice %123 {offsets = [1, 0], sizes = [64, 128], strides = [1, 1]} : vector<65x128xf32> to vector<64x128xf32>
      %126 = arith.maximumf %124, %125 : vector<64x128xf32>
      %c0_94 = arith.constant 0 : index
      %c0_95 = arith.constant 0 : index
      %127 = vector.load %arg7[%c0_94, %c0_95] : memref<1x128xf32, #tpu.memory_space<vmem>>, vector<1x128xf32>
      %c0_96 = arith.constant 0 : index
      %c0_97 = arith.constant 0 : index
      %c0_98 = arith.constant 0 : index
      %128 = vector.load %arg6[%c0_96, %c0_97, %c0_98] : memref<2x64x128xf32, #tpu.memory_space<vmem>>, vector<1x64x128xf32>
      %129 = vector.shape_cast %128 : vector<1x64x128xf32> to vector<64x128xf32>
      %130 = arith.mulf %126, %129 : vector<64x128xf32>
      %131 = vector.shape_cast %130 : vector<64x128xf32> to vector<1x64x128xf32>
      %cst_99 = arith.constant dense<0.000000e+00> : vector<1xf32>
      %132 = vector.multi_reduction <add>, %131, %cst_99 [1, 2] : vector<1x64x128xf32> to vector<1xf32>
      %133 = vector.shape_cast %132 : vector<1xf32> to vector<1x1x1xf32>
      %134 = vector.extract %133[0, 0, 0] : f32 from vector<1x1x1xf32>
      %c0_i32_100 = arith.constant 0 : i32
      %135 = vector.broadcast %c0_i32_100 : i32 to vector<1x128xi32>
      %136 = arith.cmpi eq, %4, %135 : vector<1x128xi32>
      %cst_101 = arith.constant 0.000000e+00 : f32
      %137 = vector.broadcast %134 : f32 to vector<1x128xf32>
      %138 = vector.broadcast %cst_101 : f32 to vector<1x128xf32>
      %139 = arith.select %136, %137, %138 : vector<1x128xi1>, vector<1x128xf32>
      %140 = arith.addf %127, %139 : vector<1x128xf32>
      %c1_102 = arith.constant 1 : index
      %c0_103 = arith.constant 0 : index
      %c0_104 = arith.constant 0 : index
      %141 = vector.load %arg6[%c1_102, %c0_103, %c0_104] : memref<2x64x128xf32, #tpu.memory_space<vmem>>, vector<1x64x128xf32>
      %142 = vector.shape_cast %141 : vector<1x64x128xf32> to vector<64x128xf32>
      %143 = arith.mulf %126, %142 : vector<64x128xf32>
      %144 = vector.shape_cast %143 : vector<64x128xf32> to vector<1x64x128xf32>
      %cst_105 = arith.constant dense<0.000000e+00> : vector<1xf32>
      %145 = vector.multi_reduction <add>, %144, %cst_105 [1, 2] : vector<1x64x128xf32> to vector<1xf32>
      %146 = vector.shape_cast %145 : vector<1xf32> to vector<1x1x1xf32>
      %147 = vector.extract %146[0, 0, 0] : f32 from vector<1x1x1xf32>
      %c1_i32_106 = arith.constant 1 : i32
      %148 = vector.broadcast %c1_i32_106 : i32 to vector<1x128xi32>
      %149 = arith.cmpi eq, %4, %148 : vector<1x128xi32>
      %cst_107 = arith.constant 0.000000e+00 : f32
      %150 = vector.broadcast %147 : f32 to vector<1x128xf32>
      %151 = vector.broadcast %cst_107 : f32 to vector<1x128xf32>
      %152 = arith.select %149, %150, %151 : vector<1x128xi1>, vector<1x128xf32>
      %153 = arith.addf %140, %152 : vector<1x128xf32>
      %154 = arith.index_cast %7 : i32 to index
      %c0_108 = arith.constant 0 : index
      %155 = vector.load %arg8[%154, %c0_108] : memref<8x128xf32, #tpu.memory_space<vmem>>, vector<1x128xf32>
      tpu.vector_store %arg8[%154, %c0_108], %153 {strides = array<i32>} : memref<8x128xf32, #tpu.memory_space<vmem>>, vector<1x128xf32>,
    }
    %c8_i32_3 = arith.constant 8 : i32
    return
  }
  func.func @transform_0(%arg0: i32) -> (i32, i32) {
    %c0_i32 = arith.constant 0 : i32
    %c0_i32_0 = arith.constant 0 : i32
    return %arg0, %c0_i32 : i32, i32
  }
  func.func @transform_1(%arg0: i32) -> (i32, i32) {
    %c0_i32 = arith.constant 0 : i32
    %c0_i32_0 = arith.constant 0 : i32
    %c0_i32_1 = arith.constant 0 : i32
    return %c0_i32, %c0_i32_0 : i32, i32
  }
  func.func @transform_2(%arg0: i32) -> (i32, i32) {
    %c0_i32 = arith.constant 0 : i32
    %c0_i32_0 = arith.constant 0 : i32
    %c0_i32_1 = arith.constant 0 : i32
    return %c0_i32, %c0_i32_0 : i32, i32
  }
  func.func @transform_3(%arg0: i32) -> (i32, i32, i32) {
    %c0_i32 = arith.constant 0 : i32
    %c0_i32_0 = arith.constant 0 : i32
    %c0_i32_1 = arith.constant 0 : i32
    %c0_i32_2 = arith.constant 0 : i32
    return %c0_i32, %c0_i32_0, %c0_i32_1 : i32, i32, i32
  }
  func.func @transform_4(%arg0: i32) -> (i32, i32) {
    %c0_i32 = arith.constant 0 : i32
    %c0_i32_0 = arith.constant 0 : i32
    %c0_i32_1 = arith.constant 0 : i32
    return %c0_i32, %c0_i32_0 : i32, i32
  }
  func.func @transform_5(%arg0: i32) -> (i32, i32, i32) {
    %c0_i32 = arith.constant 0 : i32
    %c0_i32_0 = arith.constant 0 : i32
    %c0_i32_1 = arith.constant 0 : i32
    %c0_i32_2 = arith.constant 0 : i32
    return %c0_i32, %c0_i32_0, %c0_i32_1 : i32, i32, i32
  }
  func.func @transform_6(%arg0: i32) -> (i32, i32) {
    %c0_i32 = arith.constant 0 : i32
    %c0_i32_0 = arith.constant 0 : i32
    %c0_i32_1 = arith.constant 0 : i32
    return %c0_i32, %c0_i32_0 : i32, i32
  }
  func.func @transform_7(%arg0: i32) -> (i32, i32) {
    %c0_i32 = arith.constant 0 : i32
    %c0_i32_0 = arith.constant 0 : i32
    return %arg0, %c0_i32 : i32, i32
  }
}

</mosaic_0001>

<llo_original>
// kernel: wave2_forward.1
$region0: #{wave2_forward.1}
  #allocation0 [shape = 'u32[]', space=smem, size = 0x4, offset = 0x4, fixed_abs, tag = 'smem constant byte address 0x4 - core index']
  #allocation1 [shape = 'u32[144,128]{1,0:T(1,128)}', space=vmem, size = 0x12000, scoped, tag = 'internal scratch']
  #allocation2 [shape = 'bf16[96,256]{1,0:T(16,128)(2,1)}', space=vmem, size = 0xc000, scoped, tag = 'scratch operand']
  %s0 = inlined_call_operand.vmem [shape: bf16[1152,180], index: 0, kind: input, shape index: {}]
  %s1 = inlined_call_operand.vmem [shape: bf16[180,96], index: 1, kind: input, shape index: {}]
  %s2 = inlined_call_operand.vmem [shape: f32[1,96], index: 2, kind: input, shape index: {}]
  %s3 = inlined_call_operand.vmem [shape: bf16[16,256,128], index: 3, kind: input, shape index: {}]
  %s4 = inlined_call_operand.vmem [shape: f32[1,128], index: 4, kind: input, shape index: {}]
  %s5 = inlined_call_operand.vmem [shape: f32[2,64,128], index: 5, kind: input, shape index: {}]
  %s6 = inlined_call_operand.vmem [shape: f32[1,128], index: 6, kind: input, shape index: {}]
  %s7 = inlined_call_operand.vmem [shape: f32[8,128], index: 7, kind: output, shape index: {}]
  %s8 = sld [smem:[#allocation0]]
  $region45: #{wave2_forward.1} parent=0
    _
  %s10 = ssub.s32 1, %s8
  %s11 = scalar_select 0, %s10, %s8
  // Predicated region
  $region2: #{wave2_forward.1} parent=0 // pred_check
    _
  $region3: #{wave2_forward.1} parent=0 // pred_check_branch
    %13 = sbr.rel (0) target = $region5
  $region4: #{wave2_forward.1} parent=0 // pred_region
    _
  $region5: #{wave2_forward.1} parent=0 // pred_fallthru
    _
  // Predicated region
  $region6: #{wave2_forward.1} parent=0 // pred_check
    _
  $region7: #{wave2_forward.1} parent=0 // pred_check_branch
    %15 = sbr.rel (0) target = $region9
  $region8: #{wave2_forward.1} parent=0 // pred_region
    _
  $region9: #{wave2_forward.1} parent=0 // pred_fallthru
    _
  // Predicated region
  $region10: #{wave2_forward.1} parent=0 // pred_check
    _
  $region11: #{wave2_forward.1} parent=0 // pred_check_branch
    %17 = sbr.rel (0) target = $region13
  $region12: #{wave2_forward.1} parent=0 // pred_region
    _
  $region13: #{wave2_forward.1} parent=0 // pred_fallthru
    _
  // Predicated region
  $region14: #{wave2_forward.1} parent=0 // pred_check
    _
  $region15: #{wave2_forward.1} parent=0 // pred_check_branch
    %19 = sbr.rel (0) target = $region17
  $region16: #{wave2_forward.1} parent=0 // pred_region
    _
  $region17: #{wave2_forward.1} parent=0 // pred_fallthru
    _
  // Predicated region
  $region18: #{wave2_forward.1} parent=0 // pred_check
    _
  $region19: #{wave2_forward.1} parent=0 // pred_check_branch
    %21 = sbr.rel (0) target = $region21
  $region20: #{wave2_forward.1} parent=0 // pred_region
    _
  $region21: #{wave2_forward.1} parent=0 // pred_fallthru
    _
  // Predicated region
  $region22: #{wave2_forward.1} parent=0 // pred_check
    _
  $region23: #{wave2_forward.1} parent=0 // pred_check_branch
    %23 = sbr.rel (0) target = $region25
  $region24: #{wave2_forward.1} parent=0 // pred_region
    _
  $region25: #{wave2_forward.1} parent=0 // pred_fallthru
    _
  // Predicated region
  $region26: #{wave2_forward.1} parent=0 // pred_check
    _
  $region27: #{wave2_forward.1} parent=0 // pred_check_branch
    %25 = sbr.rel (0) target = $region29
  $region28: #{wave2_forward.1} parent=0 // pred_region
    _
  $region29: #{wave2_forward.1} parent=0 // pred_fallthru
    _
  %27 = vst [vmem:[#allocation2] sm:$0xff] 0
  %28 = vst [vmem:[#allocation2 + $0x8] sm:$0xff] 0
  %29 = vst [vmem:[#allocation2 + $0x50] sm:$0xff] 0
  %30 = vst [vmem:[#allocation2 + $0x58] sm:$0xff] 0
  %v31 = vlaneseq
  %v32 = vand.u32 %v31, 127
  loop: start=0, step=1, limit=8
  $region30: #{wave2_forward.1} parent=0 // loop_pre_header
    _
  $region31: #{wave2_forward.1} parent=0 // loop_header
    %s34 = sphi 0, %s38
    %p35 = scmp.ge.s32.totalorder %s34, 8
  $region32: #{wave2_forward.1} parent=0 // loop_header_branch
    %37 = sbr.rel (%p35) target = $region36
  $region33: #{wave2_forward.1} parent=0 // loop_body
    %s39 = smul.u32 %s34, 144
    %s40 = sshra.s32 %s39, 3
    %s41 = sand.u32 %s39, 7
    %s42 = smul.u32 %s40, 2
    %s43 = smul.addr %s42, 4
    %s44 = scalar_lea.vmem %s0, %s43
    %v45 = vld [vmem:[%s44] sm:$0xff]
    %v46 = vld [vmem:[%s44 + $0x8] sm:$0xff]
    %v47 = vld [vmem:[%s44 + $0x10] sm:$0xff]
    %v48 = vld [vmem:[%s44 + $0x18] sm:$0xff]
    %v49 = vld [vmem:[%s44 + $0x20] sm:$0xff]
    %v50 = vld [vmem:[%s44 + $0x28] sm:$0xff]
    %v51 = vld [vmem:[%s44 + $0x30] sm:$0xff]
    %v52 = vld [vmem:[%s44 + $0x38] sm:$0xff]
    %v53 = vld [vmem:[%s44 + $0x40] sm:$0xff]
    %v54 = vld [vmem:[%s44 + $0x48] sm:$0xff]
    %v55 = vld [vmem:[%s44 + $0x50] sm:$0xff]
    %v56 = vld [vmem:[%s44 + $0x58] sm:$0xff]
    %v57 = vld [vmem:[%s44 + $0x60] sm:$0xff]
    %v58 = vld [vmem:[%s44 + $0x68] sm:$0xff]
    %v59 = vld [vmem:[%s44 + $0x70] sm:$0xff]
    %v60 = vld [vmem:[%s44 + $0x78] sm:$0xff]
    %v61 = vld [vmem:[%s44 + $0x80] sm:$0xff]
    %v62 = vld [vmem:[%s44 + $0x88] sm:$0xff]
    %v63 = vld [vmem:[%s1] sm:$0xf]
    %v64 = vld [vmem:[%s1 + $0x4] sm:$0xf]
    %v65 = vld [vmem:[%s1 + $0x8] sm:$0xf]
    %v66 = vld [vmem:[%s1 + $0xc] sm:$0xf]
    %v67 = vld [vmem:[%s1 + $0x10] sm:$0xf]
    %v68 = vld [vmem:[%s1 + $0x14] sm:$0xf]
    %v69 = vld [vmem:[%s1 + $0x18] sm:$0xf]
    %v70 = vld [vmem:[%s1 + $0x1c] sm:$0xf]
    %v71 = vld [vmem:[%s1 + $0x20] sm:$0xf]
    %v72 = vld [vmem:[%s1 + $0x24] sm:$0xf]
    %v73 = vld [vmem:[%s1 + $0x28] sm:$0xf]
    %v74 = vld [vmem:[%s1 + $0x2c] sm:$0xf]
    %v75 = vld [vmem:[%s1 + $0x30] sm:$0xf]
    %v76 = vld [vmem:[%s1 + $0x34] sm:$0xf]
    %v77 = vld [vmem:[%s1 + $0x38] sm:$0xf]
    %v78 = vld [vmem:[%s1 + $0x3c] sm:$0xf]
    %v79 = vld [vmem:[%s1 + $0x40] sm:$0xf]
    %v80 = vld [vmem:[%s1 + $0x44] sm:$0xf]
    %v81 = vld [vmem:[%s1 + $0x48] sm:$0xf]
    %v82 = vld [vmem:[%s1 + $0x4c] sm:$0xf]
    %v83 = vld [vmem:[%s1 + $0x50] sm:$0xf]
    %v84 = vld [vmem:[%s1 + $0x54] sm:$0xf]
    %v85 = vld [vmem:[%s1 + $0x58] sm:$0x3]
    %v86 = vld [vmem:[%s2] sm:$0x1]
    %v88 = vlaneseq
    %v89 = vshrl.u32 %v88, 7
    %v90 = vsub.s32 0, %v89
    %v91 = vrot.slane %v86, %v90
    %v111 = vunpack.c.l.b16 %v45
    %v112 = vunpack.c.h.b16 %v45
    %v113 = vunpack.c.l.b16 %v46
    %v114 = vunpack.c.h.b16 %v46
    %v115 = vunpack.c.l.b16 %v47
    %v116 = vunpack.c.h.b16 %v47
    %v117 = vunpack.c.l.b16 %v48
    %v118 = vunpack.c.h.b16 %v48
    %v119 = vunpack.c.l.b16 %v49
    %v120 = vunpack.c.h.b16 %v49
    %v121 = vunpack.c.l.b16 %v50
    %v122 = vunpack.c.h.b16 %v50
    %v123 = vunpack.c.l.b16 %v51
    %v124 = vunpack.c.h.b16 %v51
    %v125 = vunpack.c.l.b16 %v52
    %v126 = vunpack.c.h.b16 %v52
    %v127 = vunpack.c.l.b16 %v53
    %v128 = vunpack.c.h.b16 %v53
    %v129 = vunpack.c.l.b16 %v54
    %v130 = vunpack.c.h.b16 %v54
    %v131 = vunpack.c.l.b16 %v55
    %v132 = vunpack.c.h.b16 %v55
    %v133 = vunpack.c.l.b16 %v56
    %v134 = vunpack.c.h.b16 %v56
    %v135 = vunpack.c.l.b16 %v57
    %v136 = vunpack.c.h.b16 %v57
    %v137 = vunpack.c.l.b16 %v58
    %v138 = vunpack.c.h.b16 %v58
    %v139 = vunpack.c.l.b16 %v59
    %v140 = vunpack.c.h.b16 %v59
    %v141 = vunpack.c.l.b16 %v60
    %v142 = vunpack.c.h.b16 %v60
    %v143 = vunpack.c.l.b16 %v61
    %v144 = vunpack.c.h.b16 %v61
    %v145 = vunpack.c.l.b16 %v62
    %v146 = vunpack.c.h.b16 %v62
    %v147 = vpack.c.b16 %v113, %v111
    %v148 = vpack.c.b16 %v114, %v112
    %v149 = vpack.c.b16 %v117, %v115
    %v150 = vpack.c.b16 %v118, %v116
    %v151 = vpack.c.b16 %v121, %v119
    %v152 = vpack.c.b16 %v122, %v120
    %v153 = vpack.c.b16 %v125, %v123
    %v154 = vpack.c.b16 %v126, %v124
    %v155 = vpack.c.b16 %v129, %v127
    %v156 = vpack.c.b16 %v130, %v128
    %v157 = vpack.c.b16 %v133, %v131
    %v158 = vpack.c.b16 %v134, %v132
    %v159 = vpack.c.b16 %v137, %v135
    %v160 = vpack.c.b16 %v138, %v136
    %v161 = vpack.c.b16 %v141, %v139
    %v162 = vpack.c.b16 %v142, %v140
    %v163 = vpack.c.b16 %v145, %v143
    %v164 = vpack.c.b16 %v146, %v144
    %v197 = vunpack.c.l.b16 %v63
    %v198 = vunpack.c.l.b16 %v64
    %v199 = vunpack.c.l.b16 %v65
    %v200 = vunpack.c.l.b16 %v66
    %v201 = vunpack.c.l.b16 %v67
    %v202 = vunpack.c.l.b16 %v68
    %v203 = vunpack.c.l.b16 %v69
    %v204 = vunpack.c.l.b16 %v70
    %v205 = vunpack.c.l.b16 %v71
    %v206 = vunpack.c.l.b16 %v72
    %v207 = vunpack.c.l.b16 %v73
    %v208 = vunpack.c.l.b16 %v74
    %v209 = vunpack.c.l.b16 %v75
    %v210 = vunpack.c.l.b16 %v76
    %v211 = vunpack.c.l.b16 %v77
    %v212 = vunpack.c.l.b16 %v78
    %v213 = vunpack.c.l.b16 %v79
    %v214 = vunpack.c.l.b16 %v80
    %v215 = vunpack.c.l.b16 %v81
    %v216 = vunpack.c.l.b16 %v82
    %v217 = vunpack.c.l.b16 %v83
    %v218 = vunpack.c.l.b16 %v84
    %v219 = vunpack.c.l.b16 %v85
    %v220 = vpack.c.b16 %v198, %v197
    %v221 = vpack.c.b16 %v200, %v199
    %v222 = vpack.c.b16 %v202, %v201
    %v223 = vpack.c.b16 %v204, %v203
    %v224 = vpack.c.b16 %v206, %v205
    %v225 = vpack.c.b16 %v208, %v207
    %v226 = vpack.c.b16 %v210, %v209
    %v227 = vpack.c.b16 %v212, %v211
    %v228 = vpack.c.b16 %v214, %v213
    %v229 = vpack.c.b16 %v216, %v215
    %v230 = vpack.c.b16 %v218, %v217
    %v231 = vpack.c.b16 %v219, %v219
    %vm243 = vcmask 424960
    %v245 = vsel %vm243, %v148, 0
    %v248 = vsel %vm243, %v150, 0
    %v251 = vsel %vm243, %v152, 0
    %v254 = vsel %vm243, %v154, 0
    %v257 = vsel %vm243, %v156, 0
    %v260 = vsel %vm243, %v158, 0
    %v263 = vsel %vm243, %v160, 0
    %v266 = vsel %vm243, %v162, 0
    %v269 = vsel %vm243, %v164, 0
    %vm271 = vcmask 1041408
    %v273 = vsel %vm271, %v231, 0
    %275 = vmatprep.subr.bf16.mxu0 0
    %276 = vmatpush1.bf16.msra.mxu0 %v220
    %277 = vmatprep.subr.bf16.mxu0 0
    %278 = vmatpush1.bf16.msra.mxu0 %v221
    %279 = vmatprep.subr.bf16.mxu0 0
    %280 = vmatpush1.bf16.msra.mxu0 %v222
    %281 = vmatprep.subr.bf16.mxu0 0
    %282 = vmatpush1.bf16.msra.mxu0 %v223
    %283 = vmatprep.subr.bf16.mxu0 0
    %284 = vmatpush1.bf16.msra.mxu0 %v224
    %285 = vmatprep.subr.bf16.mxu0 0
    %286 = vmatpush1.bf16.msra.mxu0 %v225
    %287 = vmatprep.subr.bf16.mxu0 0
    %288 = vmatpush1.bf16.msra.mxu0 %v226
    %289 = vmatprep.subr.bf16.mxu0 0
    %290 = vmatpush1.bf16.msra.mxu0 %v227
    %291 = vmatprep.subr.bf16.mxu0 0
    %292 = vmatpush1.bf16.msra.mxu0 %v228
    %293 = vmatprep.subr.bf16.mxu0 0
    %294 = vmatpush1.bf16.msra.mxu0 %v229
    %295 = vmatprep.subr.bf16.mxu0 0
    %296 = vmatpush1.bf16.msra.mxu0 %v230
    %297 = vmatprep.subr.bf16.mxu0 0
    %298 = vmatpush1.bf16.msra.mxu0 %v273
    %299 = vmatprep.subr.bf16.mxu0 0
    %300 = vmatpush1.bf16.msra.mxu0 0
    %301 = vmatprep.subr.bf16.mxu0 0
    %302 = vmatpush1.bf16.msra.mxu0 0
    %303 = vmatprep.subr.bf16.mxu0 0
    %304 = vmatpush1.bf16.msra.mxu0 0
    %305 = vmatprep.subr.bf16.mxu0 0
    %306 = vmatpush1.bf16.msra.mxu0 0
    %307 = vmatprep.mubr.bf16.mxu0 %v245
    %308 = vmatmul.mubr.bf16.gmra.mrb[0].mxu0 %v147
    %v309 = vpop.f32.mrb[0].mxu0
    %v310 = vadd.f32 %v91, %v309
    %v311 = vpop.f32.mrb[0].mxu0
    %v312 = vpop.f32.mrb[0].mxu0
    %v313 = vadd.f32 %v91, %v312
    %v314 = vpop.f32.mrb[0].mxu0
    %315 = vmatprep.mubr.bf16.mxu0 %v248
    %316 = vmatmul.mubr.bf16.gmra.mrb[0].mxu0 %v149
    %v317 = vpop.f32.mrb[0].mxu0
    %v318 = vadd.f32 %v91, %v317
    %v319 = vpop.f32.mrb[0].mxu0
    %v320 = vpop.f32.mrb[0].mxu0
    %v321 = vadd.f32 %v91, %v320
    %v322 = vpop.f32.mrb[0].mxu0
    %323 = vmatprep.mubr.bf16.mxu0 %v251
    %324 = vmatmul.mubr.bf16.gmra.mrb[0].mxu0 %v151
    %v325 = vpop.f32.mrb[0].mxu0
    %v326 = vadd.f32 %v91, %v325
    %v327 = vpop.f32.mrb[0].mxu0
    %v328 = vpop.f32.mrb[0].mxu0
    %v329 = vadd.f32 %v91, %v328
    %v330 = vpop.f32.mrb[0].mxu0
    %331 = vmatprep.mubr.bf16.mxu0 %v254
    %332 = vmatmul.mubr.bf16.gmra.mrb[0].mxu0 %v153
    %v333 = vpop.f32.mrb[0].mxu0
    %v334 = vadd.f32 %v91, %v333
    %v335 = vpop.f32.mrb[0].mxu0
    %v336 = vpop.f32.mrb[0].mxu0
    %v337 = vadd.f32 %v91, %v336
    %v338 = vpop.f32.mrb[0].mxu0
    %339 = vmatprep.mubr.bf16.mxu0 %v257
    %340 = vmatmul.mubr.bf16.gmra.mrb[0].mxu0 %v155
    %v341 = vpop.f32.mrb[0].mxu0
    %v342 = vadd.f32 %v91, %v341
    %v343 = vpop.f32.mrb[0].mxu0
    %v344 = vpop.f32.mrb[0].mxu0
    %v345 = vadd.f32 %v91, %v344
    %v346 = vpop.f32.mrb[0].mxu0
    %347 = vmatprep.mubr.bf16.mxu0 %v260
    %348 = vmatmul.mubr.bf16.gmra.mrb[0].mxu0 %v157
    %v349 = vpop.f32.mrb[0].mxu0
    %v350 = vadd.f32 %v91, %v349
    %v351 = vpop.f32.mrb[0].mxu0
    %v352 = vpop.f32.mrb[0].mxu0
    %v353 = vadd.f32 %v91, %v352
    %v354 = vpop.f32.mrb[0].mxu0
    %355 = vmatprep.mubr.bf16.mxu0 %v263
    %356 = vmatmul.mubr.bf16.gmra.mrb[0].mxu0 %v159
    %v357 = vpop.f32.mrb[0].mxu0
    %v358 = vadd.f32 %v91, %v357
    %v359 = vpop.f32.mrb[0].mxu0
    %v360 = vpop.f32.mrb[0].mxu0
    %v361 = vadd.f32 %v91, %v360
    %v362 = vpop.f32.mrb[0].mxu0
    %363 = vmatprep.mubr.bf16.mxu0 %v266
    %364 = vmatmul.mubr.bf16.gmra.mrb[0].mxu0 %v161
    %v365 = vpop.f32.mrb[0].mxu0
    %v366 = vadd.f32 %v91, %v365
    %v367 = vpop.f32.mrb[0].mxu0
    %v368 = vpop.f32.mrb[0].mxu0
    %v369 = vadd.f32 %v91, %v368
    %v370 = vpop.f32.mrb[0].mxu0
    %371 = vmatprep.mubr.bf16.mxu0 %v269
    %372 = vmatmul.mubr.bf16.gmra.mrb[0].mxu0 %v163
    %v373 = vpop.f32.mrb[0].mxu0
    %v374 = vadd.f32 %v91, %v373
    %v375 = vpop.f32.mrb[0].mxu0
    %v376 = vpop.f32.mrb[0].mxu0
    %v377 = vpop.f32.mrb[0].mxu0
    %378 = vdwg.mxu0
    %vm379 = vcmp.ge.f32.partialorder %v310, 0.0
    %vm380 = vcmp.ge.f32.partialorder %v313, 0.0
    %vm381 = vcmp.ge.f32.partialorder %v318, 0.0
    %vm382 = vcmp.ge.f32.partialorder %v321, 0.0
    %vm383 = vcmp.ge.f32.partialorder %v326, 0.0
    %vm384 = vcmp.ge.f32.partialorder %v329, 0.0
    %vm385 = vcmp.ge.f32.partialorder %v334, 0.0
    %vm386 = vcmp.ge.f32.partialorder %v337, 0.0
    %vm387 = vcmp.ge.f32.partialorder %v342, 0.0
    %vm388 = vcmp.ge.f32.partialorder %v345, 0.0
    %vm389 = vcmp.ge.f32.partialorder %v350, 0.0
    %vm390 = vcmp.ge.f32.partialorder %v353, 0.0
    %vm391 = vcmp.ge.f32.partialorder %v358, 0.0
    %vm392 = vcmp.ge.f32.partialorder %v361, 0.0
    %vm393 = vcmp.ge.f32.partialorder %v366, 0.0
    %vm394 = vcmp.ge.f32.partialorder %v369, 0.0
    %vm395 = vcmp.ge.f32.partialorder %v374, 0.0
    %v396 = vmul.f32 %v310, 0.1
    %v397 = vmul.f32 %v313, 0.1
    %v398 = vmul.f32 %v318, 0.1
    %v399 = vmul.f32 %v321, 0.1
    %v400 = vmul.f32 %v326, 0.1
    %v401 = vmul.f32 %v329, 0.1
    %v402 = vmul.f32 %v334, 0.1
    %v403 = vmul.f32 %v337, 0.1
    %v404 = vmul.f32 %v342, 0.1
    %v405 = vmul.f32 %v345, 0.1
    %v406 = vmul.f32 %v350, 0.1
    %v407 = vmul.f32 %v353, 0.1
    %v408 = vmul.f32 %v358, 0.1
    %v409 = vmul.f32 %v361, 0.1
    %v410 = vmul.f32 %v366, 0.1
    %v411 = vmul.f32 %v369, 0.1
    %v412 = vmul.f32 %v374, 0.1
    %v413 = vsel %vm379, %v310, %v396
    %v414 = vsel %vm380, %v313, %v397
    %v415 = vsel %vm381, %v318, %v398
    %v416 = vsel %vm382, %v321, %v399
    %v417 = vsel %vm383, %v326, %v400
    %v418 = vsel %vm384, %v329, %v401
    %v419 = vsel %vm385, %v334, %v402
    %v420 = vsel %vm386, %v337, %v403
    %v421 = vsel %vm387, %v342, %v404
    %v422 = vsel %vm388, %v345, %v405
    %v423 = vsel %vm389, %v350, %v406
    %v424 = vsel %vm390, %v353, %v407
    %v425 = vsel %vm391, %v358, %v408
    %v426 = vsel %vm392, %v361, %v409
    %v427 = vsel %vm393, %v366, %v410
    %v428 = vsel %vm394, %v369, %v411
    %v429 = vsel %vm395, %v374, %v412
    %v430 = vmax.f32 %v413, %v422
    %v431 = vmax.f32 %v414, %v423
    %v432 = vmax.f32 %v415, %v424
    %v433 = vmax.f32 %v416, %v425
    %v434 = vmax.f32 %v417, %v426
    %v435 = vmax.f32 %v418, %v427
    %v436 = vmax.f32 %v419, %v428
    %v437 = vmax.f32 %v420, %v429
    %vm447 = vcmask 1046528
    %v448 = vrot.slane %v413, 1
    %v449 = vrot.slane %v414, 1
    %v450 = vsel %vm447, %v448, %v449
    %v451 = vrot.slane %v415, 1
    %v452 = vsel %vm447, %v449, %v451
    %v453 = vrot.slane %v416, 1
    %v454 = vsel %vm447, %v451, %v453
    %v455 = vrot.slane %v417, 1
    %v456 = vsel %vm447, %v453, %v455
    %v457 = vrot.slane %v418, 1
    %v458 = vsel %vm447, %v455, %v457
    %v459 = vrot.slane %v419, 1
    %v460 = vsel %vm447, %v457, %v459
    %v461 = vrot.slane %v420, 1
    %v462 = vsel %vm447, %v459, %v461
    %v463 = vrot.slane %v421, 1
    %v464 = vsel %vm447, %v461, %v463
    %v473 = vmax.f32 %v422, %v450
    %v474 = vmax.f32 %v423, %v452
    %v475 = vmax.f32 %v424, %v454
    %v476 = vmax.f32 %v425, %v456
    %v477 = vmax.f32 %v426, %v458
    %v478 = vmax.f32 %v427, %v460
    %v479 = vmax.f32 %v428, %v462
    %v480 = vmax.f32 %v429, %v464
    %489 = vrot.lane.b32.xlu0 %v473, 64
    %v490 = vpop.permute.xlu0 %489
    %491 = vrot.lane.b32.xlu0 %v474, 64
    %v492 = vpop.permute.xlu0 %491
    %493 = vrot.lane.b32.xlu0 %v475, 64
    %v494 = vpop.permute.xlu0 %493
    %495 = vrot.lane.b32.xlu0 %v476, 64
    %v496 = vpop.permute.xlu0 %495
    %497 = vrot.lane.b32.xlu0 %v477, 64
    %v498 = vpop.permute.xlu0 %497
    %499 = vrot.lane.b32.xlu0 %v478, 64
    %v500 = vpop.permute.xlu0 %499
    %501 = vrot.lane.b32.xlu0 %v479, 64
    %v502 = vpop.permute.xlu0 %501
    %503 = vrot.lane.b32.xlu0 %v480, 64
    %v504 = vpop.permute.xlu0 %503
    %521 = vrot.lane.b32.xlu0 %v430, 96
    %v522 = vpop.permute.xlu0 %521
    %523 = vrot.lane.b32.xlu0 %v431, 96
    %v524 = vpop.permute.xlu0 %523
    %525 = vrot.lane.b32.xlu0 %v432, 96
    %v526 = vpop.permute.xlu0 %525
    %527 = vrot.lane.b32.xlu0 %v433, 96
    %v528 = vpop.permute.xlu0 %527
    %529 = vrot.lane.b32.xlu0 %v434, 96
    %v530 = vpop.permute.xlu0 %529
    %531 = vrot.lane.b32.xlu0 %v435, 96
    %v532 = vpop.permute.xlu0 %531
    %533 = vrot.lane.b32.xlu0 %v436, 96
    %v534 = vpop.permute.xlu0 %533
    %535 = vrot.lane.b32.xlu0 %v437, 96
    %v536 = vpop.permute.xlu0 %535
    %545 = vrot.lane.b32.xlu0 %v473, 32
    %v546 = vpop.permute.xlu0 %545
    %547 = vrot.lane.b32.xlu0 %v474, 32
    %v548 = vpop.permute.xlu0 %547
    %549 = vrot.lane.b32.xlu0 %v475, 32
    %v550 = vpop.permute.xlu0 %549
    %551 = vrot.lane.b32.xlu0 %v476, 32
    %v552 = vpop.permute.xlu0 %551
    %553 = vrot.lane.b32.xlu0 %v477, 32
    %v554 = vpop.permute.xlu0 %553
    %555 = vrot.lane.b32.xlu0 %v478, 32
    %v556 = vpop.permute.xlu0 %555
    %557 = vrot.lane.b32.xlu0 %v479, 32
    %v558 = vpop.permute.xlu0 %557
    %559 = vrot.lane.b32.xlu0 %v480, 32
    %v560 = vpop.permute.xlu0 %559
    %vm569 = vcmask 523264
    %v570 = vsel %vm569, %v430, %v490
    %v571 = vsel %vm569, %v431, %v492
    %v572 = vsel %vm569, %v432, %v494
    %v573 = vsel %vm569, %v433, %v496
    %v574 = vsel %vm569, %v434, %v498
    %v575 = vsel %vm569, %v435, %v500
    %v576 = vsel %vm569, %v436, %v502
    %v577 = vsel %vm569, %v437, %v504
    %v578 = vsel %vm569, %v522, %v546
    %v579 = vsel %vm569, %v524, %v548
    %v580 = vsel %vm569, %v526, %v550
    %v581 = vsel %vm569, %v528, %v552
    %v582 = vsel %vm569, %v530, %v554
    %v583 = vsel %vm569, %v532, %v556
    %v584 = vsel %vm569, %v534, %v558
    %v585 = vsel %vm569, %v536, %v560
    %v586 = vpack.c.bf16 %v571, %v570
    %v587 = vpack.c.bf16 %v579, %v578
    %v588 = vpack.c.bf16 %v573, %v572
    %v589 = vpack.c.bf16 %v581, %v580
    %v590 = vpack.c.bf16 %v575, %v574
    %v591 = vpack.c.bf16 %v583, %v582
    %v592 = vpack.c.bf16 %v577, %v576
    %v593 = vpack.c.bf16 %v585, %v584
    %594 = vst [vmem:[#allocation2 + $0x10] sm:$0xff] %v586
    %595 = vst [vmem:[#allocation2 + $0x18] sm:$0xff] %v587
    %596 = vst [vmem:[#allocation2 + $0x20] sm:$0xff] %v588
    %597 = vst [vmem:[#allocation2 + $0x28] sm:$0xff] %v589
    %598 = vst [vmem:[#allocation2 + $0x30] sm:$0xff] %v590
    %599 = vst [vmem:[#allocation2 + $0x38] sm:$0xff] %v591
    %600 = vst [vmem:[#allocation2 + $0x40] sm:$0xff] %v592
    %601 = vst [vmem:[#allocation2 + $0x48] sm:$0xff] %v593
    %v602 = vld [vmem:[#allocation2] sm:$0xf0]
    %v603 = vld [vmem:[#allocation2 + $0x8] sm:$0xf0]
    %v604 = vld [vmem:[#allocation2 + $0x10] sm:$0xff]
    %v605 = vld [vmem:[#allocation2 + $0x18] sm:$0xff]
    %v606 = vld [vmem:[#allocation2 + $0x20] sm:$0xff]
    %v607 = vld [vmem:[#allocation2 + $0x28] sm:$0xff]
    %v608 = vld [vmem:[#allocation2 + $0x30] sm:$0xff]
    %v609 = vld [vmem:[#allocation2 + $0x38] sm:$0xff]
    %v610 = vld [vmem:[#allocation2 + $0x40] sm:$0x1f]
    %v611 = vld [vmem:[#allocation2 + $0x48] sm:$0x1f]
    %v612 = vld [vmem:[%s3] sm:$0xf]
    %v613 = vld [vmem:[%s3 + $0x4] sm:$0xf]
    %v614 = vld [vmem:[%s3 + $0x8] sm:$0xf]
    %v615 = vld [vmem:[%s3 + $0xc] sm:$0xf]
    %v616 = vld [vmem:[%s3 + $0x10] sm:$0xf]
    %v617 = vld [vmem:[%s3 + $0x14] sm:$0xf]
    %v618 = vld [vmem:[%s3 + $0x18] sm:$0xf]
    %v619 = vld [vmem:[%s3 + $0x1c] sm:$0xf]
    %v620 = vld [vmem:[%s3 + $0x20] sm:$0xf]
    %v621 = vld [vmem:[%s3 + $0x24] sm:$0xf]
    %v622 = vld [vmem:[%s3 + $0x28] sm:$0xf]
    %v623 = vld [vmem:[%s3 + $0x2c] sm:$0xf]
    %v624 = vld [vmem:[%s3 + $0x30] sm:$0xf]
    %v625 = vld [vmem:[%s3 + $0x34] sm:$0xf]
    %v626 = vld [vmem:[%s3 + $0x38] sm:$0xf]
    %v627 = vld [vmem:[%s3 + $0x3c] sm:$0xf]
    %v628 = vld [vmem:[%s3 + $0x40] sm:$0xf]
    %v629 = vld [vmem:[%s3 + $0x44] sm:$0xf]
    %v630 = vld [vmem:[%s3 + $0x48] sm:$0xf]
    %v631 = vld [vmem:[%s3 + $0x4c] sm:$0xf]
    %v632 = vld [vmem:[%s3 + $0x50] sm:$0xf]
    %v633 = vld [vmem:[%s3 + $0x54] sm:$0xf]
    %v634 = vld [vmem:[%s3 + $0x58] sm:$0xf]
    %v635 = vld [vmem:[%s3 + $0x5c] sm:$0xf]
    %v636 = vld [vmem:[%s3 + $0x60] sm:$0xf]
    %v637 = vld [vmem:[%s3 + $0x64] sm:$0xf]
    %v638 = vld [vmem:[%s3 + $0x68] sm:$0xf]
    %v639 = vld [vmem:[%s3 + $0x6c] sm:$0xf]
    %v640 = vld [vmem:[%s3 + $0x70] sm:$0xf]
    %v641 = vld [vmem:[%s3 + $0x74] sm:$0xf]
    %v642 = vld [vmem:[%s3 + $0x78] sm:$0xf]
    %v643 = vld [vmem:[%s3 + $0x7c] sm:$0xf]
    %s644 = scalar_lea.vmem %s3, 128
    %v645 = vld [vmem:[%s644] sm:$0xf]
    %v646 = vld [vmem:[%s644 + $0x4] sm:$0xf]
    %v647 = vld [vmem:[%s644 + $0x8] sm:$0xf]
    %v648 = vld [vmem:[%s644 + $0xc] sm:$0xf]
    %v649 = vld [vmem:[%s644 + $0x10] sm:$0xf]
    %v650 = vld [vmem:[%s644 + $0x14] sm:$0xf]
    %v651 = vld [vmem:[%s644 + $0x18] sm:$0xf]
    %v652 = vld [vmem:[%s644 + $0x1c] sm:$0xf]
    %v653 = vld [vmem:[%s644 + $0x20] sm:$0xf]
    %v654 = vld [vmem:[%s644 + $0x24] sm:$0xf]
    %v655 = vld [vmem:[%s644 + $0x28] sm:$0xf]
    %v656 = vld [vmem:[%s644 + $0x2c] sm:$0xf]
    %v657 = vld [vmem:[%s644 + $0x30] sm:$0xf]
    %v658 = vld [vmem:[%s644 + $0x34] sm:$0xf]
    %v659 = vld [vmem:[%s644 + $0x38] sm:$0xf]
    %v660 = vld [vmem:[%s644 + $0x3c] sm:$0xf]
    %v661 = vld [vmem:[%s644 + $0x40] sm:$0xf]
    %v662 = vld [vmem:[%s644 + $0x44] sm:$0xf]
    %v663 = vld [vmem:[%s644 + $0x48] sm:$0xf]
    %v664 = vld [vmem:[%s644 + $0x4c] sm:$0xf]
    %v665 = vld [vmem:[%s644 + $0x50] sm:$0xf]
    %v666 = vld [vmem:[%s644 + $0x54] sm:$0xf]
    %v667 = vld [vmem:[%s644 + $0x58] sm:$0xf]
    %v668 = vld [vmem:[%s644 + $0x5c] sm:$0xf]
    %v669 = vld [vmem:[%s644 + $0x60] sm:$0xf]
    %v670 = vld [vmem:[%s644 + $0x64] sm:$0xf]
    %v671 = vld [vmem:[%s644 + $0x68] sm:$0xf]
    %v672 = vld [vmem:[%s644 + $0x6c] sm:$0xf]
    %v673 = vld [vmem:[%s644 + $0x70] sm:$0xf]
    %v674 = vld [vmem:[%s644 + $0x74] sm:$0xf]
    %v675 = vld [vmem:[%s644 + $0x78] sm:$0xf]
    %v676 = vld [vmem:[%s644 + $0x7c] sm:$0xf]
    %vm677 = vsmask.f32 3328
    %v679 = vshrl.u32 %v602, 16
    %v681 = vrot.slane %v679, 4
    %v682 = vshll.u32 %v602, 16
    %v684 = vrot.slane %v682, 5
    %v685 = vor.u32 %v681, %v684
    %v687 = vshrl.u32 %v604, 16
    %v689 = vrot.slane %v687, 4
    %v690 = vshll.u32 %v604, 16
    %v692 = vrot.slane %v690, 5
    %v693 = vor.u32 %v689, %v692
    %v694 = vsel %vm677, %v685, %v693
    %v696 = vshrl.u32 %v603, 16
    %v698 = vrot.slane %v696, 4
    %v699 = vshll.u32 %v603, 16
    %v701 = vrot.slane %v699, 5
    %v702 = vor.u32 %v698, %v701
    %v704 = vshrl.u32 %v605, 16
    %v706 = vrot.slane %v704, 4
    %v707 = vshll.u32 %v605, 16
    %v709 = vrot.slane %v707, 5
    %v710 = vor.u32 %v706, %v709
    %v711 = vsel %vm677, %v702, %v710
    %v713 = vshrl.u32 %v606, 16
    %v715 = vrot.slane %v713, 4
    %v716 = vshll.u32 %v606, 16
    %v718 = vrot.slane %v716, 5
    %v719 = vor.u32 %v715, %v718
    %v720 = vsel %vm677, %v693, %v719
    %v722 = vshrl.u32 %v607, 16
    %v724 = vrot.slane %v722, 4
    %v725 = vshll.u32 %v607, 16
    %v727 = vrot.slane %v725, 5
    %v728 = vor.u32 %v724, %v727
    %v729 = vsel %vm677, %v710, %v728
    %v731 = vshrl.u32 %v608, 16
    %v733 = vrot.slane %v731, 4
    %v734 = vshll.u32 %v608, 16
    %v736 = vrot.slane %v734, 5
    %v737 = vor.u32 %v733, %v736
    %v738 = vsel %vm677, %v719, %v737
    %v740 = vshrl.u32 %v609, 16
    %v742 = vrot.slane %v740, 4
    %v743 = vshll.u32 %v609, 16
    %v745 = vrot.slane %v743, 5
    %v746 = vor.u32 %v742, %v745
    %v747 = vsel %vm677, %v728, %v746
    %v749 = vshrl.u32 %v610, 16
    %v751 = vrot.slane %v749, 4
    %v752 = vshll.u32 %v610, 16
    %v754 = vrot.slane %v752, 5
    %v755 = vor.u32 %v751, %v754
    %v756 = vsel %vm677, %v737, %v755
    %v758 = vshrl.u32 %v611, 16
    %v760 = vrot.slane %v758, 4
    %v761 = vshll.u32 %v611, 16
    %v763 = vrot.slane %v761, 5
    %v764 = vor.u32 %v760, %v763
    %v765 = vsel %vm677, %v746, %v764
    %v808 = vunpack.c.l.b16 %v645
    %v809 = vunpack.c.l.b16 %v646
    %v810 = vunpack.c.l.b16 %v647
    %v811 = vunpack.c.l.b16 %v648
    %v812 = vunpack.c.l.b16 %v649
    %v813 = vunpack.c.l.b16 %v650
    %v814 = vunpack.c.l.b16 %v651
    %v815 = vunpack.c.l.b16 %v652
    %v816 = vunpack.c.l.b16 %v653
    %v817 = vunpack.c.l.b16 %v654
    %v818 = vunpack.c.l.b16 %v655
    %v819 = vunpack.c.l.b16 %v656
    %v820 = vunpack.c.l.b16 %v657
    %v821 = vunpack.c.l.b16 %v658
    %v822 = vunpack.c.l.b16 %v659
    %v823 = vunpack.c.l.b16 %v660
    %v824 = vunpack.c.l.b16 %v661
    %v825 = vunpack.c.l.b16 %v662
    %v826 = vunpack.c.l.b16 %v663
    %v827 = vunpack.c.l.b16 %v664
    %v828 = vunpack.c.l.b16 %v665
    %v829 = vunpack.c.l.b16 %v666
    %v830 = vunpack.c.l.b16 %v667
    %v831 = vunpack.c.l.b16 %v668
    %v832 = vunpack.c.l.b16 %v669
    %v833 = vunpack.c.l.b16 %v670
    %v834 = vunpack.c.l.b16 %v671
    %v835 = vunpack.c.l.b16 %v672
    %v836 = vunpack.c.l.b16 %v673
    %v837 = vunpack.c.l.b16 %v674
    %v838 = vunpack.c.l.b16 %v675
    %v839 = vunpack.c.l.b16 %v676
    %v840 = vpack.c.b16 %v809, %v808
    %v841 = vpack.c.b16 %v811, %v810
    %v842 = vpack.c.b16 %v813, %v812
    %v843 = vpack.c.b16 %v815, %v814
    %v844 = vpack.c.b16 %v817, %v816
    %v845 = vpack.c.b16 %v819, %v818
    %v846 = vpack.c.b16 %v821, %v820
    %v847 = vpack.c.b16 %v823, %v822
    %v848 = vpack.c.b16 %v825, %v824
    %v849 = vpack.c.b16 %v827, %v826
    %v850 = vpack.c.b16 %v829, %v828
    %v851 = vpack.c.b16 %v831, %v830
    %v852 = vpack.c.b16 %v833, %v832
    %v853 = vpack.c.b16 %v835, %v834
    %v854 = vpack.c.b16 %v837, %v836
    %v855 = vpack.c.b16 %v839, %v838
    %872 = vmatprep.subr.bf16.mxu0 0
    %873 = vmatpush1.bf16.msra.mxu0 %v840
    %874 = vmatprep.subr.bf16.mxu0 0
    %875 = vmatpush1.bf16.msra.mxu0 %v841
    %876 = vmatprep.subr.bf16.mxu0 0
    %877 = vmatpush1.bf16.msra.mxu0 %v842
    %878 = vmatprep.subr.bf16.mxu0 0
    %879 = vmatpush1.bf16.msra.mxu0 %v843
    %880 = vmatprep.subr.bf16.mxu0 0
    %881 = vmatpush1.bf16.msra.mxu0 %v844
    %882 = vmatprep.subr.bf16.mxu0 0
    %883 = vmatpush1.bf16.msra.mxu0 %v845
    %884 = vmatprep.subr.bf16.mxu0 0
    %885 = vmatpush1.bf16.msra.mxu0 %v846
    %886 = vmatprep.subr.bf16.mxu0 0
    %887 = vmatpush1.bf16.msra.mxu0 %v847
    %888 = vmatprep.subr.bf16.mxu0 0
    %889 = vmatpush1.bf16.msra.mxu0 %v848
    %890 = vmatprep.subr.bf16.mxu0 0
    %891 = vmatpush1.bf16.msra.mxu0 %v849
    %892 = vmatprep.subr.bf16.mxu0 0
    %893 = vmatpush1.bf16.msra.mxu0 %v850
    %894 = vmatprep.subr.bf16.mxu0 0
    %895 = vmatpush1.bf16.msra.mxu0 %v851
    %896 = vmatprep.subr.bf16.mxu0 0
    %897 = vmatpush1.bf16.msra.mxu0 %v852
    %898 = vmatprep.subr.bf16.mxu0 0
    %899 = vmatpush1.bf16.msra.mxu0 %v853
    %900 = vmatprep.subr.bf16.mxu0 0
    %901 = vmatpush1.bf16.msra.mxu0 %v854
    %902 = vmatprep.subr.bf16.mxu0 0
    %903 = vmatpush1.bf16.msra.mxu0 %v855
    %904 = vmatprep.mubr.bf16.mxu0 %v711
    %905 = vmatmul.mubr.bf16.gmra.mrb[0].mxu0 %v694
    %v906 = vpop.f32.mrb[0].mxu0
    %v907 = vadd.f32 0.0, %v906
    %v908 = vpop.f32.mrb[0].mxu0
    %v909 = vpop.f32.mrb[0].mxu0
    %v910 = vadd.f32 0.0, %v909
    %v911 = vpop.f32.mrb[0].mxu0
    %912 = vmatprep.mubr.bf16.mxu0 %v729
    %913 = vmatmul.mubr.bf16.gmra.mrb[0].mxu0 %v720
    %v914 = vpop.f32.mrb[0].mxu0
    %v915 = vadd.f32 0.0, %v914
    %v916 = vpop.f32.mrb[0].mxu0
    %v917 = vpop.f32.mrb[0].mxu0
    %v918 = vadd.f32 0.0, %v917
    %v919 = vpop.f32.mrb[0].mxu0
    %920 = vmatprep.mubr.bf16.mxu0 %v747
    %921 = vmatmul.mubr.bf16.gmra.mrb[0].mxu0 %v738
    %v922 = vpop.f32.mrb[0].mxu0
    %v923 = vadd.f32 0.0, %v922
    %v924 = vpop.f32.mrb[0].mxu0
    %v925 = vpop.f32.mrb[0].mxu0
    %v926 = vadd.f32 0.0, %v925
    %v927 = vpop.f32.mrb[0].mxu0
    %928 = vmatprep.mubr.bf16.mxu0 %v765
    %929 = vmatmul.mubr.bf16.gmra.mrb[0].mxu0 %v756
    %v930 = vpop.f32.mrb[0].mxu0
    %v931 = vadd.f32 0.0, %v930
    %v932 = vpop.f32.mrb[0].mxu0
    %v933 = vpop.f32.mrb[0].mxu0
    %v934 = vadd.f32 0.0, %v933
    %v935 = vpop.f32.mrb[0].mxu0
    %936 = vmatprep.mubr.bf16.mxu0 %v760
    %937 = vmatmul.mubr.bf16.gmra.mrb[0].mxu0 %v751
    %v938 = vpop.f32.mrb[0].mxu0
    %v939 = vadd.f32 0.0, %v938
    %v940 = vpop.f32.mrb[0].mxu0
    %v941 = vpop.f32.mrb[0].mxu0
    %v942 = vpop.f32.mrb[0].mxu0
    %943 = vdwg.mxu0
    %vm954 = vcmask 1043456
    %v955 = vrot.slane %v602, 4
    %v956 = vrot.slane %v604, 4
    %v957 = vsel %vm954, %v955, %v956
    %v958 = vrot.slane %v603, 4
    %v959 = vrot.slane %v605, 4
    %v960 = vsel %vm954, %v958, %v959
    %v961 = vrot.slane %v606, 4
    %v962 = vsel %vm954, %v956, %v961
    %v963 = vrot.slane %v607, 4
    %v964 = vsel %vm954, %v959, %v963
    %v965 = vrot.slane %v608, 4
    %v966 = vsel %vm954, %v961, %v965
    %v967 = vrot.slane %v609, 4
    %v968 = vsel %vm954, %v963, %v967
    %v969 = vrot.slane %v610, 4
    %v970 = vsel %vm954, %v965, %v969
    %v971 = vrot.slane %v611, 4
    %v972 = vsel %vm954, %v967, %v971
    %v1015 = vunpack.c.l.b16 %v612
    %v1016 = vunpack.c.l.b16 %v613
    %v1017 = vunpack.c.l.b16 %v614
    %v1018 = vunpack.c.l.b16 %v615
    %v1019 = vunpack.c.l.b16 %v616
    %v1020 = vunpack.c.l.b16 %v617
    %v1021 = vunpack.c.l.b16 %v618
    %v1022 = vunpack.c.l.b16 %v619
    %v1023 = vunpack.c.l.b16 %v620
    %v1024 = vunpack.c.l.b16 %v621
    %v1025 = vunpack.c.l.b16 %v622
    %v1026 = vunpack.c.l.b16 %v623
    %v1027 = vunpack.c.l.b16 %v624
    %v1028 = vunpack.c.l.b16 %v625
    %v1029 = vunpack.c.l.b16 %v626
    %v1030 = vunpack.c.l.b16 %v627
    %v1031 = vunpack.c.l.b16 %v628
    %v1032 = vunpack.c.l.b16 %v629
    %v1033 = vunpack.c.l.b16 %v630
    %v1034 = vunpack.c.l.b16 %v631
    %v1035 = vunpack.c.l.b16 %v632
    %v1036 = vunpack.c.l.b16 %v633
    %v1037 = vunpack.c.l.b16 %v634
    %v1038 = vunpack.c.l.b16 %v635
    %v1039 = vunpack.c.l.b16 %v636
    %v1040 = vunpack.c.l.b16 %v637
    %v1041 = vunpack.c.l.b16 %v638
    %v1042 = vunpack.c.l.b16 %v639
    %v1043 = vunpack.c.l.b16 %v640
    %v1044 = vunpack.c.l.b16 %v641
    %v1045 = vunpack.c.l.b16 %v642
    %v1046 = vunpack.c.l.b16 %v643
    %v1047 = vpack.c.b16 %v1016, %v1015
    %v1048 = vpack.c.b16 %v1018, %v1017
    %v1049 = vpack.c.b16 %v1020, %v1019
    %v1050 = vpack.c.b16 %v1022, %v1021
    %v1051 = vpack.c.b16 %v1024, %v1023
    %v1052 = vpack.c.b16 %v1026, %v1025
    %v1053 = vpack.c.b16 %v1028, %v1027
    %v1054 = vpack.c.b16 %v1030, %v1029
    %v1055 = vpack.c.b16 %v1032, %v1031
    %v1056 = vpack.c.b16 %v1034, %v1033
    %v1057 = vpack.c.b16 %v1036, %v1035
    %v1058 = vpack.c.b16 %v1038, %v1037
    %v1059 = vpack.c.b16 %v1040, %v1039
    %v1060 = vpack.c.b16 %v1042, %v1041
    %v1061 = vpack.c.b16 %v1044, %v1043
    %v1062 = vpack.c.b16 %v1046, %v1045
    %1079 = vmatprep.subr.bf16.mxu0 0
    %1080 = vmatpush1.bf16.msra.mxu0 %v1047
    %1081 = vmatprep.subr.bf16.mxu0 0
    %1082 = vmatpush1.bf16.msra.mxu0 %v1048
    %1083 = vmatprep.subr.bf16.mxu0 0
    %1084 = vmatpush1.bf16.msra.mxu0 %v1049
    %1085 = vmatprep.subr.bf16.mxu0 0
    %1086 = vmatpush1.bf16.msra.mxu0 %v1050
    %1087 = vmatprep.subr.bf16.mxu0 0
    %1088 = vmatpush1.bf16.msra.mxu0 %v1051
    %1089 = vmatprep.subr.bf16.mxu0 0
    %1090 = vmatpush1.bf16.msra.mxu0 %v1052
    %1091 = vmatprep.subr.bf16.mxu0 0
    %1092 = vmatpush1.bf16.msra.mxu0 %v1053
    %1093 = vmatprep.subr.bf16.mxu0 0
    %1094 = vmatpush1.bf16.msra.mxu0 %v1054
    %1095 = vmatprep.subr.bf16.mxu0 0
    %1096 = vmatpush1.bf16.msra.mxu0 %v1055
    %1097 = vmatprep.subr.bf16.mxu0 0
    %1098 = vmatpush1.bf16.msra.mxu0 %v1056
    %1099 = vmatprep.subr.bf16.mxu0 0
    %1100 = vmatpush1.bf16.msra.mxu0 %v1057
    %1101 = vmatprep.subr.bf16.mxu0 0
    %1102 = vmatpush1.bf16.msra.mxu0 %v1058
    %1103 = vmatprep.subr.bf16.mxu0 0
    %1104 = vmatpush1.bf16.msra.mxu0 %v1059
    %1105 = vmatprep.subr.bf16.mxu0 0
    %1106 = vmatpush1.bf16.msra.mxu0 %v1060
    %1107 = vmatprep.subr.bf16.mxu0 0
    %1108 = vmatpush1.bf16.msra.mxu0 %v1061
    %1109 = vmatprep.subr.bf16.mxu0 0
    %1110 = vmatpush1.bf16.msra.mxu0 %v1062
    %1111 = vmatprep.mubr.bf16.mxu0 %v960
    %1112 = vmatmul.mubr.bf16.gmra.mrb[0].mxu0 %v957
    %v1113 = vpop.f32.mrb[0].mxu0
    %v1114 = vadd.f32 %v907, %v1113
    %v1115 = vpop.f32.mrb[0].mxu0
    %v1116 = vpop.f32.mrb[0].mxu0
    %v1117 = vadd.f32 %v910, %v1116
    %v1118 = vpop.f32.mrb[0].mxu0
    %1119 = vmatprep.mubr.bf16.mxu0 %v964
    %1120 = vmatmul.mubr.bf16.gmra.mrb[0].mxu0 %v962
    %v1121 = vpop.f32.mrb[0].mxu0
    %v1122 = vadd.f32 %v915, %v1121
    %v1123 = vpop.f32.mrb[0].mxu0
    %v1124 = vpop.f32.mrb[0].mxu0
    %v1125 = vadd.f32 %v918, %v1124
    %v1126 = vpop.f32.mrb[0].mxu0
    %1127 = vmatprep.mubr.bf16.mxu0 %v968
    %1128 = vmatmul.mubr.bf16.gmra.mrb[0].mxu0 %v966
    %v1129 = vpop.f32.mrb[0].mxu0
    %v1130 = vadd.f32 %v923, %v1129
    %v1131 = vpop.f32.mrb[0].mxu0
    %v1132 = vpop.f32.mrb[0].mxu0
    %v1133 = vadd.f32 %v926, %v1132
    %v1134 = vpop.f32.mrb[0].mxu0
    %1135 = vmatprep.mubr.bf16.mxu0 %v972
    %1136 = vmatmul.mubr.bf16.gmra.mrb[0].mxu0 %v970
    %v1137 = vpop.f32.mrb[0].mxu0
    %v1138 = vadd.f32 %v931, %v1137
    %v1139 = vpop.f32.mrb[0].mxu0
    %v1140 = vpop.f32.mrb[0].mxu0
    %v1141 = vadd.f32 %v934, %v1140
    %v1142 = vpop.f32.mrb[0].mxu0
    %1143 = vmatprep.mubr.bf16.mxu0 %v971
    %1144 = vmatmul.mubr.bf16.gmra.mrb[0].mxu0 %v969
    %v1145 = vpop.f32.mrb[0].mxu0
    %v1146 = vadd.f32 %v939, %v1145
    %v1147 = vpop.f32.mrb[0].mxu0
    %v1148 = vpop.f32.mrb[0].mxu0
    %v1149 = vpop.f32.mrb[0].mxu0
    %1150 = vdwg.mxu0
    %v1151 = vld [vmem:[#allocation2] sm:$0xe0]
    %v1152 = vld [vmem:[#allocation2 + $0x8] sm:$0xe0]
    %v1153 = vld [vmem:[#allocation2 + $0x40] sm:$0x3f]
    %v1154 = vld [vmem:[#allocation2 + $0x48] sm:$0x3f]
    %s1155 = scalar_lea.vmem %s3, 256
    %v1156 = vld [vmem:[%s1155] sm:$0xf]
    %v1157 = vld [vmem:[%s1155 + $0x4] sm:$0xf]
    %v1158 = vld [vmem:[%s1155 + $0x8] sm:$0xf]
    %v1159 = vld [vmem:[%s1155 + $0xc] sm:$0xf]
    %v1160 = vld [vmem:[%s1155 + $0x10] sm:$0xf]
    %v1161 = vld [vmem:[%s1155 + $0x14] sm:$0xf]
    %v1162 = vld [vmem:[%s1155 + $0x18] sm:$0xf]
    %v1163 = vld [vmem:[%s1155 + $0x1c] sm:$0xf]
    %v1164 = vld [vmem:[%s1155 + $0x20] sm:$0xf]
    %v1165 = vld [vmem:[%s1155 + $0x24] sm:$0xf]
    %v1166 = vld [vmem:[%s1155 + $0x28] sm:$0xf]
    %v1167 = vld [vmem:[%s1155 + $0x2c] sm:$0xf]
    %v1168 = vld [vmem:[%s1155 + $0x30] sm:$0xf]
    %v1169 = vld [vmem:[%s1155 + $0x34] sm:$0xf]
    %v1170 = vld [vmem:[%s1155 + $0x38] sm:$0xf]
    %v1171 = vld [vmem:[%s1155 + $0x3c] sm:$0xf]
    %v1172 = vld [vmem:[%s1155 + $0x40] sm:$0xf]
    %v1173 = vld [vmem:[%s1155 + $0x44] sm:$0xf]
    %v1174 = vld [vmem:[%s1155 + $0x48] sm:$0xf]
    %v1175 = vld [vmem:[%s1155 + $0x4c] sm:$0xf]
    %v1176 = vld [vmem:[%s1155 + $0x50] sm:$0xf]
    %v1177 = vld [vmem:[%s1155 + $0x54] sm:$0xf]
    %v1178 = vld [vmem:[%s1155 + $0x58] sm:$0xf]
    %v1179 = vld [vmem:[%s1155 + $0x5c] sm:$0xf]
    %v1180 = vld [vmem:[%s1155 + $0x60] sm:$0xf]
    %v1181 = vld [vmem:[%s1155 + $0x64] sm:$0xf]
    %v1182 = vld [vmem:[%s1155 + $0x68] sm:$0xf]
    %v1183 = vld [vmem:[%s1155 + $0x6c] sm:$0xf]
    %v1184 = vld [vmem:[%s1155 + $0x70] sm:$0xf]
    %v1185 = vld [vmem:[%s1155 + $0x74] sm:$0xf]
    %v1186 = vld [vmem:[%s1155 + $0x78] sm:$0xf]
    %v1187 = vld [vmem:[%s1155 + $0x7c] sm:$0xf]
    %vm1192 = vcmask 1042432
    %v1193 = vrot.slane %v1151, 5
    %v1194 = vrot.slane %v604, 5
    %v1195 = vsel %vm1192, %v1193, %v1194
    %v1196 = vrot.slane %v1152, 5
    %v1197 = vrot.slane %v605, 5
    %v1198 = vsel %vm1192, %v1196, %v1197
    %v1199 = vrot.slane %v606, 5
    %v1200 = vsel %vm1192, %v1194, %v1199
    %v1201 = vrot.slane %v607, 5
    %v1202 = vsel %vm1192, %v1197, %v1201
    %v1203 = vrot.slane %v608, 5
    %v1204 = vsel %vm1192, %v1199, %v1203
    %v1205 = vrot.slane %v609, 5
    %v1206 = vsel %vm1192, %v1201, %v1205
    %v1207 = vrot.slane %v1153, 5
    %v1208 = vsel %vm1192, %v1203, %v1207
    %v1209 = vrot.slane %v1154, 5
    %v1210 = vsel %vm1192, %v1205, %v1209
    %v1253 = vunpack.c.l.b16 %v1156
    %v1254 = vunpack.c.l.b16 %v1157
    %v1255 = vunpack.c.l.b16 %v1158
    %v1256 = vunpack.c.l.b16 %v1159
    %v1257 = vunpack.c.l.b16 %v1160
    %v1258 = vunpack.c.l.b16 %v1161
    %v1259 = vunpack.c.l.b16 %v1162
    %v1260 = vunpack.c.l.b16 %v1163
    %v1261 = vunpack.c.l.b16 %v1164
    %v1262 = vunpack.c.l.b16 %v1165
    %v1263 = vunpack.c.l.b16 %v1166
    %v1264 = vunpack.c.l.b16 %v1167
    %v1265 = vunpack.c.l.b16 %v1168
    %v1266 = vunpack.c.l.b16 %v1169
    %v1267 = vunpack.c.l.b16 %v1170
    %v1268 = vunpack.c.l.b16 %v1171
    %v1269 = vunpack.c.l.b16 %v1172
    %v1270 = vunpack.c.l.b16 %v1173
    %v1271 = vunpack.c.l.b16 %v1174
    %v1272 = vunpack.c.l.b16 %v1175
    %v1273 = vunpack.c.l.b16 %v1176
    %v1274 = vunpack.c.l.b16 %v1177
    %v1275 = vunpack.c.l.b16 %v1178
    %v1276 = vunpack.c.l.b16 %v1179
    %v1277 = vunpack.c.l.b16 %v1180
    %v1278 = vunpack.c.l.b16 %v1181
    %v1279 = vunpack.c.l.b16 %v1182
    %v1280 = vunpack.c.l.b16 %v1183
    %v1281 = vunpack.c.l.b16 %v1184
    %v1282 = vunpack.c.l.b16 %v1185
    %v1283 = vunpack.c.l.b16 %v1186
    %v1284 = vunpack.c.l.b16 %v1187
    %v1285 = vpack.c.b16 %v1254, %v1253
    %v1286 = vpack.c.b16 %v1256, %v1255
    %v1287 = vpack.c.b16 %v1258, %v1257
    %v1288 = vpack.c.b16 %v1260, %v1259
    %v1289 = vpack.c.b16 %v1262, %v1261
    %v1290 = vpack.c.b16 %v1264, %v1263
    %v1291 = vpack.c.b16 %v1266, %v1265
    %v1292 = vpack.c.b16 %v1268, %v1267
    %v1293 = vpack.c.b16 %v1270, %v1269
    %v1294 = vpack.c.b16 %v1272, %v1271
    %v1295 = vpack.c.b16 %v1274, %v1273
    %v1296 = vpack.c.b16 %v1276, %v1275
    %v1297 = vpack.c.b16 %v1278, %v1277
    %v1298 = vpack.c.b16 %v1280, %v1279
    %v1299 = vpack.c.b16 %v1282, %v1281
    %v1300 = vpack.c.b16 %v1284, %v1283
    %1317 = vmatprep.subr.bf16.mxu0 0
    %1318 = vmatpush1.bf16.msra.mxu0 %v1285
    %1319 = vmatprep.subr.bf16.mxu0 0
    %1320 = vmatpush1.bf16.msra.mxu0 %v1286
    %1321 = vmatprep.subr.bf16.mxu0 0
    %1322 = vmatpush1.bf16.msra.mxu0 %v1287
    %1323 = vmatprep.subr.bf16.mxu0 0
    %1324 = vmatpush1.bf16.msra.mxu0 %v1288
    %1325 = vmatprep.subr.bf16.mxu0 0
    %1326 = vmatpush1.bf16.msra.mxu0 %v1289
    %1327 = vmatprep.subr.bf16.mxu0 0
    %1328 = vmatpush1.bf16.msra.mxu0 %v1290
    %1329 = vmatprep.subr.bf16.mxu0 0
    %1330 = vmatpush1.bf16.msra.mxu0 %v1291
    %1331 = vmatprep.subr.bf16.mxu0 0
    %1332 = vmatpush1.bf16.msra.mxu0 %v1292
    %1333 = vmatprep.subr.bf16.mxu0 0
    %1334 = vmatpush1.bf16.msra.mxu0 %v1293
    %1335 = vmatprep.subr.bf16.mxu0 0
    %1336 = vmatpush1.bf16.msra.mxu0 %v1294
    %1337 = vmatprep.subr.bf16.mxu0 0
    %1338 = vmatpush1.bf16.msra.mxu0 %v1295
    %1339 = vmatprep.subr.bf16.mxu0 0
    %1340 = vmatpush1.bf16.msra.mxu0 %v1296
    %1341 = vmatprep.subr.bf16.mxu0 0
    %1342 = vmatpush1.bf16.msra.mxu0 %v1297
    %1343 = vmatprep.subr.bf16.mxu0 0
    %1344 = vmatpush1.bf16.msra.mxu0 %v1298
    %1345 = vmatprep.subr.bf16.mxu0 0
    %1346 = vmatpush1.bf16.msra.mxu0 %v1299
    %1347 = vmatprep.subr.bf16.mxu0 0
    %1348 = vmatpush1.bf16.msra.mxu0 %v1300
    %1349 = vmatprep.mubr.bf16.mxu0 %v1198
    %1350 = vmatmul.mubr.bf16.gmra.mrb[0].mxu0 %v1195
    %v1351 = vpop.f32.mrb[0].mxu0
    %v1352 = vadd.f32 0.0, %v1351
    %v1353 = vpop.f32.mrb[0].mxu0
    %v1354 = vpop.f32.mrb[0].mxu0
    %v1355 = vadd.f32 0.0, %v1354
    %v1356 = vpop.f32.mrb[0].mxu0
    %1357 = vmatprep.mubr.bf16.mxu0 %v1202
    %1358 = vmatmul.mubr.bf16.gmra.mrb[0].mxu0 %v1200
    %v1359 = vpop.f32.mrb[0].mxu0
    %v1360 = vadd.f32 0.0, %v1359
    %v1361 = vpop.f32.mrb[0].mxu0
    %v1362 = vpop.f32.mrb[0].mxu0
    %v1363 = vadd.f32 0.0, %v1362
    %v1364 = vpop.f32.mrb[0].mxu0
    %1365 = vmatprep.mubr.bf16.mxu0 %v1206
    %1366 = vmatmul.mubr.bf16.gmra.mrb[0].mxu0 %v1204
    %v1367 = vpop.f32.mrb[0].mxu0
    %v1368 = vadd.f32 0.0, %v1367
    %v1369 = vpop.f32.mrb[0].mxu0
    %v1370 = vpop.f32.mrb[0].mxu0
    %v1371 = vadd.f32 0.0, %v1370
    %v1372 = vpop.f32.mrb[0].mxu0
    %1373 = vmatprep.mubr.bf16.mxu0 %v1210
    %1374 = vmatmul.mubr.bf16.gmra.mrb[0].mxu0 %v1208
    %v1375 = vpop.f32.mrb[0].mxu0
    %v1376 = vadd.f32 0.0, %v1375
    %v1377 = vpop.f32.mrb[0].mxu0
    %v1378 = vpop.f32.mrb[0].mxu0
    %v1379 = vadd.f32 0.0, %v1378
    %v1380 = vpop.f32.mrb[0].mxu0
    %1381 = vmatprep.mubr.bf16.mxu0 %v1209
    %1382 = vmatmul.mubr.bf16.gmra.mrb[0].mxu0 %v1207
    %v1383 = vpop.f32.mrb[0].mxu0
    %v1384 = vadd.f32 0.0, %v1383
    %v1385 = vpop.f32.mrb[0].mxu0
    %v1386 = vpop.f32.mrb[0].mxu0
    %v1387 = vpop.f32.mrb[0].mxu0
    %1388 = vdwg.mxu0
    %v1389 = vadd.f32 %v1114, %v1352
    %v1390 = vadd.f32 %v1117, %v1355
    %v1391 = vadd.f32 %v1122, %v1360
    %v1392 = vadd.f32 %v1125, %v1363
    %v1393 = vadd.f32 %v1130, %v1368
    %v1394 = vadd.f32 %v1133, %v1371
    %v1395 = vadd.f32 %v1138, %v1376
    %v1396 = vadd.f32 %v1141, %v1379
    %v1397 = vadd.f32 %v1146, %v1384
    %s1398 = scalar_lea.vmem %s3, 384
    %v1399 = vld [vmem:[%s1398] sm:$0xf]
    %v1400 = vld [vmem:[%s1398 + $0x4] sm:$0xf]
    %v1401 = vld [vmem:[%s1398 + $0x8] sm:$0xf]
    %v1402 = vld [vmem:[%s1398 + $0xc] sm:$0xf]
    %v1403 = vld [vmem:[%s1398 + $0x10] sm:$0xf]
    %v1404 = vld [vmem:[%s1398 + $0x14] sm:$0xf]
    %v1405 = vld [vmem:[%s1398 + $0x18] sm:$0xf]
    %v1406 = vld [vmem:[%s1398 + $0x1c] sm:$0xf]
    %v1407 = vld [vmem:[%s1398 + $0x20] sm:$0xf]
    %v1408 = vld [vmem:[%s1398 + $0x24] sm:$0xf]
    %v1409 = vld [vmem:[%s1398 + $0x28] sm:$0xf]
    %v1410 = vld [vmem:[%s1398 + $0x2c] sm:$0xf]
    %v1411 = vld [vmem:[%s1398 + $0x30] sm:$0xf]
    %v1412 = vld [vmem:[%s1398 + $0x34] sm:$0xf]
    %v1413 = vld [vmem:[%s1398 + $0x38] sm:$0xf]
    %v1414 = vld [vmem:[%s1398 + $0x3c] sm:$0xf]
    %v1415 = vld [vmem:[%s1398 + $0x40] sm:$0xf]
    %v1416 = vld [vmem:[%s1398 + $0x44] sm:$0xf]
    %v1417 = vld [vmem:[%s1398 + $0x48] sm:$0xf]
    %v1418 = vld [vmem:[%s1398 + $0x4c] sm:$0xf]
    %v1419 = vld [vmem:[%s1398 + $0x50] sm:$0xf]
    %v1420 = vld [vmem:[%s1398 + $0x54] sm:$0xf]
    %v1421 = vld [vmem:[%s1398 + $0x58] sm:$0xf]
    %v1422 = vld [vmem:[%s1398 + $0x5c] sm:$0xf]
    %v1423 = vld [vmem:[%s1398 + $0x60] sm:$0xf]
    %v1424 = vld [vmem:[%s1398 + $0x64] sm:$0xf]
    %v1425 = vld [vmem:[%s1398 + $0x68] sm:$0xf]
    %v1426 = vld [vmem:[%s1398 + $0x6c] sm:$0xf]
    %v1427 = vld [vmem:[%s1398 + $0x70] sm:$0xf]
    %v1428 = vld [vmem:[%s1398 + $0x74] sm:$0xf]
    %v1429 = vld [vmem:[%s1398 + $0x78] sm:$0xf]
    %v1430 = vld [vmem:[%s1398 + $0x7c] sm:$0xf]
    %vm1431 = vsmask.f32 2304
    %v1433 = vshrl.u32 %v1151, 16
    %v1435 = vrot.slane %v1433, 5
    %v1436 = vshll.u32 %v1151, 16
    %v1438 = vrot.slane %v1436, 6
    %v1439 = vor.u32 %v1435, %v1438
    %v1440 = vrot.slane %v687, 5
    %v1441 = vrot.slane %v690, 6
    %v1442 = vor.u32 %v1440, %v1441
    %v1443 = vsel %vm1431, %v1439, %v1442
    %v1445 = vshrl.u32 %v1152, 16
    %v1447 = vrot.slane %v1445, 5
    %v1448 = vshll.u32 %v1152, 16
    %v1450 = vrot.slane %v1448, 6
    %v1451 = vor.u32 %v1447, %v1450
    %v1452 = vrot.slane %v704, 5
    %v1453 = vrot.slane %v707, 6
    %v1454 = vor.u32 %v1452, %v1453
    %v1455 = vsel %vm1431, %v1451, %v1454
    %v1456 = vrot.slane %v713, 5
    %v1457 = vrot.slane %v716, 6
    %v1458 = vor.u32 %v1456, %v1457
    %v1459 = vsel %vm1431, %v1442, %v1458
    %v1460 = vrot.slane %v722, 5
    %v1461 = vrot.slane %v725, 6
    %v1462 = vor.u32 %v1460, %v1461
    %v1463 = vsel %vm1431, %v1454, %v1462
    %v1464 = vrot.slane %v731, 5
    %v1465 = vrot.slane %v734, 6
    %v1466 = vor.u32 %v1464, %v1465
    %v1467 = vsel %vm1431, %v1458, %v1466
    %v1468 = vrot.slane %v740, 5
    %v1469 = vrot.slane %v743, 6
    %v1470 = vor.u32 %v1468, %v1469
    %v1471 = vsel %vm1431, %v1462, %v1470
    %v1473 = vshrl.u32 %v1153, 16
    %v1475 = vrot.slane %v1473, 5
    %v1476 = vshll.u32 %v1153, 16
    %v1478 = vrot.slane %v1476, 6
    %v1479 = vor.u32 %v1475, %v1478
    %v1480 = vsel %vm1431, %v1466, %v1479
    %v1482 = vshrl.u32 %v1154, 16
    %v1484 = vrot.slane %v1482, 5
    %v1485 = vshll.u32 %v1154, 16
    %v1487 = vrot.slane %v1485, 6
    %v1488 = vor.u32 %v1484, %v1487
    %v1489 = vsel %vm1431, %v1470, %v1488
    %v1532 = vunpack.c.l.b16 %v1399
    %v1533 = vunpack.c.l.b16 %v1400
    %v1534 = vunpack.c.l.b16 %v1401
    %v1535 = vunpack.c.l.b16 %v1402
    %v1536 = vunpack.c.l.b16 %v1403
    %v1537 = vunpack.c.l.b16 %v1404
    %v1538 = vunpack.c.l.b16 %v1405
    %v1539 = vunpack.c.l.b16 %v1406
    %v1540 = vunpack.c.l.b16 %v1407
    %v1541 = vunpack.c.l.b16 %v1408
    %v1542 = vunpack.c.l.b16 %v1409
    %v1543 = vunpack.c.l.b16 %v1410
    %v1544 = vunpack.c.l.b16 %v1411
    %v1545 = vunpack.c.l.b16 %v1412
    %v1546 = vunpack.c.l.b16 %v1413
    %v1547 = vunpack.c.l.b16 %v1414
    %v1548 = vunpack.c.l.b16 %v1415
    %v1549 = vunpack.c.l.b16 %v1416
    %v1550 = vunpack.c.l.b16 %v1417
    %v1551 = vunpack.c.l.b16 %v1418
    %v1552 = vunpack.c.l.b16 %v1419
    %v1553 = vunpack.c.l.b16 %v1420
    %v1554 = vunpack.c.l.b16 %v1421
    %v1555 = vunpack.c.l.b16 %v1422
    %v1556 = vunpack.c.l.b16 %v1423
    %v1557 = vunpack.c.l.b16 %v1424
    %v1558 = vunpack.c.l.b16 %v1425
    %v1559 = vunpack.c.l.b16 %v1426
    %v1560 = vunpack.c.l.b16 %v1427
    %v1561 = vunpack.c.l.b16 %v1428
    %v1562 = vunpack.c.l.b16 %v1429
    %v1563 = vunpack.c.l.b16 %v1430
    %v1564 = vpack.c.b16 %v1533, %v1532
    %v1565 = vpack.c.b16 %v1535, %v1534
    %v1566 = vpack.c.b16 %v1537, %v1536
    %v1567 = vpack.c.b16 %v1539, %v1538
    %v1568 = vpack.c.b16 %v1541, %v1540
    %v1569 = vpack.c.b16 %v1543, %v1542
    %v1570 = vpack.c.b16 %v1545, %v1544
    %v1571 = vpack.c.b16 %v1547, %v1546
    %v1572 = vpack.c.b16 %v1549, %v1548
    %v1573 = vpack.c.b16 %v1551, %v1550
    %v1574 = vpack.c.b16 %v1553, %v1552
    %v1575 = vpack.c.b16 %v1555, %v1554
    %v1576 = vpack.c.b16 %v1557, %v1556
    %v1577 = vpack.c.b16 %v1559, %v1558
    %v1578 = vpack.c.b16 %v1561, %v1560
    %v1579 = vpack.c.b16 %v1563, %v1562
    %1596 = vmatprep.subr.bf16.mxu0 0
    %1597 = vmatpush1.bf16.msra.mxu0 %v1564
    %1598 = vmatprep.subr.bf16.mxu0 0
    %1599 = vmatpush1.bf16.msra.mxu0 %v1565
    %1600 = vmatprep.subr.bf16.mxu0 0
    %1601 = vmatpush1.bf16.msra.mxu0 %v1566
    %1602 = vmatprep.subr.bf16.mxu0 0
    %1603 = vmatpush1.bf16.msra.mxu0 %v1567
    %1604 = vmatprep.subr.bf16.mxu0 0
    %1605 = vmatpush1.bf16.msra.mxu0 %v1568
    %1606 = vmatprep.subr.bf16.mxu0 0
    %1607 = vmatpush1.bf16.msra.mxu0 %v1569
    %1608 = vmatprep.subr.bf16.mxu0 0
    %1609 = vmatpush1.bf16.msra.mxu0 %v1570
    %1610 = vmatprep.subr.bf16.mxu0 0
    %1611 = vmatpush1.bf16.msra.mxu0 %v1571
    %1612 = vmatprep.subr.bf16.mxu0 0
    %1613 = vmatpush1.bf16.msra.mxu0 %v1572
    %1614 = vmatprep.subr.bf16.mxu0 0
    %1615 = vmatpush1.bf16.msra.mxu0 %v1573
    %1616 = vmatprep.subr.bf16.mxu0 0
    %1617 = vmatpush1.bf16.msra.mxu0 %v1574
    %1618 = vmatprep.subr.bf16.mxu0 0
    %1619 = vmatpush1.bf16.msra.mxu0 %v1575
    %1620 = vmatprep.subr.bf16.mxu0 0
    %1621 = vmatpush1.bf16.msra.mxu0 %v1576
    %1622 = vmatprep.subr.bf16.mxu0 0
    %1623 = vmatpush1.bf16.msra.mxu0 %v1577
    %1624 = vmatprep.subr.bf16.mxu0 0
    %1625 = vmatpush1.bf16.msra.mxu0 %v1578
    %1626 = vmatprep.subr.bf16.mxu0 0
    %1627 = vmatpush1.bf16.msra.mxu0 %v1579
    %1628 = vmatprep.mubr.bf16.mxu0 %v1455
    %1629 = vmatmul.mubr.bf16.gmra.mrb[0].mxu0 %v1443
    %v1630 = vpop.f32.mrb[0].mxu0
    %v1631 = vadd.f32 0.0, %v1630
    %v1632 = vpop.f32.mrb[0].mxu0
    %v1633 = vpop.f32.mrb[0].mxu0
    %v1634 = vadd.f32 0.0, %v1633
    %v1635 = vpop.f32.mrb[0].mxu0
    %1636 = vmatprep.mubr.bf16.mxu0 %v1463
    %1637 = vmatmul.mubr.bf16.gmra.mrb[0].mxu0 %v1459
    %v1638 = vpop.f32.mrb[0].mxu0
    %v1639 = vadd.f32 0.0, %v1638
    %v1640 = vpop.f32.mrb[0].mxu0
    %v1641 = vpop.f32.mrb[0].mxu0
    %v1642 = vadd.f32 0.0, %v1641
    %v1643 = vpop.f32.mrb[0].mxu0
    %1644 = vmatprep.mubr.bf16.mxu0 %v1471
    %1645 = vmatmul.mubr.bf16.gmra.mrb[0].mxu0 %v1467
    %v1646 = vpop.f32.mrb[0].mxu0
    %v1647 = vadd.f32 0.0, %v1646
    %v1648 = vpop.f32.mrb[0].mxu0
    %v1649 = vpop.f32.mrb[0].mxu0
    %v1650 = vadd.f32 0.0, %v1649
    %v1651 = vpop.f32.mrb[0].mxu0
    %1652 = vmatprep.mubr.bf16.mxu0 %v1489
    %1653 = vmatmul.mubr.bf16.gmra.mrb[0].mxu0 %v1480
    %v1654 = vpop.f32.mrb[0].mxu0
    %v1655 = vadd.f32 0.0, %v1654
    %v1656 = vpop.f32.mrb[0].mxu0
    %v1657 = vpop.f32.mrb[0].mxu0
    %v1658 = vadd.f32 0.0, %v1657
    %v1659 = vpop.f32.mrb[0].mxu0
    %1660 = vmatprep.mubr.bf16.mxu0 %v1484
    %1661 = vmatmul.mubr.bf16.gmra.mrb[0].mxu0 %v1475
    %v1662 = vpop.f32.mrb[0].mxu0
    %v1663 = vadd.f32 0.0, %v1662
    %v1664 = vpop.f32.mrb[0].mxu0
    %v1665 = vpop.f32.mrb[0].mxu0
    %v1666 = vpop.f32.mrb[0].mxu0
    %1667 = vdwg.mxu0
    %v1668 = vadd.f32 %v1389, %v1631
    %v1669 = vadd.f32 %v1390, %v1634
    %v1670 = vadd.f32 %v1391, %v1639
    %v1671 = vadd.f32 %v1392, %v1642
    %v1672 = vadd.f32 %v1393, %v1647
    %v1673 = vadd.f32 %v1394, %v1650
    %v1674 = vadd.f32 %v1395, %v1655
    %v1675 = vadd.f32 %v1396, %v1658
    %v1676 = vadd.f32 %v1397, %v1663
    %v1677 = vld [vmem:[#allocation2] sm:$0xc0]
    %v1678 = vld [vmem:[#allocation2 + $0x8] sm:$0xc0]
    %v1679 = vld [vmem:[#allocation2 + $0x40] sm:$0x7f]
    %v1680 = vld [vmem:[#allocation2 + $0x48] sm:$0x7f]
    %s1681 = scalar_lea.vmem %s3, 512
    %v1682 = vld [vmem:[%s1681] sm:$0xf]
    %v1683 = vld [vmem:[%s1681 + $0x4] sm:$0xf]
    %v1684 = vld [vmem:[%s1681 + $0x8] sm:$0xf]
    %v1685 = vld [vmem:[%s1681 + $0xc] sm:$0xf]
    %v1686 = vld [vmem:[%s1681 + $0x10] sm:$0xf]
    %v1687 = vld [vmem:[%s1681 + $0x14] sm:$0xf]
    %v1688 = vld [vmem:[%s1681 + $0x18] sm:$0xf]
    %v1689 = vld [vmem:[%s1681 + $0x1c] sm:$0xf]
    %v1690 = vld [vmem:[%s1681 + $0x20] sm:$0xf]
    %v1691 = vld [vmem:[%s1681 + $0x24] sm:$0xf]
    %v1692 = vld [vmem:[%s1681 + $0x28] sm:$0xf]
    %v1693 = vld [vmem:[%s1681 + $0x2c] sm:$0xf]
    %v1694 = vld [vmem:[%s1681 + $0x30] sm:$0xf]
    %v1695 = vld [vmem:[%s1681 + $0x34] sm:$0xf]
    %v1696 = vld [vmem:[%s1681 + $0x38] sm:$0xf]
    %v1697 = vld [vmem:[%s1681 + $0x3c] sm:$0xf]
    %v1698 = vld [vmem:[%s1681 + $0x40] sm:$0xf]
    %v1699 = vld [vmem:[%s1681 + $0x44] sm:$0xf]
    %v1700 = vld [vmem:[%s1681 + $0x48] sm:$0xf]
    %v1701 = vld [vmem:[%s1681 + $0x4c] sm:$0xf]
    %v1702 = vld [vmem:[%s1681 + $0x50] sm:$0xf]
    %v1703 = vld [vmem:[%s1681 + $0x54] sm:$0xf]
    %v1704 = vld [vmem:[%s1681 + $0x58] sm:$0xf]
    %v1705 = vld [vmem:[%s1681 + $0x5c] sm:$0xf]
    %v1706 = vld [vmem:[%s1681 + $0x60] sm:$0xf]
    %v1707 = vld [vmem:[%s1681 + $0x64] sm:$0xf]
    %v1708 = vld [vmem:[%s1681 + $0x68] sm:$0xf]
    %v1709 = vld [vmem:[%s1681 + $0x6c] sm:$0xf]
    %v1710 = vld [vmem:[%s1681 + $0x70] sm:$0xf]
    %v1711 = vld [vmem:[%s1681 + $0x74] sm:$0xf]
    %v1712 = vld [vmem:[%s1681 + $0x78] sm:$0xf]
    %v1713 = vld [vmem:[%s1681 + $0x7c] sm:$0xf]
    %vm1718 = vcmask 1041408
    %v1719 = vrot.slane %v1677, 6
    %v1720 = vrot.slane %v604, 6
    %v1721 = vsel %vm1718, %v1719, %v1720
    %v1722 = vrot.slane %v1678, 6
    %v1723 = vrot.slane %v605, 6
    %v1724 = vsel %vm1718, %v1722, %v1723
    %v1725 = vrot.slane %v606, 6
    %v1726 = vsel %vm1718, %v1720, %v1725
    %v1727 = vrot.slane %v607, 6
    %v1728 = vsel %vm1718, %v1723, %v1727
    %v1729 = vrot.slane %v608, 6
    %v1730 = vsel %vm1718, %v1725, %v1729
    %v1731 = vrot.slane %v609, 6
    %v1732 = vsel %vm1718, %v1727, %v1731
    %v1733 = vrot.slane %v1679, 6
    %v1734 = vsel %vm1718, %v1729, %v1733
    %v1735 = vrot.slane %v1680, 6
    %v1736 = vsel %vm1718, %v1731, %v1735
    %v1779 = vunpack.c.l.b16 %v1682
    %v1780 = vunpack.c.l.b16 %v1683
    %v1781 = vunpack.c.l.b16 %v1684
    %v1782 = vunpack.c.l.b16 %v1685
    %v1783 = vunpack.c.l.b16 %v1686
    %v1784 = vunpack.c.l.b16 %v1687
    %v1785 = vunpack.c.l.b16 %v1688
    %v1786 = vunpack.c.l.b16 %v1689
    %v1787 = vunpack.c.l.b16 %v1690
    %v1788 = vunpack.c.l.b16 %v1691
    %v1789 = vunpack.c.l.b16 %v1692
    %v1790 = vunpack.c.l.b16 %v1693
    %v1791 = vunpack.c.l.b16 %v1694
    %v1792 = vunpack.c.l.b16 %v1695
    %v1793 = vunpack.c.l.b16 %v1696
    %v1794 = vunpack.c.l.b16 %v1697
    %v1795 = vunpack.c.l.b16 %v1698
    %v1796 = vunpack.c.l.b16 %v1699
    %v1797 = vunpack.c.l.b16 %v1700
    %v1798 = vunpack.c.l.b16 %v1701
    %v1799 = vunpack.c.l.b16 %v1702
    %v1800 = vunpack.c.l.b16 %v1703
    %v1801 = vunpack.c.l.b16 %v1704
    %v1802 = vunpack.c.l.b16 %v1705
    %v1803 = vunpack.c.l.b16 %v1706
    %v1804 = vunpack.c.l.b16 %v1707
    %v1805 = vunpack.c.l.b16 %v1708
    %v1806 = vunpack.c.l.b16 %v1709
    %v1807 = vunpack.c.l.b16 %v1710
    %v1808 = vunpack.c.l.b16 %v1711
    %v1809 = vunpack.c.l.b16 %v1712
    %v1810 = vunpack.c.l.b16 %v1713
    %v1811 = vpack.c.b16 %v1780, %v1779
    %v1812 = vpack.c.b16 %v1782, %v1781
    %v1813 = vpack.c.b16 %v1784, %v1783
    %v1814 = vpack.c.b16 %v1786, %v1785
    %v1815 = vpack.c.b16 %v1788, %v1787
    %v1816 = vpack.c.b16 %v1790, %v1789
    %v1817 = vpack.c.b16 %v1792, %v1791
    %v1818 = vpack.c.b16 %v1794, %v1793
    %v1819 = vpack.c.b16 %v1796, %v1795
    %v1820 = vpack.c.b16 %v1798, %v1797
    %v1821 = vpack.c.b16 %v1800, %v1799
    %v1822 = vpack.c.b16 %v1802, %v1801
    %v1823 = vpack.c.b16 %v1804, %v1803
    %v1824 = vpack.c.b16 %v1806, %v1805
    %v1825 = vpack.c.b16 %v1808, %v1807
    %v1826 = vpack.c.b16 %v1810, %v1809
    %1843 = vmatprep.subr.bf16.mxu0 0
    %1844 = vmatpush1.bf16.msra.mxu0 %v1811
    %1845 = vmatprep.subr.bf16.mxu0 0
    %1846 = vmatpush1.bf16.msra.mxu0 %v1812
    %1847 = vmatprep.subr.bf16.mxu0 0
    %1848 = vmatpush1.bf16.msra.mxu0 %v1813
    %1849 = vmatprep.subr.bf16.mxu0 0
    %1850 = vmatpush1.bf16.msra.mxu0 %v1814
    %1851 = vmatprep.subr.bf16.mxu0 0
    %1852 = vmatpush1.bf16.msra.mxu0 %v1815
    %1853 = vmatprep.subr.bf16.mxu0 0
    %1854 = vmatpush1.bf16.msra.mxu0 %v1816
    %1855 = vmatprep.subr.bf16.mxu0 0
    %1856 = vmatpush1.bf16.msra.mxu0 %v1817
    %1857 = vmatprep.subr.bf16.mxu0 0
    %1858 = vmatpush1.bf16.msra.mxu0 %v1818
    %1859 = vmatprep.subr.bf16.mxu0 0
    %1860 = vmatpush1.bf16.msra.mxu0 %v1819
    %1861 = vmatprep.subr.bf16.mxu0 0
    %1862 = vmatpush1.bf16.msra.mxu0 %v1820
    %1863 = vmatprep.subr.bf16.mxu0 0
    %1864 = vmatpush1.bf16.msra.mxu0 %v1821
    %1865 = vmatprep.subr.bf16.mxu0 0
    %1866 = vmatpush1.bf16.msra.mxu0 %v1822
    %1867 = vmatprep.subr.bf16.mxu0 0
    %1868 = vmatpush1.bf16.msra.mxu0 %v1823
    %1869 = vmatprep.subr.bf16.mxu0 0
    %1870 = vmatpush1.bf16.msra.mxu0 %v1824
    %1871 = vmatprep.subr.bf16.mxu0 0
    %1872 = vmatpush1.bf16.msra.mxu0 %v1825
    %1873 = vmatprep.subr.bf16.mxu0 0
    %1874 = vmatpush1.bf16.msra.mxu0 %v1826
    %1875 = vmatprep.mubr.bf16.mxu0 %v1724
    %1876 = vmatmul.mubr.bf16.gmra.mrb[0].mxu0 %v1721
    %v1877 = vpop.f32.mrb[0].mxu0
    %v1878 = vadd.f32 0.0, %v1877
    %v1879 = vpop.f32.mrb[0].mxu0
    %v1880 = vpop.f32.mrb[0].mxu0
    %v1881 = vadd.f32 0.0, %v1880
    %v1882 = vpop.f32.mrb[0].mxu0
    %1883 = vmatprep.mubr.bf16.mxu0 %v1728
    %1884 = vmatmul.mubr.bf16.gmra.mrb[0].mxu0 %v1726
    %v1885 = vpop.f32.mrb[0].mxu0
    %v1886 = vadd.f32 0.0, %v1885
    %v1887 = vpop.f32.mrb[0].mxu0
    %v1888 = vpop.f32.mrb[0].mxu0
    %v1889 = vadd.f32 0.0, %v1888
    %v1890 = vpop.f32.mrb[0].mxu0
    %1891 = vmatprep.mubr.bf16.mxu0 %v1732
    %1892 = vmatmul.mubr.bf16.gmra.mrb[0].mxu0 %v1730
    %v1893 = vpop.f32.mrb[0].mxu0
    %v1894 = vadd.f32 0.0, %v1893
    %v1895 = vpop.f32.mrb[0].mxu0
    %v1896 = vpop.f32.mrb[0].mxu0
    %v1897 = vadd.f32 0.0, %v1896
    %v1898 = vpop.f32.mrb[0].mxu0
    %1899 = vmatprep.mubr.bf16.mxu0 %v1736
    %1900 = vmatmul.mubr.bf16.gmra.mrb[0].mxu0 %v1734
    %v1901 = vpop.f32.mrb[0].mxu0
    %v1902 = vadd.f32 0.0, %v1901
    %v1903 = vpop.f32.mrb[0].mxu0
    %v1904 = vpop.f32.mrb[0].mxu0
    %v1905 = vadd.f32 0.0, %v1904
    %v1906 = vpop.f32.mrb[0].mxu0
    %1907 = vmatprep.mubr.bf16.mxu0 %v1735
    %1908 = vmatmul.mubr.bf16.gmra.mrb[0].mxu0 %v1733
    %v1909 = vpop.f32.mrb[0].mxu0
    %v1910 = vadd.f32 0.0, %v1909
    %v1911 = vpop.f32.mrb[0].mxu0
    %v1912 = vpop.f32.mrb[0].mxu0
    %v1913 = vpop.f32.mrb[0].mxu0
    %1914 = vdwg.mxu0
    %v1915 = vadd.f32 %v1668, %v1878
    %v1916 = vadd.f32 %v1669, %v1881
    %v1917 = vadd.f32 %v1670, %v1886
    %v1918 = vadd.f32 %v1671, %v1889
    %v1919 = vadd.f32 %v1672, %v1894
    %v1920 = vadd.f32 %v1673, %v1897
    %v1921 = vadd.f32 %v1674, %v1902
    %v1922 = vadd.f32 %v1675, %v1905
    %v1923 = vadd.f32 %v1676, %v1910
    %s1924 = scalar_lea.vmem %s3, 640
    %v1925 = vld [vmem:[%s1924] sm:$0xf]
    %v1926 = vld [vmem:[%s1924 + $0x4] sm:$0xf]
    %v1927 = vld [vmem:[%s1924 + $0x8] sm:$0xf]
    %v1928 = vld [vmem:[%s1924 + $0xc] sm:$0xf]
    %v1929 = vld [vmem:[%s1924 + $0x10] sm:$0xf]
    %v1930 = vld [vmem:[%s1924 + $0x14] sm:$0xf]
    %v1931 = vld [vmem:[%s1924 + $0x18] sm:$0xf]
    %v1932 = vld [vmem:[%s1924 + $0x1c] sm:$0xf]
    %v1933 = vld [vmem:[%s1924 + $0x20] sm:$0xf]
    %v1934 = vld [vmem:[%s1924 + $0x24] sm:$0xf]
    %v1935 = vld [vmem:[%s1924 + $0x28] sm:$0xf]
    %v1936 = vld [vmem:[%s1924 + $0x2c] sm:$0xf]
    %v1937 = vld [vmem:[%s1924 + $0x30] sm:$0xf]
    %v1938 = vld [vmem:[%s1924 + $0x34] sm:$0xf]
    %v1939 = vld [vmem:[%s1924 + $0x38] sm:$0xf]
    %v1940 = vld [vmem:[%s1924 + $0x3c] sm:$0xf]
    %v1941 = vld [vmem:[%s1924 + $0x40] sm:$0xf]
    %v1942 = vld [vmem:[%s1924 + $0x44] sm:$0xf]
    %v1943 = vld [vmem:[%s1924 + $0x48] sm:$0xf]
    %v1944 = vld [vmem:[%s1924 + $0x4c] sm:$0xf]
    %v1945 = vld [vmem:[%s1924 + $0x50] sm:$0xf]
    %v1946 = vld [vmem:[%s1924 + $0x54] sm:$0xf]
    %v1947 = vld [vmem:[%s1924 + $0x58] sm:$0xf]
    %v1948 = vld [vmem:[%s1924 + $0x5c] sm:$0xf]
    %v1949 = vld [vmem:[%s1924 + $0x60] sm:$0xf]
    %v1950 = vld [vmem:[%s1924 + $0x64] sm:$0xf]
    %v1951 = vld [vmem:[%s1924 + $0x68] sm:$0xf]
    %v1952 = vld [vmem:[%s1924 + $0x6c] sm:$0xf]
    %v1953 = vld [vmem:[%s1924 + $0x70] sm:$0xf]
    %v1954 = vld [vmem:[%s1924 + $0x74] sm:$0xf]
    %v1955 = vld [vmem:[%s1924 + $0x78] sm:$0xf]
    %v1956 = vld [vmem:[%s1924 + $0x7c] sm:$0xf]
    %vm1957 = vsmask.f32 1280
    %v1959 = vshrl.u32 %v1677, 16
    %v1961 = vrot.slane %v1959, 6
    %v1962 = vshll.u32 %v1677, 16
    %v1964 = vrot.slane %v1962, 7
    %v1965 = vor.u32 %v1961, %v1964
    %v1966 = vrot.slane %v687, 6
    %v1967 = vrot.slane %v690, 7
    %v1968 = vor.u32 %v1966, %v1967
    %v1969 = vsel %vm1957, %v1965, %v1968
    %v1971 = vshrl.u32 %v1678, 16
    %v1973 = vrot.slane %v1971, 6
    %v1974 = vshll.u32 %v1678, 16
    %v1976 = vrot.slane %v1974, 7
    %v1977 = vor.u32 %v1973, %v1976
    %v1978 = vrot.slane %v704, 6
    %v1979 = vrot.slane %v707, 7
    %v1980 = vor.u32 %v1978, %v1979
    %v1981 = vsel %vm1957, %v1977, %v1980
    %v1982 = vrot.slane %v713, 6
    %v1983 = vrot.slane %v716, 7
    %v1984 = vor.u32 %v1982, %v1983
    %v1985 = vsel %vm1957, %v1968, %v1984
    %v1986 = vrot.slane %v722, 6
    %v1987 = vrot.slane %v725, 7
    %v1988 = vor.u32 %v1986, %v1987
    %v1989 = vsel %vm1957, %v1980, %v1988
    %v1990 = vrot.slane %v731, 6
    %v1991 = vrot.slane %v734, 7
    %v1992 = vor.u32 %v1990, %v1991
    %v1993 = vsel %vm1957, %v1984, %v1992
    %v1994 = vrot.slane %v740, 6
    %v1995 = vrot.slane %v743, 7
    %v1996 = vor.u32 %v1994, %v1995
    %v1997 = vsel %vm1957, %v1988, %v1996
    %v1999 = vshrl.u32 %v1679, 16
    %v2001 = vrot.slane %v1999, 6
    %v2002 = vshll.u32 %v1679, 16
    %v2004 = vrot.slane %v2002, 7
    %v2005 = vor.u32 %v2001, %v2004
    %v2006 = vsel %vm1957, %v1992, %v2005
    %v2008 = vshrl.u32 %v1680, 16
    %v2010 = vrot.slane %v2008, 6
    %v2011 = vshll.u32 %v1680, 16
    %v2013 = vrot.slane %v2011, 7
    %v2014 = vor.u32 %v2010, %v2013
    %v2015 = vsel %vm1957, %v1996, %v2014
    %v2058 = vunpack.c.l.b16 %v1925
    %v2059 = vunpack.c.l.b16 %v1926
    %v2060 = vunpack.c.l.b16 %v1927
    %v2061 = vunpack.c.l.b16 %v1928
    %v2062 = vunpack.c.l.b16 %v1929
    %v2063 = vunpack.c.l.b16 %v1930
    %v2064 = vunpack.c.l.b16 %v1931
    %v2065 = vunpack.c.l.b16 %v1932
    %v2066 = vunpack.c.l.b16 %v1933
    %v2067 = vunpack.c.l.b16 %v1934
    %v2068 = vunpack.c.l.b16 %v1935
    %v2069 = vunpack.c.l.b16 %v1936
    %v2070 = vunpack.c.l.b16 %v1937
    %v2071 = vunpack.c.l.b16 %v1938
    %v2072 = vunpack.c.l.b16 %v1939
    %v2073 = vunpack.c.l.b16 %v1940
    %v2074 = vunpack.c.l.b16 %v1941
    %v2075 = vunpack.c.l.b16 %v1942
    %v2076 = vunpack.c.l.b16 %v1943
    %v2077 = vunpack.c.l.b16 %v1944
    %v2078 = vunpack.c.l.b16 %v1945
    %v2079 = vunpack.c.l.b16 %v1946
    %v2080 = vunpack.c.l.b16 %v1947
    %v2081 = vunpack.c.l.b16 %v1948
    %v2082 = vunpack.c.l.b16 %v1949
    %v2083 = vunpack.c.l.b16 %v1950
    %v2084 = vunpack.c.l.b16 %v1951
    %v2085 = vunpack.c.l.b16 %v1952
    %v2086 = vunpack.c.l.b16 %v1953
    %v2087 = vunpack.c.l.b16 %v1954
    %v2088 = vunpack.c.l.b16 %v1955
    %v2089 = vunpack.c.l.b16 %v1956
    %v2090 = vpack.c.b16 %v2059, %v2058
    %v2091 = vpack.c.b16 %v2061, %v2060
    %v2092 = vpack.c.b16 %v2063, %v2062
    %v2093 = vpack.c.b16 %v2065, %v2064
    %v2094 = vpack.c.b16 %v2067, %v2066
    %v2095 = vpack.c.b16 %v2069, %v2068
    %v2096 = vpack.c.b16 %v2071, %v2070
    %v2097 = vpack.c.b16 %v2073, %v2072
    %v2098 = vpack.c.b16 %v2075, %v2074
    %v2099 = vpack.c.b16 %v2077, %v2076
    %v2100 = vpack.c.b16 %v2079, %v2078
    %v2101 = vpack.c.b16 %v2081, %v2080
    %v2102 = vpack.c.b16 %v2083, %v2082
    %v2103 = vpack.c.b16 %v2085, %v2084
    %v2104 = vpack.c.b16 %v2087, %v2086
    %v2105 = vpack.c.b16 %v2089, %v2088
    %2122 = vmatprep.subr.bf16.mxu0 0
    %2123 = vmatpush1.bf16.msra.mxu0 %v2090
    %2124 = vmatprep.subr.bf16.mxu0 0
    %2125 = vmatpush1.bf16.msra.mxu0 %v2091
    %2126 = vmatprep.subr.bf16.mxu0 0
    %2127 = vmatpush1.bf16.msra.mxu0 %v2092
    %2128 = vmatprep.subr.bf16.mxu0 0
    %2129 = vmatpush1.bf16.msra.mxu0 %v2093
    %2130 = vmatprep.subr.bf16.mxu0 0
    %2131 = vmatpush1.bf16.msra.mxu0 %v2094
    %2132 = vmatprep.subr.bf16.mxu0 0
    %2133 = vmatpush1.bf16.msra.mxu0 %v2095
    %2134 = vmatprep.subr.bf16.mxu0 0
    %2135 = vmatpush1.bf16.msra.mxu0 %v2096
    %2136 = vmatprep.subr.bf16.mxu0 0
    %2137 = vmatpush1.bf16.msra.mxu0 %v2097
    %2138 = vmatprep.subr.bf16.mxu0 0
    %2139 = vmatpush1.bf16.msra.mxu0 %v2098
    %2140 = vmatprep.subr.bf16.mxu0 0
    %2141 = vmatpush1.bf16.msra.mxu0 %v2099
    %2142 = vmatprep.subr.bf16.mxu0 0
    %2143 = vmatpush1.bf16.msra.mxu0 %v2100
    %2144 = vmatprep.subr.bf16.mxu0 0
    %2145 = vmatpush1.bf16.msra.mxu0 %v2101
    %2146 = vmatprep.subr.bf16.mxu0 0
    %2147 = vmatpush1.bf16.msra.mxu0 %v2102
    %2148 = vmatprep.subr.bf16.mxu0 0
    %2149 = vmatpush1.bf16.msra.mxu0 %v2103
    %2150 = vmatprep.subr.bf16.mxu0 0
    %2151 = vmatpush1.bf16.msra.mxu0 %v2104
    %2152 = vmatprep.subr.bf16.mxu0 0
    %2153 = vmatpush1.bf16.msra.mxu0 %v2105
    %2154 = vmatprep.mubr.bf16.mxu0 %v1981
    %2155 = vmatmul.mubr.bf16.gmra.mrb[0].mxu0 %v1969
    %v2156 = vpop.f32.mrb[0].mxu0
    %v2157 = vadd.f32 0.0, %v2156
    %v2158 = vpop.f32.mrb[0].mxu0
    %v2159 = vpop.f32.mrb[0].mxu0
    %v2160 = vadd.f32 0.0, %v2159
    %v2161 = vpop.f32.mrb[0].mxu0
    %2162 = vmatprep.mubr.bf16.mxu0 %v1989
    %2163 = vmatmul.mubr.bf16.gmra.mrb[0].mxu0 %v1985
    %v2164 = vpop.f32.mrb[0].mxu0
    %v2165 = vadd.f32 0.0, %v2164
    %v2166 = vpop.f32.mrb[0].mxu0
    %v2167 = vpop.f32.mrb[0].mxu0
    %v2168 = vadd.f32 0.0, %v2167
    %v2169 = vpop.f32.mrb[0].mxu0
    %2170 = vmatprep.mubr.bf16.mxu0 %v1997
    %2171 = vmatmul.mubr.bf16.gmra.mrb[0].mxu0 %v1993
    %v2172 = vpop.f32.mrb[0].mxu0
    %v2173 = vadd.f32 0.0, %v2172
    %v2174 = vpop.f32.mrb[0].mxu0
    %v2175 = vpop.f32.mrb[0].mxu0
    %v2176 = vadd.f32 0.0, %v2175
    %v2177 = vpop.f32.mrb[0].mxu0
    %2178 = vmatprep.mubr.bf16.mxu0 %v2015
    %2179 = vmatmul.mubr.bf16.gmra.mrb[0].mxu0 %v2006
    %v2180 = vpop.f32.mrb[0].mxu0
    %v2181 = vadd.f32 0.0, %v2180
    %v2182 = vpop.f32.mrb[0].mxu0
    %v2183 = vpop.f32.mrb[0].mxu0
    %v2184 = vadd.f32 0.0, %v2183
    %v2185 = vpop.f32.mrb[0].mxu0
    %2186 = vmatprep.mubr.bf16.mxu0 %v2010
    %2187 = vmatmul.mubr.bf16.gmra.mrb[0].mxu0 %v2001
    %v2188 = vpop.f32.mrb[0].mxu0
    %v2189 = vadd.f32 0.0, %v2188
    %v2190 = vpop.f32.mrb[0].mxu0
    %v2191 = vpop.f32.mrb[0].mxu0
    %v2192 = vpop.f32.mrb[0].mxu0
    %2193 = vdwg.mxu0
    %v2194 = vadd.f32 %v1915, %v2157
    %v2195 = vadd.f32 %v1916, %v2160
    %v2196 = vadd.f32 %v1917, %v2165
    %v2197 = vadd.f32 %v1918, %v2168
    %v2198 = vadd.f32 %v1919, %v2173
    %v2199 = vadd.f32 %v1920, %v2176
    %v2200 = vadd.f32 %v1921, %v2181
    %v2201 = vadd.f32 %v1922, %v2184
    %v2202 = vadd.f32 %v1923, %v2189
    %v2203 = vld [vmem:[#allocation2] sm:$0x80]
    %v2204 = vld [vmem:[#allocation2 + $0x8] sm:$0x80]
    %v2205 = vld [vmem:[#allocation2 + $0x40] sm:$0xff]
    %v2206 = vld [vmem:[#allocation2 + $0x48] sm:$0xff]
    %s2207 = scalar_lea.vmem %s3, 768
    %v2208 = vld [vmem:[%s2207] sm:$0xf]
    %v2209 = vld [vmem:[%s2207 + $0x4] sm:$0xf]
    %v2210 = vld [vmem:[%s2207 + $0x8] sm:$0xf]
    %v2211 = vld [vmem:[%s2207 + $0xc] sm:$0xf]
    %v2212 = vld [vmem:[%s2207 + $0x10] sm:$0xf]
    %v2213 = vld [vmem:[%s2207 + $0x14] sm:$0xf]
    %v2214 = vld [vmem:[%s2207 + $0x18] sm:$0xf]
    %v2215 = vld [vmem:[%s2207 + $0x1c] sm:$0xf]
    %v2216 = vld [vmem:[%s2207 + $0x20] sm:$0xf]
    %v2217 = vld [vmem:[%s2207 + $0x24] sm:$0xf]
    %v2218 = vld [vmem:[%s2207 + $0x28] sm:$0xf]
    %v2219 = vld [vmem:[%s2207 + $0x2c] sm:$0xf]
    %v2220 = vld [vmem:[%s2207 + $0x30] sm:$0xf]
    %v2221 = vld [vmem:[%s2207 + $0x34] sm:$0xf]
    %v2222 = vld [vmem:[%s2207 + $0x38] sm:$0xf]
    %v2223 = vld [vmem:[%s2207 + $0x3c] sm:$0xf]
    %v2224 = vld [vmem:[%s2207 + $0x40] sm:$0xf]
    %v2225 = vld [vmem:[%s2207 + $0x44] sm:$0xf]
    %v2226 = vld [vmem:[%s2207 + $0x48] sm:$0xf]
    %v2227 = vld [vmem:[%s2207 + $0x4c] sm:$0xf]
    %v2228 = vld [vmem:[%s2207 + $0x50] sm:$0xf]
    %v2229 = vld [vmem:[%s2207 + $0x54] sm:$0xf]
    %v2230 = vld [vmem:[%s2207 + $0x58] sm:$0xf]
    %v2231 = vld [vmem:[%s2207 + $0x5c] sm:$0xf]
    %v2232 = vld [vmem:[%s2207 + $0x60] sm:$0xf]
    %v2233 = vld [vmem:[%s2207 + $0x64] sm:$0xf]
    %v2234 = vld [vmem:[%s2207 + $0x68] sm:$0xf]
    %v2235 = vld [vmem:[%s2207 + $0x6c] sm:$0xf]
    %v2236 = vld [vmem:[%s2207 + $0x70] sm:$0xf]
    %v2237 = vld [vmem:[%s2207 + $0x74] sm:$0xf]
    %v2238 = vld [vmem:[%s2207 + $0x78] sm:$0xf]
    %v2239 = vld [vmem:[%s2207 + $0x7c] sm:$0xf]
    %vm2244 = vcmask 1040384
    %v2245 = vrot.slane %v2203, 7
    %v2246 = vrot.slane %v604, 7
    %v2247 = vsel %vm2244, %v2245, %v2246
    %v2248 = vrot.slane %v2204, 7
    %v2249 = vrot.slane %v605, 7
    %v2250 = vsel %vm2244, %v2248, %v2249
    %v2251 = vrot.slane %v606, 7
    %v2252 = vsel %vm2244, %v2246, %v2251
    %v2253 = vrot.slane %v607, 7
    %v2254 = vsel %vm2244, %v2249, %v2253
    %v2255 = vrot.slane %v608, 7
    %v2256 = vsel %vm2244, %v2251, %v2255
    %v2257 = vrot.slane %v609, 7
    %v2258 = vsel %vm2244, %v2253, %v2257
    %v2259 = vrot.slane %v2205, 7
    %v2260 = vsel %vm2244, %v2255, %v2259
    %v2261 = vrot.slane %v2206, 7
    %v2262 = vsel %vm2244, %v2257, %v2261
    %v2305 = vunpack.c.l.b16 %v2208
    %v2306 = vunpack.c.l.b16 %v2209
    %v2307 = vunpack.c.l.b16 %v2210
    %v2308 = vunpack.c.l.b16 %v2211
    %v2309 = vunpack.c.l.b16 %v2212
    %v2310 = vunpack.c.l.b16 %v2213
    %v2311 = vunpack.c.l.b16 %v2214
    %v2312 = vunpack.c.l.b16 %v2215
    %v2313 = vunpack.c.l.b16 %v2216
    %v2314 = vunpack.c.l.b16 %v2217
    %v2315 = vunpack.c.l.b16 %v2218
    %v2316 = vunpack.c.l.b16 %v2219
    %v2317 = vunpack.c.l.b16 %v2220
    %v2318 = vunpack.c.l.b16 %v2221
    %v2319 = vunpack.c.l.b16 %v2222
    %v2320 = vunpack.c.l.b16 %v2223
    %v2321 = vunpack.c.l.b16 %v2224
    %v2322 = vunpack.c.l.b16 %v2225
    %v2323 = vunpack.c.l.b16 %v2226
    %v2324 = vunpack.c.l.b16 %v2227
    %v2325 = vunpack.c.l.b16 %v2228
    %v2326 = vunpack.c.l.b16 %v2229
    %v2327 = vunpack.c.l.b16 %v2230
    %v2328 = vunpack.c.l.b16 %v2231
    %v2329 = vunpack.c.l.b16 %v2232
    %v2330 = vunpack.c.l.b16 %v2233
    %v2331 = vunpack.c.l.b16 %v2234
    %v2332 = vunpack.c.l.b16 %v2235
    %v2333 = vunpack.c.l.b16 %v2236
    %v2334 = vunpack.c.l.b16 %v2237
    %v2335 = vunpack.c.l.b16 %v2238
    %v2336 = vunpack.c.l.b16 %v2239
    %v2337 = vpack.c.b16 %v2306, %v2305
    %v2338 = vpack.c.b16 %v2308, %v2307
    %v2339 = vpack.c.b16 %v2310, %v2309
    %v2340 = vpack.c.b16 %v2312, %v2311
    %v2341 = vpack.c.b16 %v2314, %v2313
    %v2342 = vpack.c.b16 %v2316, %v2315
    %v2343 = vpack.c.b16 %v2318, %v2317
    %v2344 = vpack.c.b16 %v2320, %v2319
    %v2345 = vpack.c.b16 %v2322, %v2321
    %v2346 = vpack.c.b16 %v2324, %v2323
    %v2347 = vpack.c.b16 %v2326, %v2325
    %v2348 = vpack.c.b16 %v2328, %v2327
    %v2349 = vpack.c.b16 %v2330, %v2329
    %v2350 = vpack.c.b16 %v2332, %v2331
    %v2351 = vpack.c.b16 %v2334, %v2333
    %v2352 = vpack.c.b16 %v2336, %v2335
    %2369 = vmatprep.subr.bf16.mxu0 0
    %2370 = vmatpush1.bf16.msra.mxu0 %v2337
    %2371 = vmatprep.subr.bf16.mxu0 0
    %2372 = vmatpush1.bf16.msra.mxu0 %v2338
    %2373 = vmatprep.subr.bf16.mxu0 0
    %2374 = vmatpush1.bf16.msra.mxu0 %v2339
    %2375 = vmatprep.subr.bf16.mxu0 0
    %2376 = vmatpush1.bf16.msra.mxu0 %v2340
    %2377 = vmatprep.subr.bf16.mxu0 0
    %2378 = vmatpush1.bf16.msra.mxu0 %v2341
    %2379 = vmatprep.subr.bf16.mxu0 0
    %2380 = vmatpush1.bf16.msra.mxu0 %v2342
    %2381 = vmatprep.subr.bf16.mxu0 0
    %2382 = vmatpush1.bf16.msra.mxu0 %v2343
    %2383 = vmatprep.subr.bf16.mxu0 0
    %2384 = vmatpush1.bf16.msra.mxu0 %v2344
    %2385 = vmatprep.subr.bf16.mxu0 0
    %2386 = vmatpush1.bf16.msra.mxu0 %v2345
    %2387 = vmatprep.subr.bf16.mxu0 0
    %2388 = vmatpush1.bf16.msra.mxu0 %v2346
    %2389 = vmatprep.subr.bf16.mxu0 0
    %2390 = vmatpush1.bf16.msra.mxu0 %v2347
    %2391 = vmatprep.subr.bf16.mxu0 0
    %2392 = vmatpush1.bf16.msra.mxu0 %v2348
    %2393 = vmatprep.subr.bf16.mxu0 0
    %2394 = vmatpush1.bf16.msra.mxu0 %v2349
    %2395 = vmatprep.subr.bf16.mxu0 0
    %2396 = vmatpush1.bf16.msra.mxu0 %v2350
    %2397 = vmatprep.subr.bf16.mxu0 0
    %2398 = vmatpush1.bf16.msra.mxu0 %v2351
    %2399 = vmatprep.subr.bf16.mxu0 0
    %2400 = vmatpush1.bf16.msra.mxu0 %v2352
    %2401 = vmatprep.mubr.bf16.mxu0 %v2250
    %2402 = vmatmul.mubr.bf16.gmra.mrb[0].mxu0 %v2247
    %v2403 = vpop.f32.mrb[0].mxu0
    %v2404 = vadd.f32 0.0, %v2403
    %v2405 = vpop.f32.mrb[0].mxu0
    %v2406 = vpop.f32.mrb[0].mxu0
    %v2407 = vadd.f32 0.0, %v2406
    %v2408 = vpop.f32.mrb[0].mxu0
    %2409 = vmatprep.mubr.bf16.mxu0 %v2254
    %2410 = vmatmul.mubr.bf16.gmra.mrb[0].mxu0 %v2252
    %v2411 = vpop.f32.mrb[0].mxu0
    %v2412 = vadd.f32 0.0, %v2411
    %v2413 = vpop.f32.mrb[0].mxu0
    %v2414 = vpop.f32.mrb[0].mxu0
    %v2415 = vadd.f32 0.0, %v2414
    %v2416 = vpop.f32.mrb[0].mxu0
    %2417 = vmatprep.mubr.bf16.mxu0 %v2258
    %2418 = vmatmul.mubr.bf16.gmra.mrb[0].mxu0 %v2256
    %v2419 = vpop.f32.mrb[0].mxu0
    %v2420 = vadd.f32 0.0, %v2419
    %v2421 = vpop.f32.mrb[0].mxu0
    %v2422 = vpop.f32.mrb[0].mxu0
    %v2423 = vadd.f32 0.0, %v2422
    %v2424 = vpop.f32.mrb[0].mxu0
    %2425 = vmatprep.mubr.bf16.mxu0 %v2262
    %2426 = vmatmul.mubr.bf16.gmra.mrb[0].mxu0 %v2260
    %v2427 = vpop.f32.mrb[0].mxu0
    %v2428 = vadd.f32 0.0, %v2427
    %v2429 = vpop.f32.mrb[0].mxu0
    %v2430 = vpop.f32.mrb[0].mxu0
    %v2431 = vadd.f32 0.0, %v2430
    %v2432 = vpop.f32.mrb[0].mxu0
    %2433 = vmatprep.mubr.bf16.mxu0 %v2261
    %2434 = vmatmul.mubr.bf16.gmra.mrb[0].mxu0 %v2259
    %v2435 = vpop.f32.mrb[0].mxu0
    %v2436 = vadd.f32 0.0, %v2435
    %v2437 = vpop.f32.mrb[0].mxu0
    %v2438 = vpop.f32.mrb[0].mxu0
    %v2439 = vpop.f32.mrb[0].mxu0
    %2440 = vdwg.mxu0
    %v2441 = vadd.f32 %v2194, %v2404
    %v2442 = vadd.f32 %v2195, %v2407
    %v2443 = vadd.f32 %v2196, %v2412
    %v2444 = vadd.f32 %v2197, %v2415
    %v2445 = vadd.f32 %v2198, %v2420
    %v2446 = vadd.f32 %v2199, %v2423
    %v2447 = vadd.f32 %v2200, %v2428
    %v2448 = vadd.f32 %v2201, %v2431
    %v2449 = vadd.f32 %v2202, %v2436
    %s2450 = scalar_lea.vmem %s3, 896
    %v2451 = vld [vmem:[%s2450] sm:$0xf]
    %v2452 = vld [vmem:[%s2450 + $0x4] sm:$0xf]
    %v2453 = vld [vmem:[%s2450 + $0x8] sm:$0xf]
    %v2454 = vld [vmem:[%s2450 + $0xc] sm:$0xf]
    %v2455 = vld [vmem:[%s2450 + $0x10] sm:$0xf]
    %v2456 = vld [vmem:[%s2450 + $0x14] sm:$0xf]
    %v2457 = vld [vmem:[%s2450 + $0x18] sm:$0xf]
    %v2458 = vld [vmem:[%s2450 + $0x1c] sm:$0xf]
    %v2459 = vld [vmem:[%s2450 + $0x20] sm:$0xf]
    %v2460 = vld [vmem:[%s2450 + $0x24] sm:$0xf]
    %v2461 = vld [vmem:[%s2450 + $0x28] sm:$0xf]
    %v2462 = vld [vmem:[%s2450 + $0x2c] sm:$0xf]
    %v2463 = vld [vmem:[%s2450 + $0x30] sm:$0xf]
    %v2464 = vld [vmem:[%s2450 + $0x34] sm:$0xf]
    %v2465 = vld [vmem:[%s2450 + $0x38] sm:$0xf]
    %v2466 = vld [vmem:[%s2450 + $0x3c] sm:$0xf]
    %v2467 = vld [vmem:[%s2450 + $0x40] sm:$0xf]
    %v2468 = vld [vmem:[%s2450 + $0x44] sm:$0xf]
    %v2469 = vld [vmem:[%s2450 + $0x48] sm:$0xf]
    %v2470 = vld [vmem:[%s2450 + $0x4c] sm:$0xf]
    %v2471 = vld [vmem:[%s2450 + $0x50] sm:$0xf]
    %v2472 = vld [vmem:[%s2450 + $0x54] sm:$0xf]
    %v2473 = vld [vmem:[%s2450 + $0x58] sm:$0xf]
    %v2474 = vld [vmem:[%s2450 + $0x5c] sm:$0xf]
    %v2475 = vld [vmem:[%s2450 + $0x60] sm:$0xf]
    %v2476 = vld [vmem:[%s2450 + $0x64] sm:$0xf]
    %v2477 = vld [vmem:[%s2450 + $0x68] sm:$0xf]
    %v2478 = vld [vmem:[%s2450 + $0x6c] sm:$0xf]
    %v2479 = vld [vmem:[%s2450 + $0x70] sm:$0xf]
    %v2480 = vld [vmem:[%s2450 + $0x74] sm:$0xf]
    %v2481 = vld [vmem:[%s2450 + $0x78] sm:$0xf]
    %v2482 = vld [vmem:[%s2450 + $0x7c] sm:$0xf]
    %vm2483 = vsmask.f32 256
    %v2485 = vshrl.u32 %v2203, 16
    %v2487 = vrot.slane %v2485, 7
    %v2488 = vrot.slane %v687, 7
    %v2489 = vor.u32 %v2488, %v690
    %v2490 = vsel %vm2483, %v2487, %v2489
    %v2492 = vshrl.u32 %v2204, 16
    %v2494 = vrot.slane %v2492, 7
    %v2495 = vrot.slane %v704, 7
    %v2496 = vor.u32 %v2495, %v707
    %v2497 = vsel %vm2483, %v2494, %v2496
    %v2498 = vrot.slane %v713, 7
    %v2499 = vor.u32 %v2498, %v716
    %v2500 = vsel %vm2483, %v2488, %v2499
    %v2501 = vrot.slane %v722, 7
    %v2502 = vor.u32 %v2501, %v725
    %v2503 = vsel %vm2483, %v2495, %v2502
    %v2504 = vrot.slane %v731, 7
    %v2505 = vor.u32 %v2504, %v734
    %v2506 = vsel %vm2483, %v2498, %v2505
    %v2507 = vrot.slane %v740, 7
    %v2508 = vor.u32 %v2507, %v743
    %v2509 = vsel %vm2483, %v2501, %v2508
    %v2511 = vshrl.u32 %v2205, 16
    %v2513 = vrot.slane %v2511, 7
    %v2514 = vshll.u32 %v2205, 16
    %v2516 = vor.u32 %v2513, %v2514
    %v2517 = vsel %vm2483, %v2504, %v2516
    %v2519 = vshrl.u32 %v2206, 16
    %v2521 = vrot.slane %v2519, 7
    %v2522 = vshll.u32 %v2206, 16
    %v2524 = vor.u32 %v2521, %v2522
    %v2525 = vsel %vm2483, %v2507, %v2524
    %v2568 = vunpack.c.l.b16 %v2451
    %v2569 = vunpack.c.l.b16 %v2452
    %v2570 = vunpack.c.l.b16 %v2453
    %v2571 = vunpack.c.l.b16 %v2454
    %v2572 = vunpack.c.l.b16 %v2455
    %v2573 = vunpack.c.l.b16 %v2456
    %v2574 = vunpack.c.l.b16 %v2457
    %v2575 = vunpack.c.l.b16 %v2458
    %v2576 = vunpack.c.l.b16 %v2459
    %v2577 = vunpack.c.l.b16 %v2460
    %v2578 = vunpack.c.l.b16 %v2461
    %v2579 = vunpack.c.l.b16 %v2462
    %v2580 = vunpack.c.l.b16 %v2463
    %v2581 = vunpack.c.l.b16 %v2464
    %v2582 = vunpack.c.l.b16 %v2465
    %v2583 = vunpack.c.l.b16 %v2466
    %v2584 = vunpack.c.l.b16 %v2467
    %v2585 = vunpack.c.l.b16 %v2468
    %v2586 = vunpack.c.l.b16 %v2469
    %v2587 = vunpack.c.l.b16 %v2470
    %v2588 = vunpack.c.l.b16 %v2471
    %v2589 = vunpack.c.l.b16 %v2472
    %v2590 = vunpack.c.l.b16 %v2473
    %v2591 = vunpack.c.l.b16 %v2474
    %v2592 = vunpack.c.l.b16 %v2475
    %v2593 = vunpack.c.l.b16 %v2476
    %v2594 = vunpack.c.l.b16 %v2477
    %v2595 = vunpack.c.l.b16 %v2478
    %v2596 = vunpack.c.l.b16 %v2479
    %v2597 = vunpack.c.l.b16 %v2480
    %v2598 = vunpack.c.l.b16 %v2481
    %v2599 = vunpack.c.l.b16 %v2482
    %v2600 = vpack.c.b16 %v2569, %v2568
    %v2601 = vpack.c.b16 %v2571, %v2570
    %v2602 = vpack.c.b16 %v2573, %v2572
    %v2603 = vpack.c.b16 %v2575, %v2574
    %v2604 = vpack.c.b16 %v2577, %v2576
    %v2605 = vpack.c.b16 %v2579, %v2578
    %v2606 = vpack.c.b16 %v2581, %v2580
    %v2607 = vpack.c.b16 %v2583, %v2582
    %v2608 = vpack.c.b16 %v2585, %v2584
    %v2609 = vpack.c.b16 %v2587, %v2586
    %v2610 = vpack.c.b16 %v2589, %v2588
    %v2611 = vpack.c.b16 %v2591, %v2590
    %v2612 = vpack.c.b16 %v2593, %v2592
    %v2613 = vpack.c.b16 %v2595, %v2594
    %v2614 = vpack.c.b16 %v2597, %v2596
    %v2615 = vpack.c.b16 %v2599, %v2598
    %2632 = vmatprep.subr.bf16.mxu0 0
    %2633 = vmatpush1.bf16.msra.mxu0 %v2600
    %2634 = vmatprep.subr.bf16.mxu0 0
    %2635 = vmatpush1.bf16.msra.mxu0 %v2601
    %2636 = vmatprep.subr.bf16.mxu0 0
    %2637 = vmatpush1.bf16.msra.mxu0 %v2602
    %2638 = vmatprep.subr.bf16.mxu0 0
    %2639 = vmatpush1.bf16.msra.mxu0 %v2603
    %2640 = vmatprep.subr.bf16.mxu0 0
    %2641 = vmatpush1.bf16.msra.mxu0 %v2604
    %2642 = vmatprep.subr.bf16.mxu0 0
    %2643 = vmatpush1.bf16.msra.mxu0 %v2605
    %2644 = vmatprep.subr.bf16.mxu0 0
    %2645 = vmatpush1.bf16.msra.mxu0 %v2606
    %2646 = vmatprep.subr.bf16.mxu0 0
    %2647 = vmatpush1.bf16.msra.mxu0 %v2607
    %2648 = vmatprep.subr.bf16.mxu0 0
    %2649 = vmatpush1.bf16.msra.mxu0 %v2608
    %2650 = vmatprep.subr.bf16.mxu0 0
    %2651 = vmatpush1.bf16.msra.mxu0 %v2609
    %2652 = vmatprep.subr.bf16.mxu0 0
    %2653 = vmatpush1.bf16.msra.mxu0 %v2610
    %2654 = vmatprep.subr.bf16.mxu0 0
    %2655 = vmatpush1.bf16.msra.mxu0 %v2611
    %2656 = vmatprep.subr.bf16.mxu0 0
    %2657 = vmatpush1.bf16.msra.mxu0 %v2612
    %2658 = vmatprep.subr.bf16.mxu0 0
    %2659 = vmatpush1.bf16.msra.mxu0 %v2613
    %2660 = vmatprep.subr.bf16.mxu0 0
    %2661 = vmatpush1.bf16.msra.mxu0 %v2614
    %2662 = vmatprep.subr.bf16.mxu0 0
    %2663 = vmatpush1.bf16.msra.mxu0 %v2615
    %2664 = vmatprep.mubr.bf16.mxu0 %v2497
    %2665 = vmatmul.mubr.bf16.gmra.mrb[0].mxu0 %v2490
    %v2666 = vpop.f32.mrb[0].mxu0
    %v2667 = vadd.f32 0.0, %v2666
    %v2668 = vpop.f32.mrb[0].mxu0
    %v2669 = vpop.f32.mrb[0].mxu0
    %v2670 = vadd.f32 0.0, %v2669
    %v2671 = vpop.f32.mrb[0].mxu0
    %2672 = vmatprep.mubr.bf16.mxu0 %v2503
    %2673 = vmatmul.mubr.bf16.gmra.mrb[0].mxu0 %v2500
    %v2674 = vpop.f32.mrb[0].mxu0
    %v2675 = vadd.f32 0.0, %v2674
    %v2676 = vpop.f32.mrb[0].mxu0
    %v2677 = vpop.f32.mrb[0].mxu0
    %v2678 = vadd.f32 0.0, %v2677
    %v2679 = vpop.f32.mrb[0].mxu0
    %2680 = vmatprep.mubr.bf16.mxu0 %v2509
    %2681 = vmatmul.mubr.bf16.gmra.mrb[0].mxu0 %v2506
    %v2682 = vpop.f32.mrb[0].mxu0
    %v2683 = vadd.f32 0.0, %v2682
    %v2684 = vpop.f32.mrb[0].mxu0
    %v2685 = vpop.f32.mrb[0].mxu0
    %v2686 = vadd.f32 0.0, %v2685
    %v2687 = vpop.f32.mrb[0].mxu0
    %2688 = vmatprep.mubr.bf16.mxu0 %v2525
    %2689 = vmatmul.mubr.bf16.gmra.mrb[0].mxu0 %v2517
    %v2690 = vpop.f32.mrb[0].mxu0
    %v2691 = vadd.f32 0.0, %v2690
    %v2692 = vpop.f32.mrb[0].mxu0
    %v2693 = vpop.f32.mrb[0].mxu0
    %v2694 = vadd.f32 0.0, %v2693
    %v2695 = vpop.f32.mrb[0].mxu0
    %2696 = vmatprep.mubr.bf16.mxu0 %v2521
    %2697 = vmatmul.mubr.bf16.gmra.mrb[0].mxu0 %v2513
    %v2698 = vpop.f32.mrb[0].mxu0
    %v2699 = vadd.f32 0.0, %v2698
    %v2700 = vpop.f32.mrb[0].mxu0
    %v2701 = vpop.f32.mrb[0].mxu0
    %v2702 = vpop.f32.mrb[0].mxu0
    %2703 = vdwg.mxu0
    %v2704 = vadd.f32 %v2441, %v2667
    %v2705 = vadd.f32 %v2442, %v2670
    %v2706 = vadd.f32 %v2443, %v2675
    %v2707 = vadd.f32 %v2444, %v2678
    %v2708 = vadd.f32 %v2445, %v2683
    %v2709 = vadd.f32 %v2446, %v2686
    %v2710 = vadd.f32 %v2447, %v2691
    %v2711 = vadd.f32 %v2448, %v2694
    %v2712 = vadd.f32 %v2449, %v2699
    %v2713 = vld [vmem:[#allocation2 + $0x10] sm:$0xff]
    %v2714 = vld [vmem:[#allocation2 + $0x18] sm:$0xff]
    %v2715 = vld [vmem:[#allocation2 + $0x20] sm:$0xff]
    %v2716 = vld [vmem:[#allocation2 + $0x28] sm:$0xff]
    %v2717 = vld [vmem:[#allocation2 + $0x30] sm:$0xff]
    %v2718 = vld [vmem:[#allocation2 + $0x38] sm:$0xff]
    %v2719 = vld [vmem:[#allocation2 + $0x40] sm:$0xff]
    %v2720 = vld [vmem:[#allocation2 + $0x48] sm:$0xff]
    %v2721 = vld [vmem:[#allocation2 + $0x50] sm:$0x1]
    %v2722 = vld [vmem:[#allocation2 + $0x58] sm:$0x1]
    %s2723 = scalar_lea.vmem %s3, 1024
    %v2724 = vld [vmem:[%s2723] sm:$0xf]
    %v2725 = vld [vmem:[%s2723 + $0x4] sm:$0xf]
    %v2726 = vld [vmem:[%s2723 + $0x8] sm:$0xf]
    %v2727 = vld [vmem:[%s2723 + $0xc] sm:$0xf]
    %v2728 = vld [vmem:[%s2723 + $0x10] sm:$0xf]
    %v2729 = vld [vmem:[%s2723 + $0x14] sm:$0xf]
    %v2730 = vld [vmem:[%s2723 + $0x18] sm:$0xf]
    %v2731 = vld [vmem:[%s2723 + $0x1c] sm:$0xf]
    %v2732 = vld [vmem:[%s2723 + $0x20] sm:$0xf]
    %v2733 = vld [vmem:[%s2723 + $0x24] sm:$0xf]
    %v2734 = vld [vmem:[%s2723 + $0x28] sm:$0xf]
    %v2735 = vld [vmem:[%s2723 + $0x2c] sm:$0xf]
    %v2736 = vld [vmem:[%s2723 + $0x30] sm:$0xf]
    %v2737 = vld [vmem:[%s2723 + $0x34] sm:$0xf]
    %v2738 = vld [vmem:[%s2723 + $0x38] sm:$0xf]
    %v2739 = vld [vmem:[%s2723 + $0x3c] sm:$0xf]
    %v2740 = vld [vmem:[%s2723 + $0x40] sm:$0xf]
    %v2741 = vld [vmem:[%s2723 + $0x44] sm:$0xf]
    %v2742 = vld [vmem:[%s2723 + $0x48] sm:$0xf]
    %v2743 = vld [vmem:[%s2723 + $0x4c] sm:$0xf]
    %v2744 = vld [vmem:[%s2723 + $0x50] sm:$0xf]
    %v2745 = vld [vmem:[%s2723 + $0x54] sm:$0xf]
    %v2746 = vld [vmem:[%s2723 + $0x58] sm:$0xf]
    %v2747 = vld [vmem:[%s2723 + $0x5c] sm:$0xf]
    %v2748 = vld [vmem:[%s2723 + $0x60] sm:$0xf]
    %v2749 = vld [vmem:[%s2723 + $0x64] sm:$0xf]
    %v2750 = vld [vmem:[%s2723 + $0x68] sm:$0xf]
    %v2751 = vld [vmem:[%s2723 + $0x6c] sm:$0xf]
    %v2752 = vld [vmem:[%s2723 + $0x70] sm:$0xf]
    %v2753 = vld [vmem:[%s2723 + $0x74] sm:$0xf]
    %v2754 = vld [vmem:[%s2723 + $0x78] sm:$0xf]
    %v2755 = vld [vmem:[%s2723 + $0x7c] sm:$0xf]
    %v2788 = vunpack.c.l.b16 %v2724
    %v2789 = vunpack.c.l.b16 %v2725
    %v2790 = vunpack.c.l.b16 %v2726
    %v2791 = vunpack.c.l.b16 %v2727
    %v2792 = vunpack.c.l.b16 %v2728
    %v2793 = vunpack.c.l.b16 %v2729
    %v2794 = vunpack.c.l.b16 %v2730
    %v2795 = vunpack.c.l.b16 %v2731
    %v2796 = vunpack.c.l.b16 %v2732
    %v2797 = vunpack.c.l.b16 %v2733
    %v2798 = vunpack.c.l.b16 %v2734
    %v2799 = vunpack.c.l.b16 %v2735
    %v2800 = vunpack.c.l.b16 %v2736
    %v2801 = vunpack.c.l.b16 %v2737
    %v2802 = vunpack.c.l.b16 %v2738
    %v2803 = vunpack.c.l.b16 %v2739
    %v2804 = vunpack.c.l.b16 %v2740
    %v2805 = vunpack.c.l.b16 %v2741
    %v2806 = vunpack.c.l.b16 %v2742
    %v2807 = vunpack.c.l.b16 %v2743
    %v2808 = vunpack.c.l.b16 %v2744
    %v2809 = vunpack.c.l.b16 %v2745
    %v2810 = vunpack.c.l.b16 %v2746
    %v2811 = vunpack.c.l.b16 %v2747
    %v2812 = vunpack.c.l.b16 %v2748
    %v2813 = vunpack.c.l.b16 %v2749
    %v2814 = vunpack.c.l.b16 %v2750
    %v2815 = vunpack.c.l.b16 %v2751
    %v2816 = vunpack.c.l.b16 %v2752
    %v2817 = vunpack.c.l.b16 %v2753
    %v2818 = vunpack.c.l.b16 %v2754
    %v2819 = vunpack.c.l.b16 %v2755
    %v2820 = vpack.c.b16 %v2789, %v2788
    %v2821 = vpack.c.b16 %v2791, %v2790
    %v2822 = vpack.c.b16 %v2793, %v2792
    %v2823 = vpack.c.b16 %v2795, %v2794
    %v2824 = vpack.c.b16 %v2797, %v2796
    %v2825 = vpack.c.b16 %v2799, %v2798
    %v2826 = vpack.c.b16 %v2801, %v2800
    %v2827 = vpack.c.b16 %v2803, %v2802
    %v2828 = vpack.c.b16 %v2805, %v2804
    %v2829 = vpack.c.b16 %v2807, %v2806
    %v2830 = vpack.c.b16 %v2809, %v2808
    %v2831 = vpack.c.b16 %v2811, %v2810
    %v2832 = vpack.c.b16 %v2813, %v2812
    %v2833 = vpack.c.b16 %v2815, %v2814
    %v2834 = vpack.c.b16 %v2817, %v2816
    %v2835 = vpack.c.b16 %v2819, %v2818
    %2852 = vmatprep.subr.bf16.mxu0 0
    %2853 = vmatpush1.bf16.msra.mxu0 %v2820
    %2854 = vmatprep.subr.bf16.mxu0 0
    %2855 = vmatpush1.bf16.msra.mxu0 %v2821
    %2856 = vmatprep.subr.bf16.mxu0 0
    %2857 = vmatpush1.bf16.msra.mxu0 %v2822
    %2858 = vmatprep.subr.bf16.mxu0 0
    %2859 = vmatpush1.bf16.msra.mxu0 %v2823
    %2860 = vmatprep.subr.bf16.mxu0 0
    %2861 = vmatpush1.bf16.msra.mxu0 %v2824
    %2862 = vmatprep.subr.bf16.mxu0 0
    %2863 = vmatpush1.bf16.msra.mxu0 %v2825
    %2864 = vmatprep.subr.bf16.mxu0 0
    %2865 = vmatpush1.bf16.msra.mxu0 %v2826
    %2866 = vmatprep.subr.bf16.mxu0 0
    %2867 = vmatpush1.bf16.msra.mxu0 %v2827
    %2868 = vmatprep.subr.bf16.mxu0 0
    %2869 = vmatpush1.bf16.msra.mxu0 %v2828
    %2870 = vmatprep.subr.bf16.mxu0 0
    %2871 = vmatpush1.bf16.msra.mxu0 %v2829
    %2872 = vmatprep.subr.bf16.mxu0 0
    %2873 = vmatpush1.bf16.msra.mxu0 %v2830
    %2874 = vmatprep.subr.bf16.mxu0 0
    %2875 = vmatpush1.bf16.msra.mxu0 %v2831
    %2876 = vmatprep.subr.bf16.mxu0 0
    %2877 = vmatpush1.bf16.msra.mxu0 %v2832
    %2878 = vmatprep.subr.bf16.mxu0 0
    %2879 = vmatpush1.bf16.msra.mxu0 %v2833
    %2880 = vmatprep.subr.bf16.mxu0 0
    %2881 = vmatpush1.bf16.msra.mxu0 %v2834
    %2882 = vmatprep.subr.bf16.mxu0 0
    %2883 = vmatpush1.bf16.msra.mxu0 %v2835
    %2884 = vmatprep.mubr.bf16.mxu0 %v2714
    %2885 = vmatmul.mubr.bf16.gmra.mrb[0].mxu0 %v2713
    %v2886 = vpop.f32.mrb[0].mxu0
    %v2887 = vadd.f32 0.0, %v2886
    %v2888 = vpop.f32.mrb[0].mxu0
    %v2889 = vpop.f32.mrb[0].mxu0
    %v2890 = vadd.f32 0.0, %v2889
    %v2891 = vpop.f32.mrb[0].mxu0
    %2892 = vmatprep.mubr.bf16.mxu0 %v2716
    %2893 = vmatmul.mubr.bf16.gmra.mrb[0].mxu0 %v2715
    %v2894 = vpop.f32.mrb[0].mxu0
    %v2895 = vadd.f32 0.0, %v2894
    %v2896 = vpop.f32.mrb[0].mxu0
    %v2897 = vpop.f32.mrb[0].mxu0
    %v2898 = vadd.f32 0.0, %v2897
    %v2899 = vpop.f32.mrb[0].mxu0
    %2900 = vmatprep.mubr.bf16.mxu0 %v2718
    %2901 = vmatmul.mubr.bf16.gmra.mrb[0].mxu0 %v2717
    %v2902 = vpop.f32.mrb[0].mxu0
    %v2903 = vadd.f32 0.0, %v2902
    %v2904 = vpop.f32.mrb[0].mxu0
    %v2905 = vpop.f32.mrb[0].mxu0
    %v2906 = vadd.f32 0.0, %v2905
    %v2907 = vpop.f32.mrb[0].mxu0
    %2908 = vmatprep.mubr.bf16.mxu0 %v2720
    %2909 = vmatmul.mubr.bf16.gmra.mrb[0].mxu0 %v2719
    %v2910 = vpop.f32.mrb[0].mxu0
    %v2911 = vadd.f32 0.0, %v2910
    %v2912 = vpop.f32.mrb[0].mxu0
    %v2913 = vpop.f32.mrb[0].mxu0
    %v2914 = vadd.f32 0.0, %v2913
    %v2915 = vpop.f32.mrb[0].mxu0
    %2916 = vmatprep.mubr.bf16.mxu0 %v2722
    %2917 = vmatmul.mubr.bf16.gmra.mrb[0].mxu0 %v2721
    %v2918 = vpop.f32.mrb[0].mxu0
    %v2919 = vadd.f32 0.0, %v2918
    %v2920 = vpop.f32.mrb[0].mxu0
    %v2921 = vpop.f32.mrb[0].mxu0
    %v2922 = vpop.f32.mrb[0].mxu0
    %2923 = vdwg.mxu0
    %v2924 = vadd.f32 %v2704, %v2887
    %v2925 = vadd.f32 %v2705, %v2890
    %v2926 = vadd.f32 %v2706, %v2895
    %v2927 = vadd.f32 %v2707, %v2898
    %v2928 = vadd.f32 %v2708, %v2903
    %v2929 = vadd.f32 %v2709, %v2906
    %v2930 = vadd.f32 %v2710, %v2911
    %v2931 = vadd.f32 %v2711, %v2914
    %v2932 = vadd.f32 %v2712, %v2919
    %s2933 = scalar_lea.vmem %s3, 1152
    %v2934 = vld [vmem:[%s2933] sm:$0xf]
    %v2935 = vld [vmem:[%s2933 + $0x4] sm:$0xf]
    %v2936 = vld [vmem:[%s2933 + $0x8] sm:$0xf]
    %v2937 = vld [vmem:[%s2933 + $0xc] sm:$0xf]
    %v2938 = vld [vmem:[%s2933 + $0x10] sm:$0xf]
    %v2939 = vld [vmem:[%s2933 + $0x14] sm:$0xf]
    %v2940 = vld [vmem:[%s2933 + $0x18] sm:$0xf]
    %v2941 = vld [vmem:[%s2933 + $0x1c] sm:$0xf]
    %v2942 = vld [vmem:[%s2933 + $0x20] sm:$0xf]
    %v2943 = vld [vmem:[%s2933 + $0x24] sm:$0xf]
    %v2944 = vld [vmem:[%s2933 + $0x28] sm:$0xf]
    %v2945 = vld [vmem:[%s2933 + $0x2c] sm:$0xf]
    %v2946 = vld [vmem:[%s2933 + $0x30] sm:$0xf]
    %v2947 = vld [vmem:[%s2933 + $0x34] sm:$0xf]
    %v2948 = vld [vmem:[%s2933 + $0x38] sm:$0xf]
    %v2949 = vld [vmem:[%s2933 + $0x3c] sm:$0xf]
    %v2950 = vld [vmem:[%s2933 + $0x40] sm:$0xf]
    %v2951 = vld [vmem:[%s2933 + $0x44] sm:$0xf]
    %v2952 = vld [vmem:[%s2933 + $0x48] sm:$0xf]
    %v2953 = vld [vmem:[%s2933 + $0x4c] sm:$0xf]
    %v2954 = vld [vmem:[%s2933 + $0x50] sm:$0xf]
    %v2955 = vld [vmem:[%s2933 + $0x54] sm:$0xf]
    %v2956 = vld [vmem:[%s2933 + $0x58] sm:$0xf]
    %v2957 = vld [vmem:[%s2933 + $0x5c] sm:$0xf]
    %v2958 = vld [vmem:[%s2933 + $0x60] sm:$0xf]
    %v2959 = vld [vmem:[%s2933 + $0x64] sm:$0xf]
    %v2960 = vld [vmem:[%s2933 + $0x68] sm:$0xf]
    %v2961 = vld [vmem:[%s2933 + $0x6c] sm:$0xf]
    %v2962 = vld [vmem:[%s2933 + $0x70] sm:$0xf]
    %v2963 = vld [vmem:[%s2933 + $0x74] sm:$0xf]
    %v2964 = vld [vmem:[%s2933 + $0x78] sm:$0xf]
    %v2965 = vld [vmem:[%s2933 + $0x7c] sm:$0xf]
    %vm2966 = vsmask.f32 7424
    %v2968 = vshrl.u32 %v2713, 16
    %v2970 = vshll.u32 %v2713, 16
    %v2972 = vrot.slane %v2970, 1
    %v2973 = vor.u32 %v2968, %v2972
    %v2975 = vshll.u32 %v2715, 16
    %v2977 = vrot.slane %v2975, 1
    %v2978 = vsel %vm2966, %v2973, %v2977
    %v2980 = vshrl.u32 %v2714, 16
    %v2982 = vshll.u32 %v2714, 16
    %v2984 = vrot.slane %v2982, 1
    %v2985 = vor.u32 %v2980, %v2984
    %v2987 = vshll.u32 %v2716, 16
    %v2989 = vrot.slane %v2987, 1
    %v2990 = vsel %vm2966, %v2985, %v2989
    %v2991 = vshrl.u32 %v2715, 16
    %v2993 = vor.u32 %v2991, %v2977
    %v2995 = vshll.u32 %v2717, 16
    %v2997 = vrot.slane %v2995, 1
    %v2998 = vsel %vm2966, %v2993, %v2997
    %v2999 = vshrl.u32 %v2716, 16
    %v3001 = vor.u32 %v2999, %v2989
    %v3003 = vshll.u32 %v2718, 16
    %v3005 = vrot.slane %v3003, 1
    %v3006 = vsel %vm2966, %v3001, %v3005
    %v3007 = vshrl.u32 %v2717, 16
    %v3009 = vor.u32 %v3007, %v2997
    %v3011 = vshll.u32 %v2719, 16
    %v3013 = vrot.slane %v3011, 1
    %v3014 = vsel %vm2966, %v3009, %v3013
    %v3015 = vshrl.u32 %v2718, 16
    %v3017 = vor.u32 %v3015, %v3005
    %v3019 = vshll.u32 %v2720, 16
    %v3021 = vrot.slane %v3019, 1
    %v3022 = vsel %vm2966, %v3017, %v3021
    %v3023 = vshrl.u32 %v2719, 16
    %v3025 = vor.u32 %v3023, %v3013
    %v3027 = vshll.u32 %v2721, 16
    %v3029 = vrot.slane %v3027, 1
    %v3030 = vsel %vm2966, %v3025, %v3029
    %v3031 = vshrl.u32 %v2720, 16
    %v3033 = vor.u32 %v3031, %v3021
    %v3035 = vshll.u32 %v2722, 16
    %v3037 = vrot.slane %v3035, 1
    %v3038 = vsel %vm2966, %v3033, %v3037
    %v3039 = vshrl.u32 %v2721, 16
    %v3041 = vshrl.u32 %v2722, 16
    %v3085 = vunpack.c.l.b16 %v2934
    %v3086 = vunpack.c.l.b16 %v2935
    %v3087 = vunpack.c.l.b16 %v2936
    %v3088 = vunpack.c.l.b16 %v2937
    %v3089 = vunpack.c.l.b16 %v2938
    %v3090 = vunpack.c.l.b16 %v2939
    %v3091 = vunpack.c.l.b16 %v2940
    %v3092 = vunpack.c.l.b16 %v2941
    %v3093 = vunpack.c.l.b16 %v2942
    %v3094 = vunpack.c.l.b16 %v2943
    %v3095 = vunpack.c.l.b16 %v2944
    %v3096 = vunpack.c.l.b16 %v2945
    %v3097 = vunpack.c.l.b16 %v2946
    %v3098 = vunpack.c.l.b16 %v2947
    %v3099 = vunpack.c.l.b16 %v2948
    %v3100 = vunpack.c.l.b16 %v2949
    %v3101 = vunpack.c.l.b16 %v2950
    %v3102 = vunpack.c.l.b16 %v2951
    %v3103 = vunpack.c.l.b16 %v2952
    %v3104 = vunpack.c.l.b16 %v2953
    %v3105 = vunpack.c.l.b16 %v2954
    %v3106 = vunpack.c.l.b16 %v2955
    %v3107 = vunpack.c.l.b16 %v2956
    %v3108 = vunpack.c.l.b16 %v2957
    %v3109 = vunpack.c.l.b16 %v2958
    %v3110 = vunpack.c.l.b16 %v2959
    %v3111 = vunpack.c.l.b16 %v2960
    %v3112 = vunpack.c.l.b16 %v2961
    %v3113 = vunpack.c.l.b16 %v2962
    %v3114 = vunpack.c.l.b16 %v2963
    %v3115 = vunpack.c.l.b16 %v2964
    %v3116 = vunpack.c.l.b16 %v2965
    %v3117 = vpack.c.b16 %v3086, %v3085
    %v3118 = vpack.c.b16 %v3088, %v3087
    %v3119 = vpack.c.b16 %v3090, %v3089
    %v3120 = vpack.c.b16 %v3092, %v3091
    %v3121 = vpack.c.b16 %v3094, %v3093
    %v3122 = vpack.c.b16 %v3096, %v3095
    %v3123 = vpack.c.b16 %v3098, %v3097
    %v3124 = vpack.c.b16 %v3100, %v3099
    %v3125 = vpack.c.b16 %v3102, %v3101
    %v3126 = vpack.c.b16 %v3104, %v3103
    %v3127 = vpack.c.b16 %v3106, %v3105
    %v3128 = vpack.c.b16 %v3108, %v3107
    %v3129 = vpack.c.b16 %v3110, %v3109
    %v3130 = vpack.c.b16 %v3112, %v3111
    %v3131 = vpack.c.b16 %v3114, %v3113
    %v3132 = vpack.c.b16 %v3116, %v3115
    %3149 = vmatprep.subr.bf16.mxu0 0
    %3150 = vmatpush1.bf16.msra.mxu0 %v3117
    %3151 = vmatprep.subr.bf16.mxu0 0
    %3152 = vmatpush1.bf16.msra.mxu0 %v3118
    %3153 = vmatprep.subr.bf16.mxu0 0
    %3154 = vmatpush1.bf16.msra.mxu0 %v3119
    %3155 = vmatprep.subr.bf16.mxu0 0
    %3156 = vmatpush1.bf16.msra.mxu0 %v3120
    %3157 = vmatprep.subr.bf16.mxu0 0
    %3158 = vmatpush1.bf16.msra.mxu0 %v3121
    %3159 = vmatprep.subr.bf16.mxu0 0
    %3160 = vmatpush1.bf16.msra.mxu0 %v3122
    %3161 = vmatprep.subr.bf16.mxu0 0
    %3162 = vmatpush1.bf16.msra.mxu0 %v3123
    %3163 = vmatprep.subr.bf16.mxu0 0
    %3164 = vmatpush1.bf16.msra.mxu0 %v3124
    %3165 = vmatprep.subr.bf16.mxu0 0
    %3166 = vmatpush1.bf16.msra.mxu0 %v3125
    %3167 = vmatprep.subr.bf16.mxu0 0
    %3168 = vmatpush1.bf16.msra.mxu0 %v3126
    %3169 = vmatprep.subr.bf16.mxu0 0
    %3170 = vmatpush1.bf16.msra.mxu0 %v3127
    %3171 = vmatprep.subr.bf16.mxu0 0
    %3172 = vmatpush1.bf16.msra.mxu0 %v3128
    %3173 = vmatprep.subr.bf16.mxu0 0
    %3174 = vmatpush1.bf16.msra.mxu0 %v3129
    %3175 = vmatprep.subr.bf16.mxu0 0
    %3176 = vmatpush1.bf16.msra.mxu0 %v3130
    %3177 = vmatprep.subr.bf16.mxu0 0
    %3178 = vmatpush1.bf16.msra.mxu0 %v3131
    %3179 = vmatprep.subr.bf16.mxu0 0
    %3180 = vmatpush1.bf16.msra.mxu0 %v3132
    %3181 = vmatprep.mubr.bf16.mxu0 %v2990
    %3182 = vmatmul.mubr.bf16.gmra.mrb[0].mxu0 %v2978
    %v3183 = vpop.f32.mrb[0].mxu0
    %v3184 = vadd.f32 0.0, %v3183
    %v3185 = vpop.f32.mrb[0].mxu0
    %v3186 = vpop.f32.mrb[0].mxu0
    %v3187 = vadd.f32 0.0, %v3186
    %v3188 = vpop.f32.mrb[0].mxu0
    %3189 = vmatprep.mubr.bf16.mxu0 %v3006
    %3190 = vmatmul.mubr.bf16.gmra.mrb[0].mxu0 %v2998
    %v3191 = vpop.f32.mrb[0].mxu0
    %v3192 = vadd.f32 0.0, %v3191
    %v3193 = vpop.f32.mrb[0].mxu0
    %v3194 = vpop.f32.mrb[0].mxu0
    %v3195 = vadd.f32 0.0, %v3194
    %v3196 = vpop.f32.mrb[0].mxu0
    %3197 = vmatprep.mubr.bf16.mxu0 %v3022
    %3198 = vmatmul.mubr.bf16.gmra.mrb[0].mxu0 %v3014
    %v3199 = vpop.f32.mrb[0].mxu0
    %v3200 = vadd.f32 0.0, %v3199
    %v3201 = vpop.f32.mrb[0].mxu0
    %v3202 = vpop.f32.mrb[0].mxu0
    %v3203 = vadd.f32 0.0, %v3202
    %v3204 = vpop.f32.mrb[0].mxu0
    %3205 = vmatprep.mubr.bf16.mxu0 %v3038
    %3206 = vmatmul.mubr.bf16.gmra.mrb[0].mxu0 %v3030
    %v3207 = vpop.f32.mrb[0].mxu0
    %v3208 = vadd.f32 0.0, %v3207
    %v3209 = vpop.f32.mrb[0].mxu0
    %v3210 = vpop.f32.mrb[0].mxu0
    %v3211 = vadd.f32 0.0, %v3210
    %v3212 = vpop.f32.mrb[0].mxu0
    %3213 = vmatprep.mubr.bf16.mxu0 %v3041
    %3214 = vmatmul.mubr.bf16.gmra.mrb[0].mxu0 %v3039
    %v3215 = vpop.f32.mrb[0].mxu0
    %v3216 = vadd.f32 0.0, %v3215
    %v3217 = vpop.f32.mrb[0].mxu0
    %v3218 = vpop.f32.mrb[0].mxu0
    %v3219 = vpop.f32.mrb[0].mxu0
    %3220 = vdwg.mxu0
    %v3221 = vadd.f32 %v2924, %v3184
    %v3222 = vadd.f32 %v2925, %v3187
    %v3223 = vadd.f32 %v2926, %v3192
    %v3224 = vadd.f32 %v2927, %v3195
    %v3225 = vadd.f32 %v2928, %v3200
    %v3226 = vadd.f32 %v2929, %v3203
    %v3227 = vadd.f32 %v2930, %v3208
    %v3228 = vadd.f32 %v2931, %v3211
    %v3229 = vadd.f32 %v2932, %v3216
    %v3230 = vld [vmem:[#allocation2 + $0x10] sm:$0xfe]
    %v3231 = vld [vmem:[#allocation2 + $0x18] sm:$0xfe]
    %v3232 = vld [vmem:[#allocation2 + $0x50] sm:$0x3]
    %v3233 = vld [vmem:[#allocation2 + $0x58] sm:$0x3]
    %s3234 = scalar_lea.vmem %s3, 1280
    %v3235 = vld [vmem:[%s3234] sm:$0xf]
    %v3236 = vld [vmem:[%s3234 + $0x4] sm:$0xf]
    %v3237 = vld [vmem:[%s3234 + $0x8] sm:$0xf]
    %v3238 = vld [vmem:[%s3234 + $0xc] sm:$0xf]
    %v3239 = vld [vmem:[%s3234 + $0x10] sm:$0xf]
    %v3240 = vld [vmem:[%s3234 + $0x14] sm:$0xf]
    %v3241 = vld [vmem:[%s3234 + $0x18] sm:$0xf]
    %v3242 = vld [vmem:[%s3234 + $0x1c] sm:$0xf]
    %v3243 = vld [vmem:[%s3234 + $0x20] sm:$0xf]
    %v3244 = vld [vmem:[%s3234 + $0x24] sm:$0xf]
    %v3245 = vld [vmem:[%s3234 + $0x28] sm:$0xf]
    %v3246 = vld [vmem:[%s3234 + $0x2c] sm:$0xf]
    %v3247 = vld [vmem:[%s3234 + $0x30] sm:$0xf]
    %v3248 = vld [vmem:[%s3234 + $0x34] sm:$0xf]
    %v3249 = vld [vmem:[%s3234 + $0x38] sm:$0xf]
    %v3250 = vld [vmem:[%s3234 + $0x3c] sm:$0xf]
    %v3251 = vld [vmem:[%s3234 + $0x40] sm:$0xf]
    %v3252 = vld [vmem:[%s3234 + $0x44] sm:$0xf]
    %v3253 = vld [vmem:[%s3234 + $0x48] sm:$0xf]
    %v3254 = vld [vmem:[%s3234 + $0x4c] sm:$0xf]
    %v3255 = vld [vmem:[%s3234 + $0x50] sm:$0xf]
    %v3256 = vld [vmem:[%s3234 + $0x54] sm:$0xf]
    %v3257 = vld [vmem:[%s3234 + $0x58] sm:$0xf]
    %v3258 = vld [vmem:[%s3234 + $0x5c] sm:$0xf]
    %v3259 = vld [vmem:[%s3234 + $0x60] sm:$0xf]
    %v3260 = vld [vmem:[%s3234 + $0x64] sm:$0xf]
    %v3261 = vld [vmem:[%s3234 + $0x68] sm:$0xf]
    %v3262 = vld [vmem:[%s3234 + $0x6c] sm:$0xf]
    %v3263 = vld [vmem:[%s3234 + $0x70] sm:$0xf]
    %v3264 = vld [vmem:[%s3234 + $0x74] sm:$0xf]
    %v3265 = vld [vmem:[%s3234 + $0x78] sm:$0xf]
    %v3266 = vld [vmem:[%s3234 + $0x7c] sm:$0xf]
    %vm3277 = vcmask 1046528
    %v3278 = vrot.slane %v3230, 1
    %v3279 = vrot.slane %v2715, 1
    %v3280 = vsel %vm3277, %v3278, %v3279
    %v3281 = vrot.slane %v3231, 1
    %v3282 = vrot.slane %v2716, 1
    %v3283 = vsel %vm3277, %v3281, %v3282
    %v3284 = vrot.slane %v2717, 1
    %v3285 = vsel %vm3277, %v3279, %v3284
    %v3286 = vrot.slane %v2718, 1
    %v3287 = vsel %vm3277, %v3282, %v3286
    %v3288 = vrot.slane %v2719, 1
    %v3289 = vsel %vm3277, %v3284, %v3288
    %v3290 = vrot.slane %v2720, 1
    %v3291 = vsel %vm3277, %v3286, %v3290
    %v3292 = vrot.slane %v3232, 1
    %v3293 = vsel %vm3277, %v3288, %v3292
    %v3294 = vrot.slane %v3233, 1
    %v3295 = vsel %vm3277, %v3290, %v3294
    %v3338 = vunpack.c.l.b16 %v3235
    %v3339 = vunpack.c.l.b16 %v3236
    %v3340 = vunpack.c.l.b16 %v3237
    %v3341 = vunpack.c.l.b16 %v3238
    %v3342 = vunpack.c.l.b16 %v3239
    %v3343 = vunpack.c.l.b16 %v3240
    %v3344 = vunpack.c.l.b16 %v3241
    %v3345 = vunpack.c.l.b16 %v3242
    %v3346 = vunpack.c.l.b16 %v3243
    %v3347 = vunpack.c.l.b16 %v3244
    %v3348 = vunpack.c.l.b16 %v3245
    %v3349 = vunpack.c.l.b16 %v3246
    %v3350 = vunpack.c.l.b16 %v3247
    %v3351 = vunpack.c.l.b16 %v3248
    %v3352 = vunpack.c.l.b16 %v3249
    %v3353 = vunpack.c.l.b16 %v3250
    %v3354 = vunpack.c.l.b16 %v3251
    %v3355 = vunpack.c.l.b16 %v3252
    %v3356 = vunpack.c.l.b16 %v3253
    %v3357 = vunpack.c.l.b16 %v3254
    %v3358 = vunpack.c.l.b16 %v3255
    %v3359 = vunpack.c.l.b16 %v3256
    %v3360 = vunpack.c.l.b16 %v3257
    %v3361 = vunpack.c.l.b16 %v3258
    %v3362 = vunpack.c.l.b16 %v3259
    %v3363 = vunpack.c.l.b16 %v3260
    %v3364 = vunpack.c.l.b16 %v3261
    %v3365 = vunpack.c.l.b16 %v3262
    %v3366 = vunpack.c.l.b16 %v3263
    %v3367 = vunpack.c.l.b16 %v3264
    %v3368 = vunpack.c.l.b16 %v3265
    %v3369 = vunpack.c.l.b16 %v3266
    %v3370 = vpack.c.b16 %v3339, %v3338
    %v3371 = vpack.c.b16 %v3341, %v3340
    %v3372 = vpack.c.b16 %v3343, %v3342
    %v3373 = vpack.c.b16 %v3345, %v3344
    %v3374 = vpack.c.b16 %v3347, %v3346
    %v3375 = vpack.c.b16 %v3349, %v3348
    %v3376 = vpack.c.b16 %v3351, %v3350
    %v3377 = vpack.c.b16 %v3353, %v3352
    %v3378 = vpack.c.b16 %v3355, %v3354
    %v3379 = vpack.c.b16 %v3357, %v3356
    %v3380 = vpack.c.b16 %v3359, %v3358
    %v3381 = vpack.c.b16 %v3361, %v3360
    %v3382 = vpack.c.b16 %v3363, %v3362
    %v3383 = vpack.c.b16 %v3365, %v3364
    %v3384 = vpack.c.b16 %v3367, %v3366
    %v3385 = vpack.c.b16 %v3369, %v3368
    %3402 = vmatprep.subr.bf16.mxu0 0
    %3403 = vmatpush1.bf16.msra.mxu0 %v3370
    %3404 = vmatprep.subr.bf16.mxu0 0
    %3405 = vmatpush1.bf16.msra.mxu0 %v3371
    %3406 = vmatprep.subr.bf16.mxu0 0
    %3407 = vmatpush1.bf16.msra.mxu0 %v3372
    %3408 = vmatprep.subr.bf16.mxu0 0
    %3409 = vmatpush1.bf16.msra.mxu0 %v3373
    %3410 = vmatprep.subr.bf16.mxu0 0
    %3411 = vmatpush1.bf16.msra.mxu0 %v3374
    %3412 = vmatprep.subr.bf16.mxu0 0
    %3413 = vmatpush1.bf16.msra.mxu0 %v3375
    %3414 = vmatprep.subr.bf16.mxu0 0
    %3415 = vmatpush1.bf16.msra.mxu0 %v3376
    %3416 = vmatprep.subr.bf16.mxu0 0
    %3417 = vmatpush1.bf16.msra.mxu0 %v3377
    %3418 = vmatprep.subr.bf16.mxu0 0
    %3419 = vmatpush1.bf16.msra.mxu0 %v3378
    %3420 = vmatprep.subr.bf16.mxu0 0
    %3421 = vmatpush1.bf16.msra.mxu0 %v3379
    %3422 = vmatprep.subr.bf16.mxu0 0
    %3423 = vmatpush1.bf16.msra.mxu0 %v3380
    %3424 = vmatprep.subr.bf16.mxu0 0
    %3425 = vmatpush1.bf16.msra.mxu0 %v3381
    %3426 = vmatprep.subr.bf16.mxu0 0
    %3427 = vmatpush1.bf16.msra.mxu0 %v3382
    %3428 = vmatprep.subr.bf16.mxu0 0
    %3429 = vmatpush1.bf16.msra.mxu0 %v3383
    %3430 = vmatprep.subr.bf16.mxu0 0
    %3431 = vmatpush1.bf16.msra.mxu0 %v3384
    %3432 = vmatprep.subr.bf16.mxu0 0
    %3433 = vmatpush1.bf16.msra.mxu0 %v3385
    %3434 = vmatprep.mubr.bf16.mxu0 %v3283
    %3435 = vmatmul.mubr.bf16.gmra.mrb[0].mxu0 %v3280
    %v3436 = vpop.f32.mrb[0].mxu0
    %v3437 = vadd.f32 0.0, %v3436
    %v3438 = vpop.f32.mrb[0].mxu0
    %v3439 = vpop.f32.mrb[0].mxu0
    %v3440 = vadd.f32 0.0, %v3439
    %v3441 = vpop.f32.mrb[0].mxu0
    %3442 = vmatprep.mubr.bf16.mxu0 %v3287
    %3443 = vmatmul.mubr.bf16.gmra.mrb[0].mxu0 %v3285
    %v3444 = vpop.f32.mrb[0].mxu0
    %v3445 = vadd.f32 0.0, %v3444
    %v3446 = vpop.f32.mrb[0].mxu0
    %v3447 = vpop.f32.mrb[0].mxu0
    %v3448 = vadd.f32 0.0, %v3447
    %v3449 = vpop.f32.mrb[0].mxu0
    %3450 = vmatprep.mubr.bf16.mxu0 %v3291
    %3451 = vmatmul.mubr.bf16.gmra.mrb[0].mxu0 %v3289
    %v3452 = vpop.f32.mrb[0].mxu0
    %v3453 = vadd.f32 0.0, %v3452
    %v3454 = vpop.f32.mrb[0].mxu0
    %v3455 = vpop.f32.mrb[0].mxu0
    %v3456 = vadd.f32 0.0, %v3455
    %v3457 = vpop.f32.mrb[0].mxu0
    %3458 = vmatprep.mubr.bf16.mxu0 %v3295
    %3459 = vmatmul.mubr.bf16.gmra.mrb[0].mxu0 %v3293
    %v3460 = vpop.f32.mrb[0].mxu0
    %v3461 = vadd.f32 0.0, %v3460
    %v3462 = vpop.f32.mrb[0].mxu0
    %v3463 = vpop.f32.mrb[0].mxu0
    %v3464 = vadd.f32 0.0, %v3463
    %v3465 = vpop.f32.mrb[0].mxu0
    %3466 = vmatprep.mubr.bf16.mxu0 %v3294
    %3467 = vmatmul.mubr.bf16.gmra.mrb[0].mxu0 %v3292
    %v3468 = vpop.f32.mrb[0].mxu0
    %v3469 = vadd.f32 0.0, %v3468
    %v3470 = vpop.f32.mrb[0].mxu0
    %v3471 = vpop.f32.mrb[0].mxu0
    %v3472 = vpop.f32.mrb[0].mxu0
    %3473 = vdwg.mxu0
    %v3474 = vadd.f32 %v3221, %v3437
    %v3475 = vadd.f32 %v3222, %v3440
    %v3476 = vadd.f32 %v3223, %v3445
    %v3477 = vadd.f32 %v3224, %v3448
    %v3478 = vadd.f32 %v3225, %v3453
    %v3479 = vadd.f32 %v3226, %v3456
    %v3480 = vadd.f32 %v3227, %v3461
    %v3481 = vadd.f32 %v3228, %v3464
    %v3482 = vadd.f32 %v3229, %v3469
    %s3483 = scalar_lea.vmem %s3, 1408
    %v3484 = vld [vmem:[%s3483] sm:$0xf]
    %v3485 = vld [vmem:[%s3483 + $0x4] sm:$0xf]
    %v3486 = vld [vmem:[%s3483 + $0x8] sm:$0xf]
    %v3487 = vld [vmem:[%s3483 + $0xc] sm:$0xf]
    %v3488 = vld [vmem:[%s3483 + $0x10] sm:$0xf]
    %v3489 = vld [vmem:[%s3483 + $0x14] sm:$0xf]
    %v3490 = vld [vmem:[%s3483 + $0x18] sm:$0xf]
    %v3491 = vld [vmem:[%s3483 + $0x1c] sm:$0xf]
    %v3492 = vld [vmem:[%s3483 + $0x20] sm:$0xf]
    %v3493 = vld [vmem:[%s3483 + $0x24] sm:$0xf]
    %v3494 = vld [vmem:[%s3483 + $0x28] sm:$0xf]
    %v3495 = vld [vmem:[%s3483 + $0x2c] sm:$0xf]
    %v3496 = vld [vmem:[%s3483 + $0x30] sm:$0xf]
    %v3497 = vld [vmem:[%s3483 + $0x34] sm:$0xf]
    %v3498 = vld [vmem:[%s3483 + $0x38] sm:$0xf]
    %v3499 = vld [vmem:[%s3483 + $0x3c] sm:$0xf]
    %v3500 = vld [vmem:[%s3483 + $0x40] sm:$0xf]
    %v3501 = vld [vmem:[%s3483 + $0x44] sm:$0xf]
    %v3502 = vld [vmem:[%s3483 + $0x48] sm:$0xf]
    %v3503 = vld [vmem:[%s3483 + $0x4c] sm:$0xf]
    %v3504 = vld [vmem:[%s3483 + $0x50] sm:$0xf]
    %v3505 = vld [vmem:[%s3483 + $0x54] sm:$0xf]
    %v3506 = vld [vmem:[%s3483 + $0x58] sm:$0xf]
    %v3507 = vld [vmem:[%s3483 + $0x5c] sm:$0xf]
    %v3508 = vld [vmem:[%s3483 + $0x60] sm:$0xf]
    %v3509 = vld [vmem:[%s3483 + $0x64] sm:$0xf]
    %v3510 = vld [vmem:[%s3483 + $0x68] sm:$0xf]
    %v3511 = vld [vmem:[%s3483 + $0x6c] sm:$0xf]
    %v3512 = vld [vmem:[%s3483 + $0x70] sm:$0xf]
    %v3513 = vld [vmem:[%s3483 + $0x74] sm:$0xf]
    %v3514 = vld [vmem:[%s3483 + $0x78] sm:$0xf]
    %v3515 = vld [vmem:[%s3483 + $0x7c] sm:$0xf]
    %vm3516 = vsmask.f32 6400
    %v3518 = vshrl.u32 %v3230, 16
    %v3520 = vrot.slane %v3518, 1
    %v3521 = vshll.u32 %v3230, 16
    %v3523 = vrot.slane %v3521, 2
    %v3524 = vor.u32 %v3520, %v3523
    %v3525 = vrot.slane %v2991, 1
    %v3526 = vrot.slane %v2975, 2
    %v3527 = vor.u32 %v3525, %v3526
    %v3528 = vsel %vm3516, %v3524, %v3527
    %v3530 = vshrl.u32 %v3231, 16
    %v3532 = vrot.slane %v3530, 1
    %v3533 = vshll.u32 %v3231, 16
    %v3535 = vrot.slane %v3533, 2
    %v3536 = vor.u32 %v3532, %v3535
    %v3537 = vrot.slane %v2999, 1
    %v3538 = vrot.slane %v2987, 2
    %v3539 = vor.u32 %v3537, %v3538
    %v3540 = vsel %vm3516, %v3536, %v3539
    %v3541 = vrot.slane %v3007, 1
    %v3542 = vrot.slane %v2995, 2
    %v3543 = vor.u32 %v3541, %v3542
    %v3544 = vsel %vm3516, %v3527, %v3543
    %v3545 = vrot.slane %v3015, 1
    %v3546 = vrot.slane %v3003, 2
    %v3547 = vor.u32 %v3545, %v3546
    %v3548 = vsel %vm3516, %v3539, %v3547
    %v3549 = vrot.slane %v3023, 1
    %v3550 = vrot.slane %v3011, 2
    %v3551 = vor.u32 %v3549, %v3550
    %v3552 = vsel %vm3516, %v3543, %v3551
    %v3553 = vrot.slane %v3031, 1
    %v3554 = vrot.slane %v3019, 2
    %v3555 = vor.u32 %v3553, %v3554
    %v3556 = vsel %vm3516, %v3547, %v3555
    %v3558 = vshrl.u32 %v3232, 16
    %v3560 = vrot.slane %v3558, 1
    %v3561 = vshll.u32 %v3232, 16
    %v3563 = vrot.slane %v3561, 2
    %v3564 = vor.u32 %v3560, %v3563
    %v3565 = vsel %vm3516, %v3551, %v3564
    %v3567 = vshrl.u32 %v3233, 16
    %v3569 = vrot.slane %v3567, 1
    %v3570 = vshll.u32 %v3233, 16
    %v3572 = vrot.slane %v3570, 2
    %v3573 = vor.u32 %v3569, %v3572
    %v3574 = vsel %vm3516, %v3555, %v3573
    %v3617 = vunpack.c.l.b16 %v3484
    %v3618 = vunpack.c.l.b16 %v3485
    %v3619 = vunpack.c.l.b16 %v3486
    %v3620 = vunpack.c.l.b16 %v3487
    %v3621 = vunpack.c.l.b16 %v3488
    %v3622 = vunpack.c.l.b16 %v3489
    %v3623 = vunpack.c.l.b16 %v3490
    %v3624 = vunpack.c.l.b16 %v3491
    %v3625 = vunpack.c.l.b16 %v3492
    %v3626 = vunpack.c.l.b16 %v3493
    %v3627 = vunpack.c.l.b16 %v3494
    %v3628 = vunpack.c.l.b16 %v3495
    %v3629 = vunpack.c.l.b16 %v3496
    %v3630 = vunpack.c.l.b16 %v3497
    %v3631 = vunpack.c.l.b16 %v3498
    %v3632 = vunpack.c.l.b16 %v3499
    %v3633 = vunpack.c.l.b16 %v3500
    %v3634 = vunpack.c.l.b16 %v3501
    %v3635 = vunpack.c.l.b16 %v3502
    %v3636 = vunpack.c.l.b16 %v3503
    %v3637 = vunpack.c.l.b16 %v3504
    %v3638 = vunpack.c.l.b16 %v3505
    %v3639 = vunpack.c.l.b16 %v3506
    %v3640 = vunpack.c.l.b16 %v3507
    %v3641 = vunpack.c.l.b16 %v3508
    %v3642 = vunpack.c.l.b16 %v3509
    %v3643 = vunpack.c.l.b16 %v3510
    %v3644 = vunpack.c.l.b16 %v3511
    %v3645 = vunpack.c.l.b16 %v3512
    %v3646 = vunpack.c.l.b16 %v3513
    %v3647 = vunpack.c.l.b16 %v3514
    %v3648 = vunpack.c.l.b16 %v3515
    %v3649 = vpack.c.b16 %v3618, %v3617
    %v3650 = vpack.c.b16 %v3620, %v3619
    %v3651 = vpack.c.b16 %v3622, %v3621
    %v3652 = vpack.c.b16 %v3624, %v3623
    %v3653 = vpack.c.b16 %v3626, %v3625
    %v3654 = vpack.c.b16 %v3628, %v3627
    %v3655 = vpack.c.b16 %v3630, %v3629
    %v3656 = vpack.c.b16 %v3632, %v3631
    %v3657 = vpack.c.b16 %v3634, %v3633
    %v3658 = vpack.c.b16 %v3636, %v3635
    %v3659 = vpack.c.b16 %v3638, %v3637
    %v3660 = vpack.c.b16 %v3640, %v3639
    %v3661 = vpack.c.b16 %v3642, %v3641
    %v3662 = vpack.c.b16 %v3644, %v3643
    %v3663 = vpack.c.b16 %v3646, %v3645
    %v3664 = vpack.c.b16 %v3648, %v3647
    %3681 = vmatprep.subr.bf16.mxu0 0
    %3682 = vmatpush1.bf16.msra.mxu0 %v3649
    %3683 = vmatprep.subr.bf16.mxu0 0
    %3684 = vmatpush1.bf16.msra.mxu0 %v3650
    %3685 = vmatprep.subr.bf16.mxu0 0
    %3686 = vmatpush1.bf16.msra.mxu0 %v3651
    %3687 = vmatprep.subr.bf16.mxu0 0
    %3688 = vmatpush1.bf16.msra.mxu0 %v3652
    %3689 = vmatprep.subr.bf16.mxu0 0
    %3690 = vmatpush1.bf16.msra.mxu0 %v3653
    %3691 = vmatprep.subr.bf16.mxu0 0
    %3692 = vmatpush1.bf16.msra.mxu0 %v3654
    %3693 = vmatprep.subr.bf16.mxu0 0
    %3694 = vmatpush1.bf16.msra.mxu0 %v3655
    %3695 = vmatprep.subr.bf16.mxu0 0
    %3696 = vmatpush1.bf16.msra.mxu0 %v3656
    %3697 = vmatprep.subr.bf16.mxu0 0
    %3698 = vmatpush1.bf16.msra.mxu0 %v3657
    %3699 = vmatprep.subr.bf16.mxu0 0
    %3700 = vmatpush1.bf16.msra.mxu0 %v3658
    %3701 = vmatprep.subr.bf16.mxu0 0
    %3702 = vmatpush1.bf16.msra.mxu0 %v3659
    %3703 = vmatprep.subr.bf16.mxu0 0
    %3704 = vmatpush1.bf16.msra.mxu0 %v3660
    %3705 = vmatprep.subr.bf16.mxu0 0
    %3706 = vmatpush1.bf16.msra.mxu0 %v3661
    %3707 = vmatprep.subr.bf16.mxu0 0
    %3708 = vmatpush1.bf16.msra.mxu0 %v3662
    %3709 = vmatprep.subr.bf16.mxu0 0
    %3710 = vmatpush1.bf16.msra.mxu0 %v3663
    %3711 = vmatprep.subr.bf16.mxu0 0
    %3712 = vmatpush1.bf16.msra.mxu0 %v3664
    %3713 = vmatprep.mubr.bf16.mxu0 %v3540
    %3714 = vmatmul.mubr.bf16.gmra.mrb[0].mxu0 %v3528
    %v3715 = vpop.f32.mrb[0].mxu0
    %v3716 = vadd.f32 0.0, %v3715
    %v3717 = vpop.f32.mrb[0].mxu0
    %v3718 = vpop.f32.mrb[0].mxu0
    %v3719 = vadd.f32 0.0, %v3718
    %v3720 = vpop.f32.mrb[0].mxu0
    %3721 = vmatprep.mubr.bf16.mxu0 %v3548
    %3722 = vmatmul.mubr.bf16.gmra.mrb[0].mxu0 %v3544
    %v3723 = vpop.f32.mrb[0].mxu0
    %v3724 = vadd.f32 0.0, %v3723
    %v3725 = vpop.f32.mrb[0].mxu0
    %v3726 = vpop.f32.mrb[0].mxu0
    %v3727 = vadd.f32 0.0, %v3726
    %v3728 = vpop.f32.mrb[0].mxu0
    %3729 = vmatprep.mubr.bf16.mxu0 %v3556
    %3730 = vmatmul.mubr.bf16.gmra.mrb[0].mxu0 %v3552
    %v3731 = vpop.f32.mrb[0].mxu0
    %v3732 = vadd.f32 0.0, %v3731
    %v3733 = vpop.f32.mrb[0].mxu0
    %v3734 = vpop.f32.mrb[0].mxu0
    %v3735 = vadd.f32 0.0, %v3734
    %v3736 = vpop.f32.mrb[0].mxu0
    %3737 = vmatprep.mubr.bf16.mxu0 %v3574
    %3738 = vmatmul.mubr.bf16.gmra.mrb[0].mxu0 %v3565
    %v3739 = vpop.f32.mrb[0].mxu0
    %v3740 = vadd.f32 0.0, %v3739
    %v3741 = vpop.f32.mrb[0].mxu0
    %v3742 = vpop.f32.mrb[0].mxu0
    %v3743 = vadd.f32 0.0, %v3742
    %v3744 = vpop.f32.mrb[0].mxu0
    %3745 = vmatprep.mubr.bf16.mxu0 %v3569
    %3746 = vmatmul.mubr.bf16.gmra.mrb[0].mxu0 %v3560
    %v3747 = vpop.f32.mrb[0].mxu0
    %v3748 = vadd.f32 0.0, %v3747
    %v3749 = vpop.f32.mrb[0].mxu0
    %v3750 = vpop.f32.mrb[0].mxu0
    %v3751 = vpop.f32.mrb[0].mxu0
    %3752 = vdwg.mxu0
    %v3753 = vadd.f32 %v3474, %v3716
    %v3754 = vadd.f32 %v3475, %v3719
    %v3755 = vadd.f32 %v3476, %v3724
    %v3756 = vadd.f32 %v3477, %v3727
    %v3757 = vadd.f32 %v3478, %v3732
    %v3758 = vadd.f32 %v3479, %v3735
    %v3759 = vadd.f32 %v3480, %v3740
    %v3760 = vadd.f32 %v3481, %v3743
    %v3761 = vadd.f32 %v3482, %v3748
    %v3762 = vld [vmem:[#allocation2 + $0x10] sm:$0xfc]
    %v3763 = vld [vmem:[#allocation2 + $0x18] sm:$0xfc]
    %v3764 = vld [vmem:[#allocation2 + $0x50] sm:$0x7]
    %v3765 = vld [vmem:[#allocation2 + $0x58] sm:$0x7]
    %s3766 = scalar_lea.vmem %s3, 1536
    %v3767 = vld [vmem:[%s3766] sm:$0xf]
    %v3768 = vld [vmem:[%s3766 + $0x4] sm:$0xf]
    %v3769 = vld [vmem:[%s3766 + $0x8] sm:$0xf]
    %v3770 = vld [vmem:[%s3766 + $0xc] sm:$0xf]
    %v3771 = vld [vmem:[%s3766 + $0x10] sm:$0xf]
    %v3772 = vld [vmem:[%s3766 + $0x14] sm:$0xf]
    %v3773 = vld [vmem:[%s3766 + $0x18] sm:$0xf]
    %v3774 = vld [vmem:[%s3766 + $0x1c] sm:$0xf]
    %v3775 = vld [vmem:[%s3766 + $0x20] sm:$0xf]
    %v3776 = vld [vmem:[%s3766 + $0x24] sm:$0xf]
    %v3777 = vld [vmem:[%s3766 + $0x28] sm:$0xf]
    %v3778 = vld [vmem:[%s3766 + $0x2c] sm:$0xf]
    %v3779 = vld [vmem:[%s3766 + $0x30] sm:$0xf]
    %v3780 = vld [vmem:[%s3766 + $0x34] sm:$0xf]
    %v3781 = vld [vmem:[%s3766 + $0x38] sm:$0xf]
    %v3782 = vld [vmem:[%s3766 + $0x3c] sm:$0xf]
    %v3783 = vld [vmem:[%s3766 + $0x40] sm:$0xf]
    %v3784 = vld [vmem:[%s3766 + $0x44] sm:$0xf]
    %v3785 = vld [vmem:[%s3766 + $0x48] sm:$0xf]
    %v3786 = vld [vmem:[%s3766 + $0x4c] sm:$0xf]
    %v3787 = vld [vmem:[%s3766 + $0x50] sm:$0xf]
    %v3788 = vld [vmem:[%s3766 + $0x54] sm:$0xf]
    %v3789 = vld [vmem:[%s3766 + $0x58] sm:$0xf]
    %v3790 = vld [vmem:[%s3766 + $0x5c] sm:$0xf]
    %v3791 = vld [vmem:[%s3766 + $0x60] sm:$0xf]
    %v3792 = vld [vmem:[%s3766 + $0x64] sm:$0xf]
    %v3793 = vld [vmem:[%s3766 + $0x68] sm:$0xf]
    %v3794 = vld [vmem:[%s3766 + $0x6c] sm:$0xf]
    %v3795 = vld [vmem:[%s3766 + $0x70] sm:$0xf]
    %v3796 = vld [vmem:[%s3766 + $0x74] sm:$0xf]
    %v3797 = vld [vmem:[%s3766 + $0x78] sm:$0xf]
    %v3798 = vld [vmem:[%s3766 + $0x7c] sm:$0xf]
    %vm3803 = vcmask 1045504
    %v3804 = vrot.slane %v3762, 2
    %v3805 = vrot.slane %v2715, 2
    %v3806 = vsel %vm3803, %v3804, %v3805
    %v3807 = vrot.slane %v3763, 2
    %v3808 = vrot.slane %v2716, 2
    %v3809 = vsel %vm3803, %v3807, %v3808
    %v3810 = vrot.slane %v2717, 2
    %v3811 = vsel %vm3803, %v3805, %v3810
    %v3812 = vrot.slane %v2718, 2
    %v3813 = vsel %vm3803, %v3808, %v3812
    %v3814 = vrot.slane %v2719, 2
    %v3815 = vsel %vm3803, %v3810, %v3814
    %v3816 = vrot.slane %v2720, 2
    %v3817 = vsel %vm3803, %v3812, %v3816
    %v3818 = vrot.slane %v3764, 2
    %v3819 = vsel %vm3803, %v3814, %v3818
    %v3820 = vrot.slane %v3765, 2
    %v3821 = vsel %vm3803, %v3816, %v3820
    %v3864 = vunpack.c.l.b16 %v3767
    %v3865 = vunpack.c.l.b16 %v3768
    %v3866 = vunpack.c.l.b16 %v3769
    %v3867 = vunpack.c.l.b16 %v3770
    %v3868 = vunpack.c.l.b16 %v3771
    %v3869 = vunpack.c.l.b16 %v3772
    %v3870 = vunpack.c.l.b16 %v3773
    %v3871 = vunpack.c.l.b16 %v3774
    %v3872 = vunpack.c.l.b16 %v3775
    %v3873 = vunpack.c.l.b16 %v3776
    %v3874 = vunpack.c.l.b16 %v3777
    %v3875 = vunpack.c.l.b16 %v3778
    %v3876 = vunpack.c.l.b16 %v3779
    %v3877 = vunpack.c.l.b16 %v3780
    %v3878 = vunpack.c.l.b16 %v3781
    %v3879 = vunpack.c.l.b16 %v3782
    %v3880 = vunpack.c.l.b16 %v3783
    %v3881 = vunpack.c.l.b16 %v3784
    %v3882 = vunpack.c.l.b16 %v3785
    %v3883 = vunpack.c.l.b16 %v3786
    %v3884 = vunpack.c.l.b16 %v3787
    %v3885 = vunpack.c.l.b16 %v3788
    %v3886 = vunpack.c.l.b16 %v3789
    %v3887 = vunpack.c.l.b16 %v3790
    %v3888 = vunpack.c.l.b16 %v3791
    %v3889 = vunpack.c.l.b16 %v3792
    %v3890 = vunpack.c.l.b16 %v3793
    %v3891 = vunpack.c.l.b16 %v3794
    %v3892 = vunpack.c.l.b16 %v3795
    %v3893 = vunpack.c.l.b16 %v3796
    %v3894 = vunpack.c.l.b16 %v3797
    %v3895 = vunpack.c.l.b16 %v3798
    %v3896 = vpack.c.b16 %v3865, %v3864
    %v3897 = vpack.c.b16 %v3867, %v3866
    %v3898 = vpack.c.b16 %v3869, %v3868
    %v3899 = vpack.c.b16 %v3871, %v3870
    %v3900 = vpack.c.b16 %v3873, %v3872
    %v3901 = vpack.c.b16 %v3875, %v3874
    %v3902 = vpack.c.b16 %v3877, %v3876
    %v3903 = vpack.c.b16 %v3879, %v3878
    %v3904 = vpack.c.b16 %v3881, %v3880
    %v3905 = vpack.c.b16 %v3883, %v3882
    %v3906 = vpack.c.b16 %v3885, %v3884
    %v3907 = vpack.c.b16 %v3887, %v3886
    %v3908 = vpack.c.b16 %v3889, %v3888
    %v3909 = vpack.c.b16 %v3891, %v3890
    %v3910 = vpack.c.b16 %v3893, %v3892
    %v3911 = vpack.c.b16 %v3895, %v3894
    %3928 = vmatprep.subr.bf16.mxu0 0
    %3929 = vmatpush1.bf16.msra.mxu0 %v3896
    %3930 = vmatprep.subr.bf16.mxu0 0
    %3931 = vmatpush1.bf16.msra.mxu0 %v3897
    %3932 = vmatprep.subr.bf16.mxu0 0
    %3933 = vmatpush1.bf16.msra.mxu0 %v3898
    %3934 = vmatprep.subr.bf16.mxu0 0
    %3935 = vmatpush1.bf16.msra.mxu0 %v3899
    %3936 = vmatprep.subr.bf16.mxu0 0
    %3937 = vmatpush1.bf16.msra.mxu0 %v3900
    %3938 = vmatprep.subr.bf16.mxu0 0
    %3939 = vmatpush1.bf16.msra.mxu0 %v3901
    %3940 = vmatprep.subr.bf16.mxu0 0
    %3941 = vmatpush1.bf16.msra.mxu0 %v3902
    %3942 = vmatprep.subr.bf16.mxu0 0
    %3943 = vmatpush1.bf16.msra.mxu0 %v3903
    %3944 = vmatprep.subr.bf16.mxu0 0
    %3945 = vmatpush1.bf16.msra.mxu0 %v3904
    %3946 = vmatprep.subr.bf16.mxu0 0
    %3947 = vmatpush1.bf16.msra.mxu0 %v3905
    %3948 = vmatprep.subr.bf16.mxu0 0
    %3949 = vmatpush1.bf16.msra.mxu0 %v3906
    %3950 = vmatprep.subr.bf16.mxu0 0
    %3951 = vmatpush1.bf16.msra.mxu0 %v3907
    %3952 = vmatprep.subr.bf16.mxu0 0
    %3953 = vmatpush1.bf16.msra.mxu0 %v3908
    %3954 = vmatprep.subr.bf16.mxu0 0
    %3955 = vmatpush1.bf16.msra.mxu0 %v3909
    %3956 = vmatprep.subr.bf16.mxu0 0
    %3957 = vmatpush1.bf16.msra.mxu0 %v3910
    %3958 = vmatprep.subr.bf16.mxu0 0
    %3959 = vmatpush1.bf16.msra.mxu0 %v3911
    %3960 = vmatprep.mubr.bf16.mxu0 %v3809
    %3961 = vmatmul.mubr.bf16.gmra.mrb[0].mxu0 %v3806
    %v3962 = vpop.f32.mrb[0].mxu0
    %v3963 = vadd.f32 0.0, %v3962
    %v3964 = vpop.f32.mrb[0].mxu0
    %v3965 = vpop.f32.mrb[0].mxu0
    %v3966 = vadd.f32 0.0, %v3965
    %v3967 = vpop.f32.mrb[0].mxu0
    %3968 = vmatprep.mubr.bf16.mxu0 %v3813
    %3969 = vmatmul.mubr.bf16.gmra.mrb[0].mxu0 %v3811
    %v3970 = vpop.f32.mrb[0].mxu0
    %v3971 = vadd.f32 0.0, %v3970
    %v3972 = vpop.f32.mrb[0].mxu0
    %v3973 = vpop.f32.mrb[0].mxu0
    %v3974 = vadd.f32 0.0, %v3973
    %v3975 = vpop.f32.mrb[0].mxu0
    %3976 = vmatprep.mubr.bf16.mxu0 %v3817
    %3977 = vmatmul.mubr.bf16.gmra.mrb[0].mxu0 %v3815
    %v3978 = vpop.f32.mrb[0].mxu0
    %v3979 = vadd.f32 0.0, %v3978
    %v3980 = vpop.f32.mrb[0].mxu0
    %v3981 = vpop.f32.mrb[0].mxu0
    %v3982 = vadd.f32 0.0, %v3981
    %v3983 = vpop.f32.mrb[0].mxu0
    %3984 = vmatprep.mubr.bf16.mxu0 %v3821
    %3985 = vmatmul.mubr.bf16.gmra.mrb[0].mxu0 %v3819
    %v3986 = vpop.f32.mrb[0].mxu0
    %v3987 = vadd.f32 0.0, %v3986
    %v3988 = vpop.f32.mrb[0].mxu0
    %v3989 = vpop.f32.mrb[0].mxu0
    %v3990 = vadd.f32 0.0, %v3989
    %v3991 = vpop.f32.mrb[0].mxu0
    %3992 = vmatprep.mubr.bf16.mxu0 %v3820
    %3993 = vmatmul.mubr.bf16.gmra.mrb[0].mxu0 %v3818
    %v3994 = vpop.f32.mrb[0].mxu0
    %v3995 = vadd.f32 0.0, %v3994
    %v3996 = vpop.f32.mrb[0].mxu0
    %v3997 = vpop.f32.mrb[0].mxu0
    %v3998 = vpop.f32.mrb[0].mxu0
    %3999 = vdwg.mxu0
    %v4000 = vadd.f32 %v3753, %v3963
    %v4001 = vadd.f32 %v3754, %v3966
    %v4002 = vadd.f32 %v3755, %v3971
    %v4003 = vadd.f32 %v3756, %v3974
    %v4004 = vadd.f32 %v3757, %v3979
    %v4005 = vadd.f32 %v3758, %v3982
    %v4006 = vadd.f32 %v3759, %v3987
    %v4007 = vadd.f32 %v3760, %v3990
    %v4008 = vadd.f32 %v3761, %v3995
    %s4009 = scalar_lea.vmem %s3, 1664
    %v4010 = vld [vmem:[%s4009] sm:$0xf]
    %v4011 = vld [vmem:[%s4009 + $0x4] sm:$0xf]
    %v4012 = vld [vmem:[%s4009 + $0x8] sm:$0xf]
    %v4013 = vld [vmem:[%s4009 + $0xc] sm:$0xf]
    %v4014 = vld [vmem:[%s4009 + $0x10] sm:$0xf]
    %v4015 = vld [vmem:[%s4009 + $0x14] sm:$0xf]
    %v4016 = vld [vmem:[%s4009 + $0x18] sm:$0xf]
    %v4017 = vld [vmem:[%s4009 + $0x1c] sm:$0xf]
    %v4018 = vld [vmem:[%s4009 + $0x20] sm:$0xf]
    %v4019 = vld [vmem:[%s4009 + $0x24] sm:$0xf]
    %v4020 = vld [vmem:[%s4009 + $0x28] sm:$0xf]
    %v4021 = vld [vmem:[%s4009 + $0x2c] sm:$0xf]
    %v4022 = vld [vmem:[%s4009 + $0x30] sm:$0xf]
    %v4023 = vld [vmem:[%s4009 + $0x34] sm:$0xf]
    %v4024 = vld [vmem:[%s4009 + $0x38] sm:$0xf]
    %v4025 = vld [vmem:[%s4009 + $0x3c] sm:$0xf]
    %v4026 = vld [vmem:[%s4009 + $0x40] sm:$0xf]
    %v4027 = vld [vmem:[%s4009 + $0x44] sm:$0xf]
    %v4028 = vld [vmem:[%s4009 + $0x48] sm:$0xf]
    %v4029 = vld [vmem:[%s4009 + $0x4c] sm:$0xf]
    %v4030 = vld [vmem:[%s4009 + $0x50] sm:$0xf]
    %v4031 = vld [vmem:[%s4009 + $0x54] sm:$0xf]
    %v4032 = vld [vmem:[%s4009 + $0x58] sm:$0xf]
    %v4033 = vld [vmem:[%s4009 + $0x5c] sm:$0xf]
    %v4034 = vld [vmem:[%s4009 + $0x60] sm:$0xf]
    %v4035 = vld [vmem:[%s4009 + $0x64] sm:$0xf]
    %v4036 = vld [vmem:[%s4009 + $0x68] sm:$0xf]
    %v4037 = vld [vmem:[%s4009 + $0x6c] sm:$0xf]
    %v4038 = vld [vmem:[%s4009 + $0x70] sm:$0xf]
    %v4039 = vld [vmem:[%s4009 + $0x74] sm:$0xf]
    %v4040 = vld [vmem:[%s4009 + $0x78] sm:$0xf]
    %v4041 = vld [vmem:[%s4009 + $0x7c] sm:$0xf]
    %vm4042 = vsmask.f32 5376
    %v4044 = vshrl.u32 %v3762, 16
    %v4046 = vrot.slane %v4044, 2
    %v4047 = vshll.u32 %v3762, 16
    %v4049 = vrot.slane %v4047, 3
    %v4050 = vor.u32 %v4046, %v4049
    %v4051 = vrot.slane %v2991, 2
    %v4052 = vrot.slane %v2975, 3
    %v4053 = vor.u32 %v4051, %v4052
    %v4054 = vsel %vm4042, %v4050, %v4053
    %v4056 = vshrl.u32 %v3763, 16
    %v4058 = vrot.slane %v4056, 2
    %v4059 = vshll.u32 %v3763, 16
    %v4061 = vrot.slane %v4059, 3
    %v4062 = vor.u32 %v4058, %v4061
    %v4063 = vrot.slane %v2999, 2
    %v4064 = vrot.slane %v2987, 3
    %v4065 = vor.u32 %v4063, %v4064
    %v4066 = vsel %vm4042, %v4062, %v4065
    %v4067 = vrot.slane %v3007, 2
    %v4068 = vrot.slane %v2995, 3
    %v4069 = vor.u32 %v4067, %v4068
    %v4070 = vsel %vm4042, %v4053, %v4069
    %v4071 = vrot.slane %v3015, 2
    %v4072 = vrot.slane %v3003, 3
    %v4073 = vor.u32 %v4071, %v4072
    %v4074 = vsel %vm4042, %v4065, %v4073
    %v4075 = vrot.slane %v3023, 2
    %v4076 = vrot.slane %v3011, 3
    %v4077 = vor.u32 %v4075, %v4076
    %v4078 = vsel %vm4042, %v4069, %v4077
    %v4079 = vrot.slane %v3031, 2
    %v4080 = vrot.slane %v3019, 3
    %v4081 = vor.u32 %v4079, %v4080
    %v4082 = vsel %vm4042, %v4073, %v4081
    %v4084 = vshrl.u32 %v3764, 16
    %v4086 = vrot.slane %v4084, 2
    %v4087 = vshll.u32 %v3764, 16
    %v4089 = vrot.slane %v4087, 3
    %v4090 = vor.u32 %v4086, %v4089
    %v4091 = vsel %vm4042, %v4077, %v4090
    %v4093 = vshrl.u32 %v3765, 16
    %v4095 = vrot.slane %v4093, 2
    %v4096 = vshll.u32 %v3765, 16
    %v4098 = vrot.slane %v4096, 3
    %v4099 = vor.u32 %v4095, %v4098
    %v4100 = vsel %vm4042, %v4081, %v4099
    %v4143 = vunpack.c.l.b16 %v4010
    %v4144 = vunpack.c.l.b16 %v4011
    %v4145 = vunpack.c.l.b16 %v4012
    %v4146 = vunpack.c.l.b16 %v4013
    %v4147 = vunpack.c.l.b16 %v4014
    %v4148 = vunpack.c.l.b16 %v4015
    %v4149 = vunpack.c.l.b16 %v4016
    %v4150 = vunpack.c.l.b16 %v4017
    %v4151 = vunpack.c.l.b16 %v4018
    %v4152 = vunpack.c.l.b16 %v4019
    %v4153 = vunpack.c.l.b16 %v4020
    %v4154 = vunpack.c.l.b16 %v4021
    %v4155 = vunpack.c.l.b16 %v4022
    %v4156 = vunpack.c.l.b16 %v4023
    %v4157 = vunpack.c.l.b16 %v4024
    %v4158 = vunpack.c.l.b16 %v4025
    %v4159 = vunpack.c.l.b16 %v4026
    %v4160 = vunpack.c.l.b16 %v4027
    %v4161 = vunpack.c.l.b16 %v4028
    %v4162 = vunpack.c.l.b16 %v4029
    %v4163 = vunpack.c.l.b16 %v4030
    %v4164 = vunpack.c.l.b16 %v4031
    %v4165 = vunpack.c.l.b16 %v4032
    %v4166 = vunpack.c.l.b16 %v4033
    %v4167 = vunpack.c.l.b16 %v4034
    %v4168 = vunpack.c.l.b16 %v4035
    %v4169 = vunpack.c.l.b16 %v4036
    %v4170 = vunpack.c.l.b16 %v4037
    %v4171 = vunpack.c.l.b16 %v4038
    %v4172 = vunpack.c.l.b16 %v4039
    %v4173 = vunpack.c.l.b16 %v4040
    %v4174 = vunpack.c.l.b16 %v4041
    %v4175 = vpack.c.b16 %v4144, %v4143
    %v4176 = vpack.c.b16 %v4146, %v4145
    %v4177 = vpack.c.b16 %v4148, %v4147
    %v4178 = vpack.c.b16 %v4150, %v4149
    %v4179 = vpack.c.b16 %v4152, %v4151
    %v4180 = vpack.c.b16 %v4154, %v4153
    %v4181 = vpack.c.b16 %v4156, %v4155
    %v4182 = vpack.c.b16 %v4158, %v4157
    %v4183 = vpack.c.b16 %v4160, %v4159
    %v4184 = vpack.c.b16 %v4162, %v4161
    %v4185 = vpack.c.b16 %v4164, %v4163
    %v4186 = vpack.c.b16 %v4166, %v4165
    %v4187 = vpack.c.b16 %v4168, %v4167
    %v4188 = vpack.c.b16 %v4170, %v4169
    %v4189 = vpack.c.b16 %v4172, %v4171
    %v4190 = vpack.c.b16 %v4174, %v4173
    %4207 = vmatprep.subr.bf16.mxu0 0
    %4208 = vmatpush1.bf16.msra.mxu0 %v4175
    %4209 = vmatprep.subr.bf16.mxu0 0
    %4210 = vmatpush1.bf16.msra.mxu0 %v4176
    %4211 = vmatprep.subr.bf16.mxu0 0
    %4212 = vmatpush1.bf16.msra.mxu0 %v4177
    %4213 = vmatprep.subr.bf16.mxu0 0
    %4214 = vmatpush1.bf16.msra.mxu0 %v4178
    %4215 = vmatprep.subr.bf16.mxu0 0
    %4216 = vmatpush1.bf16.msra.mxu0 %v4179
    %4217 = vmatprep.subr.bf16.mxu0 0
    %4218 = vmatpush1.bf16.msra.mxu0 %v4180
    %4219 = vmatprep.subr.bf16.mxu0 0
    %4220 = vmatpush1.bf16.msra.mxu0 %v4181
    %4221 = vmatprep.subr.bf16.mxu0 0
    %4222 = vmatpush1.bf16.msra.mxu0 %v4182
    %4223 = vmatprep.subr.bf16.mxu0 0
    %4224 = vmatpush1.bf16.msra.mxu0 %v4183
    %4225 = vmatprep.subr.bf16.mxu0 0
    %4226 = vmatpush1.bf16.msra.mxu0 %v4184
    %4227 = vmatprep.subr.bf16.mxu0 0
    %4228 = vmatpush1.bf16.msra.mxu0 %v4185
    %4229 = vmatprep.subr.bf16.mxu0 0
    %4230 = vmatpush1.bf16.msra.mxu0 %v4186
    %4231 = vmatprep.subr.bf16.mxu0 0
    %4232 = vmatpush1.bf16.msra.mxu0 %v4187
    %4233 = vmatprep.subr.bf16.mxu0 0
    %4234 = vmatpush1.bf16.msra.mxu0 %v4188
    %4235 = vmatprep.subr.bf16.mxu0 0
    %4236 = vmatpush1.bf16.msra.mxu0 %v4189
    %4237 = vmatprep.subr.bf16.mxu0 0
    %4238 = vmatpush1.bf16.msra.mxu0 %v4190
    %4239 = vmatprep.mubr.bf16.mxu0 %v4066
    %4240 = vmatmul.mubr.bf16.gmra.mrb[0].mxu0 %v4054
    %v4241 = vpop.f32.mrb[0].mxu0
    %v4242 = vadd.f32 0.0, %v4241
    %v4243 = vpop.f32.mrb[0].mxu0
    %v4244 = vpop.f32.mrb[0].mxu0
    %v4245 = vadd.f32 0.0, %v4244
    %v4246 = vpop.f32.mrb[0].mxu0
    %4247 = vmatprep.mubr.bf16.mxu0 %v4074
    %4248 = vmatmul.mubr.bf16.gmra.mrb[0].mxu0 %v4070
    %v4249 = vpop.f32.mrb[0].mxu0
    %v4250 = vadd.f32 0.0, %v4249
    %v4251 = vpop.f32.mrb[0].mxu0
    %v4252 = vpop.f32.mrb[0].mxu0
    %v4253 = vadd.f32 0.0, %v4252
    %v4254 = vpop.f32.mrb[0].mxu0
    %4255 = vmatprep.mubr.bf16.mxu0 %v4082
    %4256 = vmatmul.mubr.bf16.gmra.mrb[0].mxu0 %v4078
    %v4257 = vpop.f32.mrb[0].mxu0
    %v4258 = vadd.f32 0.0, %v4257
    %v4259 = vpop.f32.mrb[0].mxu0
    %v4260 = vpop.f32.mrb[0].mxu0
    %v4261 = vadd.f32 0.0, %v4260
    %v4262 = vpop.f32.mrb[0].mxu0
    %4263 = vmatprep.mubr.bf16.mxu0 %v4100
    %4264 = vmatmul.mubr.bf16.gmra.mrb[0].mxu0 %v4091
    %v4265 = vpop.f32.mrb[0].mxu0
    %v4266 = vadd.f32 0.0, %v4265
    %v4267 = vpop.f32.mrb[0].mxu0
    %v4268 = vpop.f32.mrb[0].mxu0
    %v4269 = vadd.f32 0.0, %v4268
    %v4270 = vpop.f32.mrb[0].mxu0
    %4271 = vmatprep.mubr.bf16.mxu0 %v4095
    %4272 = vmatmul.mubr.bf16.gmra.mrb[0].mxu0 %v4086
    %v4273 = vpop.f32.mrb[0].mxu0
    %v4274 = vadd.f32 0.0, %v4273
    %v4275 = vpop.f32.mrb[0].mxu0
    %v4276 = vpop.f32.mrb[0].mxu0
    %v4277 = vpop.f32.mrb[0].mxu0
    %4278 = vdwg.mxu0
    %v4279 = vadd.f32 %v4000, %v4242
    %v4280 = vadd.f32 %v4001, %v4245
    %v4281 = vadd.f32 %v4002, %v4250
    %v4282 = vadd.f32 %v4003, %v4253
    %v4283 = vadd.f32 %v4004, %v4258
    %v4284 = vadd.f32 %v4005, %v4261
    %v4285 = vadd.f32 %v4006, %v4266
    %v4286 = vadd.f32 %v4007, %v4269
    %v4287 = vadd.f32 %v4008, %v4274
    %v4288 = vld [vmem:[#allocation2 + $0x10] sm:$0xf8]
    %v4289 = vld [vmem:[#allocation2 + $0x18] sm:$0xf8]
    %v4290 = vld [vmem:[#allocation2 + $0x50] sm:$0xf]
    %v4291 = vld [vmem:[#allocation2 + $0x58] sm:$0xf]
    %s4292 = scalar_lea.vmem %s3, 1792
    %v4293 = vld [vmem:[%s4292] sm:$0xf]
    %v4294 = vld [vmem:[%s4292 + $0x4] sm:$0xf]
    %v4295 = vld [vmem:[%s4292 + $0x8] sm:$0xf]
    %v4296 = vld [vmem:[%s4292 + $0xc] sm:$0xf]
    %v4297 = vld [vmem:[%s4292 + $0x10] sm:$0xf]
    %v4298 = vld [vmem:[%s4292 + $0x14] sm:$0xf]
    %v4299 = vld [vmem:[%s4292 + $0x18] sm:$0xf]
    %v4300 = vld [vmem:[%s4292 + $0x1c] sm:$0xf]
    %v4301 = vld [vmem:[%s4292 + $0x20] sm:$0xf]
    %v4302 = vld [vmem:[%s4292 + $0x24] sm:$0xf]
    %v4303 = vld [vmem:[%s4292 + $0x28] sm:$0xf]
    %v4304 = vld [vmem:[%s4292 + $0x2c] sm:$0xf]
    %v4305 = vld [vmem:[%s4292 + $0x30] sm:$0xf]
    %v4306 = vld [vmem:[%s4292 + $0x34] sm:$0xf]
    %v4307 = vld [vmem:[%s4292 + $0x38] sm:$0xf]
    %v4308 = vld [vmem:[%s4292 + $0x3c] sm:$0xf]
    %v4309 = vld [vmem:[%s4292 + $0x40] sm:$0xf]
    %v4310 = vld [vmem:[%s4292 + $0x44] sm:$0xf]
    %v4311 = vld [vmem:[%s4292 + $0x48] sm:$0xf]
    %v4312 = vld [vmem:[%s4292 + $0x4c] sm:$0xf]
    %v4313 = vld [vmem:[%s4292 + $0x50] sm:$0xf]
    %v4314 = vld [vmem:[%s4292 + $0x54] sm:$0xf]
    %v4315 = vld [vmem:[%s4292 + $0x58] sm:$0xf]
    %v4316 = vld [vmem:[%s4292 + $0x5c] sm:$0xf]
    %v4317 = vld [vmem:[%s4292 + $0x60] sm:$0xf]
    %v4318 = vld [vmem:[%s4292 + $0x64] sm:$0xf]
    %v4319 = vld [vmem:[%s4292 + $0x68] sm:$0xf]
    %v4320 = vld [vmem:[%s4292 + $0x6c] sm:$0xf]
    %v4321 = vld [vmem:[%s4292 + $0x70] sm:$0xf]
    %v4322 = vld [vmem:[%s4292 + $0x74] sm:$0xf]
    %v4323 = vld [vmem:[%s4292 + $0x78] sm:$0xf]
    %v4324 = vld [vmem:[%s4292 + $0x7c] sm:$0xf]
    %vm4329 = vcmask 1044480
    %v4330 = vrot.slane %v4288, 3
    %v4331 = vrot.slane %v2715, 3
    %v4332 = vsel %vm4329, %v4330, %v4331
    %v4333 = vrot.slane %v4289, 3
    %v4334 = vrot.slane %v2716, 3
    %v4335 = vsel %vm4329, %v4333, %v4334
    %v4336 = vrot.slane %v2717, 3
    %v4337 = vsel %vm4329, %v4331, %v4336
    %v4338 = vrot.slane %v2718, 3
    %v4339 = vsel %vm4329, %v4334, %v4338
    %v4340 = vrot.slane %v2719, 3
    %v4341 = vsel %vm4329, %v4336, %v4340
    %v4342 = vrot.slane %v2720, 3
    %v4343 = vsel %vm4329, %v4338, %v4342
    %v4344 = vrot.slane %v4290, 3
    %v4345 = vsel %vm4329, %v4340, %v4344
    %v4346 = vrot.slane %v4291, 3
    %v4347 = vsel %vm4329, %v4342, %v4346
    %v4390 = vunpack.c.l.b16 %v4293
    %v4391 = vunpack.c.l.b16 %v4294
    %v4392 = vunpack.c.l.b16 %v4295
    %v4393 = vunpack.c.l.b16 %v4296
    %v4394 = vunpack.c.l.b16 %v4297
    %v4395 = vunpack.c.l.b16 %v4298
    %v4396 = vunpack.c.l.b16 %v4299
    %v4397 = vunpack.c.l.b16 %v4300
    %v4398 = vunpack.c.l.b16 %v4301
    %v4399 = vunpack.c.l.b16 %v4302
    %v4400 = vunpack.c.l.b16 %v4303
    %v4401 = vunpack.c.l.b16 %v4304
    %v4402 = vunpack.c.l.b16 %v4305
    %v4403 = vunpack.c.l.b16 %v4306
    %v4404 = vunpack.c.l.b16 %v4307
    %v4405 = vunpack.c.l.b16 %v4308
    %v4406 = vunpack.c.l.b16 %v4309
    %v4407 = vunpack.c.l.b16 %v4310
    %v4408 = vunpack.c.l.b16 %v4311
    %v4409 = vunpack.c.l.b16 %v4312
    %v4410 = vunpack.c.l.b16 %v4313
    %v4411 = vunpack.c.l.b16 %v4314
    %v4412 = vunpack.c.l.b16 %v4315
    %v4413 = vunpack.c.l.b16 %v4316
    %v4414 = vunpack.c.l.b16 %v4317
    %v4415 = vunpack.c.l.b16 %v4318
    %v4416 = vunpack.c.l.b16 %v4319
    %v4417 = vunpack.c.l.b16 %v4320
    %v4418 = vunpack.c.l.b16 %v4321
    %v4419 = vunpack.c.l.b16 %v4322
    %v4420 = vunpack.c.l.b16 %v4323
    %v4421 = vunpack.c.l.b16 %v4324
    %v4422 = vpack.c.b16 %v4391, %v4390
    %v4423 = vpack.c.b16 %v4393, %v4392
    %v4424 = vpack.c.b16 %v4395, %v4394
    %v4425 = vpack.c.b16 %v4397, %v4396
    %v4426 = vpack.c.b16 %v4399, %v4398
    %v4427 = vpack.c.b16 %v4401, %v4400
    %v4428 = vpack.c.b16 %v4403, %v4402
    %v4429 = vpack.c.b16 %v4405, %v4404
    %v4430 = vpack.c.b16 %v4407, %v4406
    %v4431 = vpack.c.b16 %v4409, %v4408
    %v4432 = vpack.c.b16 %v4411, %v4410
    %v4433 = vpack.c.b16 %v4413, %v4412
    %v4434 = vpack.c.b16 %v4415, %v4414
    %v4435 = vpack.c.b16 %v4417, %v4416
    %v4436 = vpack.c.b16 %v4419, %v4418
    %v4437 = vpack.c.b16 %v4421, %v4420
    %4454 = vmatprep.subr.bf16.mxu0 0
    %4455 = vmatpush1.bf16.msra.mxu0 %v4422
    %4456 = vmatprep.subr.bf16.mxu0 0
    %4457 = vmatpush1.bf16.msra.mxu0 %v4423
    %4458 = vmatprep.subr.bf16.mxu0 0
    %4459 = vmatpush1.bf16.msra.mxu0 %v4424
    %4460 = vmatprep.subr.bf16.mxu0 0
    %4461 = vmatpush1.bf16.msra.mxu0 %v4425
    %4462 = vmatprep.subr.bf16.mxu0 0
    %4463 = vmatpush1.bf16.msra.mxu0 %v4426
    %4464 = vmatprep.subr.bf16.mxu0 0
    %4465 = vmatpush1.bf16.msra.mxu0 %v4427
    %4466 = vmatprep.subr.bf16.mxu0 0
    %4467 = vmatpush1.bf16.msra.mxu0 %v4428
    %4468 = vmatprep.subr.bf16.mxu0 0
    %4469 = vmatpush1.bf16.msra.mxu0 %v4429
    %4470 = vmatprep.subr.bf16.mxu0 0
    %4471 = vmatpush1.bf16.msra.mxu0 %v4430
    %4472 = vmatprep.subr.bf16.mxu0 0
    %4473 = vmatpush1.bf16.msra.mxu0 %v4431
    %4474 = vmatprep.subr.bf16.mxu0 0
    %4475 = vmatpush1.bf16.msra.mxu0 %v4432
    %4476 = vmatprep.subr.bf16.mxu0 0
    %4477 = vmatpush1.bf16.msra.mxu0 %v4433
    %4478 = vmatprep.subr.bf16.mxu0 0
    %4479 = vmatpush1.bf16.msra.mxu0 %v4434
    %4480 = vmatprep.subr.bf16.mxu0 0
    %4481 = vmatpush1.bf16.msra.mxu0 %v4435
    %4482 = vmatprep.subr.bf16.mxu0 0
    %4483 = vmatpush1.bf16.msra.mxu0 %v4436
    %4484 = vmatprep.subr.bf16.mxu0 0
    %4485 = vmatpush1.bf16.msra.mxu0 %v4437
    %4486 = vmatprep.mubr.bf16.mxu0 %v4335
    %4487 = vmatmul.mubr.bf16.gmra.mrb[0].mxu0 %v4332
    %v4488 = vpop.f32.mrb[0].mxu0
    %v4489 = vadd.f32 0.0, %v4488
    %v4490 = vpop.f32.mrb[0].mxu0
    %v4491 = vpop.f32.mrb[0].mxu0
    %v4492 = vadd.f32 0.0, %v4491
    %v4493 = vpop.f32.mrb[0].mxu0
    %4494 = vmatprep.mubr.bf16.mxu0 %v4339
    %4495 = vmatmul.mubr.bf16.gmra.mrb[0].mxu0 %v4337
    %v4496 = vpop.f32.mrb[0].mxu0
    %v4497 = vadd.f32 0.0, %v4496
    %v4498 = vpop.f32.mrb[0].mxu0
    %v4499 = vpop.f32.mrb[0].mxu0
    %v4500 = vadd.f32 0.0, %v4499
    %v4501 = vpop.f32.mrb[0].mxu0
    %4502 = vmatprep.mubr.bf16.mxu0 %v4343
    %4503 = vmatmul.mubr.bf16.gmra.mrb[0].mxu0 %v4341
    %v4504 = vpop.f32.mrb[0].mxu0
    %v4505 = vadd.f32 0.0, %v4504
    %v4506 = vpop.f32.mrb[0].mxu0
    %v4507 = vpop.f32.mrb[0].mxu0
    %v4508 = vadd.f32 0.0, %v4507
    %v4509 = vpop.f32.mrb[0].mxu0
    %4510 = vmatprep.mubr.bf16.mxu0 %v4347
    %4511 = vmatmul.mubr.bf16.gmra.mrb[0].mxu0 %v4345
    %v4512 = vpop.f32.mrb[0].mxu0
    %v4513 = vadd.f32 0.0, %v4512
    %v4514 = vpop.f32.mrb[0].mxu0
    %v4515 = vpop.f32.mrb[0].mxu0
    %v4516 = vadd.f32 0.0, %v4515
    %v4517 = vpop.f32.mrb[0].mxu0
    %4518 = vmatprep.mubr.bf16.mxu0 %v4346
    %4519 = vmatmul.mubr.bf16.gmra.mrb[0].mxu0 %v4344
    %v4520 = vpop.f32.mrb[0].mxu0
    %v4521 = vadd.f32 0.0, %v4520
    %v4522 = vpop.f32.mrb[0].mxu0
    %v4523 = vpop.f32.mrb[0].mxu0
    %v4524 = vpop.f32.mrb[0].mxu0
    %4525 = vdwg.mxu0
    %v4526 = vadd.f32 %v4279, %v4489
    %v4527 = vadd.f32 %v4280, %v4492
    %v4528 = vadd.f32 %v4281, %v4497
    %v4529 = vadd.f32 %v4282, %v4500
    %v4530 = vadd.f32 %v4283, %v4505
    %v4531 = vadd.f32 %v4284, %v4508
    %v4532 = vadd.f32 %v4285, %v4513
    %v4533 = vadd.f32 %v4286, %v4516
    %v4534 = vadd.f32 %v4287, %v4521
    %s4535 = scalar_lea.vmem %s3, 1920
    %v4536 = vld [vmem:[%s4535] sm:$0xf]
    %v4537 = vld [vmem:[%s4535 + $0x4] sm:$0xf]
    %v4538 = vld [vmem:[%s4535 + $0x8] sm:$0xf]
    %v4539 = vld [vmem:[%s4535 + $0xc] sm:$0xf]
    %v4540 = vld [vmem:[%s4535 + $0x10] sm:$0xf]
    %v4541 = vld [vmem:[%s4535 + $0x14] sm:$0xf]
    %v4542 = vld [vmem:[%s4535 + $0x18] sm:$0xf]
    %v4543 = vld [vmem:[%s4535 + $0x1c] sm:$0xf]
    %v4544 = vld [vmem:[%s4535 + $0x20] sm:$0xf]
    %v4545 = vld [vmem:[%s4535 + $0x24] sm:$0xf]
    %v4546 = vld [vmem:[%s4535 + $0x28] sm:$0xf]
    %v4547 = vld [vmem:[%s4535 + $0x2c] sm:$0xf]
    %v4548 = vld [vmem:[%s4535 + $0x30] sm:$0xf]
    %v4549 = vld [vmem:[%s4535 + $0x34] sm:$0xf]
    %v4550 = vld [vmem:[%s4535 + $0x38] sm:$0xf]
    %v4551 = vld [vmem:[%s4535 + $0x3c] sm:$0xf]
    %v4552 = vld [vmem:[%s4535 + $0x40] sm:$0xf]
    %v4553 = vld [vmem:[%s4535 + $0x44] sm:$0xf]
    %v4554 = vld [vmem:[%s4535 + $0x48] sm:$0xf]
    %v4555 = vld [vmem:[%s4535 + $0x4c] sm:$0xf]
    %v4556 = vld [vmem:[%s4535 + $0x50] sm:$0xf]
    %v4557 = vld [vmem:[%s4535 + $0x54] sm:$0xf]
    %v4558 = vld [vmem:[%s4535 + $0x58] sm:$0xf]
    %v4559 = vld [vmem:[%s4535 + $0x5c] sm:$0xf]
    %v4560 = vld [vmem:[%s4535 + $0x60] sm:$0xf]
    %v4561 = vld [vmem:[%s4535 + $0x64] sm:$0xf]
    %v4562 = vld [vmem:[%s4535 + $0x68] sm:$0xf]
    %v4563 = vld [vmem:[%s4535 + $0x6c] sm:$0xf]
    %v4564 = vld [vmem:[%s4535 + $0x70] sm:$0xf]
    %v4565 = vld [vmem:[%s4535 + $0x74] sm:$0xf]
    %v4566 = vld [vmem:[%s4535 + $0x78] sm:$0xf]
    %v4567 = vld [vmem:[%s4535 + $0x7c] sm:$0xf]
    %vm4568 = vsmask.f32 4352
    %v4570 = vshrl.u32 %v4288, 16
    %v4572 = vrot.slane %v4570, 3
    %v4573 = vshll.u32 %v4288, 16
    %v4575 = vrot.slane %v4573, 4
    %v4576 = vor.u32 %v4572, %v4575
    %v4577 = vrot.slane %v2991, 3
    %v4578 = vrot.slane %v2975, 4
    %v4579 = vor.u32 %v4577, %v4578
    %v4580 = vsel %vm4568, %v4576, %v4579
    %v4582 = vshrl.u32 %v4289, 16
    %v4584 = vrot.slane %v4582, 3
    %v4585 = vshll.u32 %v4289, 16
    %v4587 = vrot.slane %v4585, 4
    %v4588 = vor.u32 %v4584, %v4587
    %v4589 = vrot.slane %v2999, 3
    %v4590 = vrot.slane %v2987, 4
    %v4591 = vor.u32 %v4589, %v4590
    %v4592 = vsel %vm4568, %v4588, %v4591
    %v4593 = vrot.slane %v3007, 3
    %v4594 = vrot.slane %v2995, 4
    %v4595 = vor.u32 %v4593, %v4594
    %v4596 = vsel %vm4568, %v4579, %v4595
    %v4597 = vrot.slane %v3015, 3
    %v4598 = vrot.slane %v3003, 4
    %v4599 = vor.u32 %v4597, %v4598
    %v4600 = vsel %vm4568, %v4591, %v4599
    %v4601 = vrot.slane %v3023, 3
    %v4602 = vrot.slane %v3011, 4
    %v4603 = vor.u32 %v4601, %v4602
    %v4604 = vsel %vm4568, %v4595, %v4603
    %v4605 = vrot.slane %v3031, 3
    %v4606 = vrot.slane %v3019, 4
    %v4607 = vor.u32 %v4605, %v4606
    %v4608 = vsel %vm4568, %v4599, %v4607
    %v4610 = vshrl.u32 %v4290, 16
    %v4612 = vrot.slane %v4610, 3
    %v4613 = vshll.u32 %v4290, 16
    %v4615 = vrot.slane %v4613, 4
    %v4616 = vor.u32 %v4612, %v4615
    %v4617 = vsel %vm4568, %v4603, %v4616
    %v4619 = vshrl.u32 %v4291, 16
    %v4621 = vrot.slane %v4619, 3
    %v4622 = vshll.u32 %v4291, 16
    %v4624 = vrot.slane %v4622, 4
    %v4625 = vor.u32 %v4621, %v4624
    %v4626 = vsel %vm4568, %v4607, %v4625
    %v4669 = vunpack.c.l.b16 %v4536
    %v4670 = vunpack.c.l.b16 %v4537
    %v4671 = vunpack.c.l.b16 %v4538
    %v4672 = vunpack.c.l.b16 %v4539
    %v4673 = vunpack.c.l.b16 %v4540
    %v4674 = vunpack.c.l.b16 %v4541
    %v4675 = vunpack.c.l.b16 %v4542
    %v4676 = vunpack.c.l.b16 %v4543
    %v4677 = vunpack.c.l.b16 %v4544
    %v4678 = vunpack.c.l.b16 %v4545
    %v4679 = vunpack.c.l.b16 %v4546
    %v4680 = vunpack.c.l.b16 %v4547
    %v4681 = vunpack.c.l.b16 %v4548
    %v4682 = vunpack.c.l.b16 %v4549
    %v4683 = vunpack.c.l.b16 %v4550
    %v4684 = vunpack.c.l.b16 %v4551
    %v4685 = vunpack.c.l.b16 %v4552
    %v4686 = vunpack.c.l.b16 %v4553
    %v4687 = vunpack.c.l.b16 %v4554
    %v4688 = vunpack.c.l.b16 %v4555
    %v4689 = vunpack.c.l.b16 %v4556
    %v4690 = vunpack.c.l.b16 %v4557
    %v4691 = vunpack.c.l.b16 %v4558
    %v4692 = vunpack.c.l.b16 %v4559
    %v4693 = vunpack.c.l.b16 %v4560
    %v4694 = vunpack.c.l.b16 %v4561
    %v4695 = vunpack.c.l.b16 %v4562
    %v4696 = vunpack.c.l.b16 %v4563
    %v4697 = vunpack.c.l.b16 %v4564
    %v4698 = vunpack.c.l.b16 %v4565
    %v4699 = vunpack.c.l.b16 %v4566
    %v4700 = vunpack.c.l.b16 %v4567
    %v4701 = vpack.c.b16 %v4670, %v4669
    %v4702 = vpack.c.b16 %v4672, %v4671
    %v4703 = vpack.c.b16 %v4674, %v4673
    %v4704 = vpack.c.b16 %v4676, %v4675
    %v4705 = vpack.c.b16 %v4678, %v4677
    %v4706 = vpack.c.b16 %v4680, %v4679
    %v4707 = vpack.c.b16 %v4682, %v4681
    %v4708 = vpack.c.b16 %v4684, %v4683
    %v4709 = vpack.c.b16 %v4686, %v4685
    %v4710 = vpack.c.b16 %v4688, %v4687
    %v4711 = vpack.c.b16 %v4690, %v4689
    %v4712 = vpack.c.b16 %v4692, %v4691
    %v4713 = vpack.c.b16 %v4694, %v4693
    %v4714 = vpack.c.b16 %v4696, %v4695
    %v4715 = vpack.c.b16 %v4698, %v4697
    %v4716 = vpack.c.b16 %v4700, %v4699
    %4733 = vmatprep.subr.bf16.mxu0 0
    %4734 = vmatpush1.bf16.msra.mxu0 %v4701
    %4735 = vmatprep.subr.bf16.mxu0 0
    %4736 = vmatpush1.bf16.msra.mxu0 %v4702
    %4737 = vmatprep.subr.bf16.mxu0 0
    %4738 = vmatpush1.bf16.msra.mxu0 %v4703
    %4739 = vmatprep.subr.bf16.mxu0 0
    %4740 = vmatpush1.bf16.msra.mxu0 %v4704
    %4741 = vmatprep.subr.bf16.mxu0 0
    %4742 = vmatpush1.bf16.msra.mxu0 %v4705
    %4743 = vmatprep.subr.bf16.mxu0 0
    %4744 = vmatpush1.bf16.msra.mxu0 %v4706
    %4745 = vmatprep.subr.bf16.mxu0 0
    %4746 = vmatpush1.bf16.msra.mxu0 %v4707
    %4747 = vmatprep.subr.bf16.mxu0 0
    %4748 = vmatpush1.bf16.msra.mxu0 %v4708
    %4749 = vmatprep.subr.bf16.mxu0 0
    %4750 = vmatpush1.bf16.msra.mxu0 %v4709
    %4751 = vmatprep.subr.bf16.mxu0 0
    %4752 = vmatpush1.bf16.msra.mxu0 %v4710
    %4753 = vmatprep.subr.bf16.mxu0 0
    %4754 = vmatpush1.bf16.msra.mxu0 %v4711
    %4755 = vmatprep.subr.bf16.mxu0 0
    %4756 = vmatpush1.bf16.msra.mxu0 %v4712
    %4757 = vmatprep.subr.bf16.mxu0 0
    %4758 = vmatpush1.bf16.msra.mxu0 %v4713
    %4759 = vmatprep.subr.bf16.mxu0 0
    %4760 = vmatpush1.bf16.msra.mxu0 %v4714
    %4761 = vmatprep.subr.bf16.mxu0 0
    %4762 = vmatpush1.bf16.msra.mxu0 %v4715
    %4763 = vmatprep.subr.bf16.mxu0 0
    %4764 = vmatpush1.bf16.msra.mxu0 %v4716
    %4765 = vmatprep.mubr.bf16.mxu0 %v4592
    %4766 = vmatmul.mubr.bf16.gmra.mrb[0].mxu0 %v4580
    %v4767 = vpop.f32.mrb[0].mxu0
    %v4768 = vadd.f32 0.0, %v4767
    %v4769 = vpop.f32.mrb[0].mxu0
    %v4770 = vpop.f32.mrb[0].mxu0
    %v4771 = vadd.f32 0.0, %v4770
    %v4772 = vpop.f32.mrb[0].mxu0
    %4773 = vmatprep.mubr.bf16.mxu0 %v4600
    %4774 = vmatmul.mubr.bf16.gmra.mrb[0].mxu0 %v4596
    %v4775 = vpop.f32.mrb[0].mxu0
    %v4776 = vadd.f32 0.0, %v4775
    %v4777 = vpop.f32.mrb[0].mxu0
    %v4778 = vpop.f32.mrb[0].mxu0
    %v4779 = vadd.f32 0.0, %v4778
    %v4780 = vpop.f32.mrb[0].mxu0
    %4781 = vmatprep.mubr.bf16.mxu0 %v4608
    %4782 = vmatmul.mubr.bf16.gmra.mrb[0].mxu0 %v4604
    %v4783 = vpop.f32.mrb[0].mxu0
    %v4784 = vadd.f32 0.0, %v4783
    %v4785 = vpop.f32.mrb[0].mxu0
    %v4786 = vpop.f32.mrb[0].mxu0
    %v4787 = vadd.f32 0.0, %v4786
    %v4788 = vpop.f32.mrb[0].mxu0
    %4789 = vmatprep.mubr.bf16.mxu0 %v4626
    %4790 = vmatmul.mubr.bf16.gmra.mrb[0].mxu0 %v4617
    %v4791 = vpop.f32.mrb[0].mxu0
    %v4792 = vadd.f32 0.0, %v4791
    %v4793 = vpop.f32.mrb[0].mxu0
    %v4794 = vpop.f32.mrb[0].mxu0
    %v4795 = vadd.f32 0.0, %v4794
    %v4796 = vpop.f32.mrb[0].mxu0
    %4797 = vmatprep.mubr.bf16.mxu0 %v4621
    %4798 = vmatmul.mubr.bf16.gmra.mrb[0].mxu0 %v4612
    %v4799 = vpop.f32.mrb[0].mxu0
    %v4800 = vadd.f32 0.0, %v4799
    %v4801 = vpop.f32.mrb[0].mxu0
    %v4802 = vpop.f32.mrb[0].mxu0
    %v4803 = vpop.f32.mrb[0].mxu0
    %4804 = vdwg.mxu0
    %v4805 = vadd.f32 %v4526, %v4768
    %v4806 = vadd.f32 %v4527, %v4771
    %v4807 = vadd.f32 %v4528, %v4776
    %v4808 = vadd.f32 %v4529, %v4779
    %v4809 = vadd.f32 %v4530, %v4784
    %v4810 = vadd.f32 %v4531, %v4787
    %v4811 = vadd.f32 %v4532, %v4792
    %v4812 = vadd.f32 %v4533, %v4795
    %v4813 = vadd.f32 %v4534, %v4800
    %v4814 = vld [vmem:[%s4] sm:$0x1]
    %v4816 = vlaneseq
    %v4817 = vshrl.u32 %v4816, 7
    %v4818 = vsub.s32 0, %v4817
    %v4819 = vrot.slane %v4814, %v4818
    %v4821 = vadd.f32 %v4805, %v4819
    %v4822 = vadd.f32 %v4806, %v4819
    %v4823 = vadd.f32 %v4807, %v4819
    %v4824 = vadd.f32 %v4808, %v4819
    %v4825 = vadd.f32 %v4809, %v4819
    %v4826 = vadd.f32 %v4810, %v4819
    %v4827 = vadd.f32 %v4811, %v4819
    %v4828 = vadd.f32 %v4812, %v4819
    %v4829 = vadd.f32 %v4813, %v4819
    %vm4830 = vcmp.ge.f32.partialorder %v4821, 0.0
    %vm4831 = vcmp.ge.f32.partialorder %v4822, 0.0
    %vm4832 = vcmp.ge.f32.partialorder %v4823, 0.0
    %vm4833 = vcmp.ge.f32.partialorder %v4824, 0.0
    %vm4834 = vcmp.ge.f32.partialorder %v4825, 0.0
    %vm4835 = vcmp.ge.f32.partialorder %v4826, 0.0
    %vm4836 = vcmp.ge.f32.partialorder %v4827, 0.0
    %vm4837 = vcmp.ge.f32.partialorder %v4828, 0.0
    %vm4838 = vcmp.ge.f32.partialorder %v4829, 0.0
    %v4839 = vmul.f32 %v4821, 0.1
    %v4840 = vmul.f32 %v4822, 0.1
    %v4841 = vmul.f32 %v4823, 0.1
    %v4842 = vmul.f32 %v4824, 0.1
    %v4843 = vmul.f32 %v4825, 0.1
    %v4844 = vmul.f32 %v4826, 0.1
    %v4845 = vmul.f32 %v4827, 0.1
    %v4846 = vmul.f32 %v4828, 0.1
    %v4847 = vmul.f32 %v4829, 0.1
    %v4848 = vsel %vm4830, %v4821, %v4839
    %v4849 = vsel %vm4831, %v4822, %v4840
    %v4850 = vsel %vm4832, %v4823, %v4841
    %v4851 = vsel %vm4833, %v4824, %v4842
    %v4852 = vsel %vm4834, %v4825, %v4843
    %v4853 = vsel %vm4835, %v4826, %v4844
    %v4854 = vsel %vm4836, %v4827, %v4845
    %v4855 = vsel %vm4837, %v4828, %v4846
    %v4856 = vsel %vm4838, %v4829, %v4847
    %v4866 = vrot.slane %v4848, 1
    %v4867 = vrot.slane %v4849, 1
    %v4868 = vsel %vm447, %v4866, %v4867
    %v4869 = vrot.slane %v4850, 1
    %v4870 = vsel %vm447, %v4867, %v4869
    %v4871 = vrot.slane %v4851, 1
    %v4872 = vsel %vm447, %v4869, %v4871
    %v4873 = vrot.slane %v4852, 1
    %v4874 = vsel %vm447, %v4871, %v4873
    %v4875 = vrot.slane %v4853, 1
    %v4876 = vsel %vm447, %v4873, %v4875
    %v4877 = vrot.slane %v4854, 1
    %v4878 = vsel %vm447, %v4875, %v4877
    %v4879 = vrot.slane %v4855, 1
    %v4880 = vsel %vm447, %v4877, %v4879
    %v4881 = vrot.slane %v4856, 1
    %v4882 = vsel %vm447, %v4879, %v4881
    %v4891 = vmax.f32 %v4848, %v4868
    %v4892 = vmax.f32 %v4849, %v4870
    %v4893 = vmax.f32 %v4850, %v4872
    %v4894 = vmax.f32 %v4851, %v4874
    %v4895 = vmax.f32 %v4852, %v4876
    %v4896 = vmax.f32 %v4853, %v4878
    %v4897 = vmax.f32 %v4854, %v4880
    %v4898 = vmax.f32 %v4855, %v4882
    %v4899 = vld [vmem:[%s6] sm:$0x1]
    %v4900 = vld [vmem:[%s5] sm:$0xff]
    %v4901 = vld [vmem:[%s5 + $0x8] sm:$0xff]
    %v4902 = vld [vmem:[%s5 + $0x10] sm:$0xff]
    %v4903 = vld [vmem:[%s5 + $0x18] sm:$0xff]
    %v4904 = vld [vmem:[%s5 + $0x20] sm:$0xff]
    %v4905 = vld [vmem:[%s5 + $0x28] sm:$0xff]
    %v4906 = vld [vmem:[%s5 + $0x30] sm:$0xff]
    %v4907 = vld [vmem:[%s5 + $0x38] sm:$0xff]
    %v4908 = vmul.f32 %v4891, %v4900
    %v4909 = vmul.f32 %v4892, %v4901
    %v4910 = vmul.f32 %v4893, %v4902
    %v4911 = vmul.f32 %v4894, %v4903
    %v4912 = vmul.f32 %v4895, %v4904
    %v4913 = vmul.f32 %v4896, %v4905
    %v4914 = vmul.f32 %v4897, %v4906
    %v4915 = vmul.f32 %v4898, %v4907
    %v4916 = vadd.f32 %v4908, %v4909
    %v4917 = vadd.f32 %v4916, %v4910
    %v4918 = vadd.f32 %v4917, %v4911
    %v4919 = vadd.f32 %v4918, %v4912
    %v4920 = vadd.f32 %v4919, %v4913
    %v4921 = vadd.f32 %v4920, %v4914
    %v4922 = vadd.f32 %v4921, %v4915
    %4923 = vadd.xlane.f32.xlu0 %v4922
    %v4924 = vpop.xlane.xlu0 %4923
    %v4925 = vrot.slane %v4924, 4
    %v4926 = vadd.f32 %v4924, %v4925
    %v4927 = vrot.slane %v4926, 2
    %v4928 = vadd.f32 %v4926, %v4927
    %v4929 = vrot.slane %v4928, 1
    %v4930 = vadd.f32 %v4928, %v4929
    %s4931 = vtos %v4930
    %vm4932 = vcmp.eq.s32.totalorder %v32, 0
    %v4933 = vstv %s4931
    %v4934 = vsel %vm4932, %v4933, 0.0
    %v4935 = vadd.f32 %v4899, %v4934
    %s4936 = scalar_lea.vmem %s5, 64
    %v4937 = vld [vmem:[%s4936] sm:$0xff]
    %v4938 = vld [vmem:[%s4936 + $0x8] sm:$0xff]
    %v4939 = vld [vmem:[%s4936 + $0x10] sm:$0xff]
    %v4940 = vld [vmem:[%s4936 + $0x18] sm:$0xff]
    %v4941 = vld [vmem:[%s4936 + $0x20] sm:$0xff]
    %v4942 = vld [vmem:[%s4936 + $0x28] sm:$0xff]
    %v4943 = vld [vmem:[%s4936 + $0x30] sm:$0xff]
    %v4944 = vld [vmem:[%s4936 + $0x38] sm:$0xff]
    %v4945 = vmul.f32 %v4891, %v4937
    %v4946 = vmul.f32 %v4892, %v4938
    %v4947 = vmul.f32 %v4893, %v4939
    %v4948 = vmul.f32 %v4894, %v4940
    %v4949 = vmul.f32 %v4895, %v4941
    %v4950 = vmul.f32 %v4896, %v4942
    %v4951 = vmul.f32 %v4897, %v4943
    %v4952 = vmul.f32 %v4898, %v4944
    %v4953 = vadd.f32 %v4945, %v4946
    %v4954 = vadd.f32 %v4953, %v4947
    %v4955 = vadd.f32 %v4954, %v4948
    %v4956 = vadd.f32 %v4955, %v4949
    %v4957 = vadd.f32 %v4956, %v4950
    %v4958 = vadd.f32 %v4957, %v4951
    %v4959 = vadd.f32 %v4958, %v4952
    %4960 = vadd.xlane.f32.xlu0 %v4959
    %v4961 = vpop.xlane.xlu0 %4960
    %v4962 = vrot.slane %v4961, 4
    %v4963 = vadd.f32 %v4961, %v4962
    %v4964 = vrot.slane %v4963, 2
    %v4965 = vadd.f32 %v4963, %v4964
    %v4966 = vrot.slane %v4965, 1
    %v4967 = vadd.f32 %v4965, %v4966
    %s4968 = vtos %v4967
    %vm4969 = vcmp.eq.s32.totalorder %v32, 1
    %v4970 = vstv %s4968
    %v4971 = vsel %vm4969, %v4970, 0.0
    %v4972 = vadd.f32 %v4935, %v4971
    %s4973 = scalar_lea.vmem %s7, %s34
    %4974 = vst [vmem:[%s4973] sm:$0x1] %v4972
  $region34: #{wave2_forward.1} parent=0 // loop_footer
    %s38 = sadd.s32 1, %s34
  $region35: #{wave2_forward.1} parent=0 // loop_footer_branch
    %33 = sbr.rel target = $region31
  $region36: #{wave2_forward.1} parent=0 // loop_exit
    _
  // Predicated region
  $region37: #{wave2_forward.1} parent=0 // pred_check
    _
  $region38: #{wave2_forward.1} parent=0 // pred_check_branch
    %4976 = sbr.rel (0) target = $region40
  $region39: #{wave2_forward.1} parent=0 // pred_region
    _
  $region40: #{wave2_forward.1} parent=0 // pred_fallthru
    _
  // Predicated region
  $region41: #{wave2_forward.1} parent=0 // pred_check
    _
  $region42: #{wave2_forward.1} parent=0 // pred_check_branch
    %4978 = sbr.rel (0) target = $region44
  $region43: #{wave2_forward.1} parent=0 // pred_region
    _
  $region44: #{wave2_forward.1} parent=0 // pred_fallthru
    _

</llo_original>
